<compile_context>
chip_gen: v7x
topology: tpu7x:2x2x1
jax: 0.10.0
libtpu: 0.0.40
codegen_flags: <defaults>
</compile_context>

<pallas_src>
import jax
import jax.numpy as jnp
from jax import lax
from jax.experimental import pallas as pl
from jax.experimental.pallas import tpu as pltpu

EPS = 1e-5


# ----------------------------- fused Pallas kernel ---------------------------

def _make_fused_kernel(D, H, W, cin, mid, cout):
    HW = H * W
    DHW = D * HW

    def kernel(x_ref, w1_ref, b1_ref, w2_ref, b2_ref, w3_ref, b3_ref,
               o_ref, pad_ref):
        # ---- stage 1: conv1 (1x1x1, BN1-folded) + shift + ReLU ---------------
        x = x_ref[0].reshape(DHW, cin)                          # f32 (residual)
        out1 = jnp.dot(x.astype(jnp.bfloat16), w1_ref[...],
                       preferred_element_type=jnp.float32)
        out1 = jnp.maximum(out1 + b1_ref[...], 0.0)             # (DHW, mid) f32

        # ---- zero-padded out1 tile in VMEM: the interior is fully overwritten
        # each step, so only the 1-wide border ring needs zeroing (this IS the
        # 3x3x3 conv's zero padding along D/H/W). ------------------------------
        pad_ref[0:1, :, :, :] = jnp.zeros((1, H + 2, W + 2, mid), jnp.float32)
        pad_ref[D + 1:D + 2, :, :, :] = jnp.zeros((1, H + 2, W + 2, mid),
                                                  jnp.float32)
        pad_ref[1:D + 1, 0:1, :, :] = jnp.zeros((D, 1, W + 2, mid), jnp.float32)
        pad_ref[1:D + 1, H + 1:H + 2, :, :] = jnp.zeros((D, 1, W + 2, mid),
                                                        jnp.float32)
        pad_ref[1:D + 1, 1:H + 1, 0:1, :] = jnp.zeros((D, H, 1, mid),
                                                      jnp.float32)
        pad_ref[1:D + 1, 1:H + 1, W + 1:W + 2, :] = jnp.zeros((D, H, 1, mid),
                                                              jnp.float32)
        pad_ref[1:D + 1, 1:H + 1, 1:W + 1, :] = out1.reshape(D, H, W, mid)

        # ---- stage 2: grouped conv2 (3x3x3, pad=1, BN2-folded) as ONE matmul:
        # tap-stacked activation (DHW, 27*mid) x block-diagonal (27*mid, mid). --
        taps = [pad_ref[kd:kd + D, kh:kh + H, kw:kw + W, :].reshape(DHW, mid)
                for kd in range(3) for kh in range(3) for kw in range(3)]
        a2 = jnp.concatenate(taps, axis=-1).astype(jnp.bfloat16)  # (DHW, 27*mid)
        out2 = jnp.dot(a2, w2_ref[...], preferred_element_type=jnp.float32)
        out2 = jnp.maximum(out2 + b2_ref[...], 0.0)               # (DHW, mid)

        # ---- stage 3: conv3 (1x1x1, BN3-folded) + f32 identity residual + ReLU
        out3 = jnp.dot(out2.astype(jnp.bfloat16), w3_ref[...],
                       preferred_element_type=jnp.float32)
        out3 = out3 + b3_ref[...] + x
        o_ref[0] = jnp.maximum(out3, 0.0).reshape(D, HW, cout)

    return kernel


# ------------------------------- JAX glue ------------------------------------

def fold_bn(bn):
    gamma, beta, rmean, rvar = bn
    scale = gamma / jnp.sqrt(rvar + EPS)
    shift = beta - rmean * scale
    return scale, shift


def resnext_bottleneck_forward(x_ncdhw, p):
    """Fused Pallas forward. x_ncdhw: (N, Cin, D, H, W) float32. Returns NCDHW f32."""
    N, Cin, D, H, W = x_ncdhw.shape
    mid, cout, G = p['mid'], p['cout'], p['cardinality']
    cg = mid // G
    HW = H * W
    assert cout == Cin, "identity residual requires conv3-out == inplanes"
    assert mid % G == 0

    # channels-last f32 input: it doubles as the (full-precision) residual;
    # the bf16 cast for the conv1 MXU operand happens inside the kernel.
    x_nl = jnp.transpose(x_ncdhw, (0, 2, 3, 4, 1)).reshape(N, D, HW, Cin)

    # ---- fold eval-mode BN scales into the conv weights; keep shifts as biases
    s1, b1 = fold_bn(p['bn1'])
    s2, b2 = fold_bn(p['bn2'])
    s3, b3 = fold_bn(p['bn3'])

    # conv1 (mid, Cin, 1,1,1) -> (Cin, mid), BN1-scaled, bf16
    w1 = (p['w1'].reshape(mid, Cin).T * s1[None, :]).astype(jnp.bfloat16)

    # grouped conv2 (mid, mid/G, 3,3,3) -> block-diagonal dense (27*mid, mid),
    # BN2-scaled, bf16.  Row index = tap*mid + in_channel, col = out_channel.
    w2g = p['w2'].reshape(G, cg, cg, 3, 3, 3)            # (G, co_g, ci_g, kd,kh,kw)
    w2t = jnp.transpose(w2g, (3, 4, 5, 0, 2, 1)).reshape(27, G, cg, cg)
    w2d = jnp.einsum('tgic,gh->tgihc', w2t, jnp.eye(G, dtype=w2t.dtype))
    w2d = (w2d.reshape(27 * mid, mid) * s2[None, :]).astype(jnp.bfloat16)

    # conv3 (cout, mid, 1,1,1) -> (mid, cout), BN3-scaled, bf16
    w3 = (p['w3'].reshape(cout, mid).T * s3[None, :]).astype(jnp.bfloat16)

    b1r = b1.reshape(1, mid).astype(jnp.float32)
    b2r = b2.reshape(1, mid).astype(jnp.float32)
    b3r = b3.reshape(1, cout).astype(jnp.float32)

    kernel = _make_fused_kernel(D, H, W, Cin, mid, cout)

    out = pl.pallas_call(
        kernel,
        out_shape=jax.ShapeDtypeStruct((N, D, HW, cout), jnp.float32),
        grid=(N,),
        in_specs=[
            # full depth block per batch element (also the f32 identity residual)
            pl.BlockSpec((1, D, HW, Cin), lambda n: (n, 0, 0, 0)),
            # weights / BN shifts (constant block index -> DMA'd once, revisited)
            pl.BlockSpec((Cin, mid), lambda n: (0, 0)),
            pl.BlockSpec((1, mid), lambda n: (0, 0)),
            pl.BlockSpec((27 * mid, mid), lambda n: (0, 0)),
            pl.BlockSpec((1, mid), lambda n: (0, 0)),
            pl.BlockSpec((mid, cout), lambda n: (0, 0)),
            pl.BlockSpec((1, cout), lambda n: (0, 0)),
        ],
        out_specs=pl.BlockSpec((1, D, HW, cout), lambda n: (n, 0, 0, 0)),
        scratch_shapes=[pltpu.VMEM((D + 2, H + 2, W + 2, mid), jnp.float32)],
        compiler_params=pltpu.CompilerParams(
            dimension_semantics=("parallel",),
            vmem_limit_bytes=32 * 1024 * 1024,
        ),
    )(x_nl, w1, b1r, w2d, b2r, w3, b3r)

    return jnp.transpose(out.reshape(N, D, H, W, cout), (0, 4, 1, 2, 3))


# ------------------------------ reference & init ------------------------------

def init_params(key, inplanes, planes, cardinality):
    expansion = 2
    mid = cardinality * int(planes / 32)
    cout = planes * expansion
    keys = jax.random.split(key, 8)

    def w_init(k, shape, fan_in):
        return jax.random.normal(k, shape, jnp.float32) / jnp.sqrt(float(fan_in))

    w1 = w_init(keys[0], (mid, inplanes, 1, 1, 1), inplanes)
    w2 = w_init(keys[1], (mid, mid // cardinality, 3, 3, 3),
                (mid // cardinality) * 27)
    w3 = w_init(keys[2], (cout, mid, 1, 1, 1), mid)

    def bn_init(k, c):
        k1, k2, k3, k4 = jax.random.split(k, 4)
        gamma = 0.5 + jax.random.uniform(k1, (c,), jnp.float32)
        beta = 0.1 * jax.random.normal(k2, (c,), jnp.float32)
        rmean = 0.1 * jax.random.normal(k3, (c,), jnp.float32)
        rvar = 0.5 + jax.random.uniform(k4, (c,), jnp.float32)
        return gamma, beta, rmean, rvar

    return dict(
        w1=w1, w2=w2, w3=w3,
        bn1=bn_init(keys[3], mid), bn2=bn_init(keys[4], mid),
        bn3=bn_init(keys[5], cout),
        inplanes=inplanes, mid=mid, cout=cout, cardinality=cardinality,
    )


def forward_reference(x, p):
    """Pure-JAX (lax.conv, all f32) reference with identical eval-mode BN semantics."""
    dn = ('NCDHW', 'OIDHW', 'NCDHW')

    def bn_apply(y, bn):
        gamma, beta, rmean, rvar = bn
        sh = (1, -1, 1, 1, 1)
        return ((y - rmean.reshape(sh)) / jnp.sqrt(rvar.reshape(sh) + EPS)
                * gamma.reshape(sh) + beta.reshape(sh))

    out = lax.conv_general_dilated(x, p['w1'], (1, 1, 1), 'VALID',
                                   dimension_numbers=dn)
    out = jax.nn.relu(bn_apply(out, p['bn1']))
    out = lax.conv_general_dilated(out, p['w2'], (1, 1, 1),
                                   ((1, 1), (1, 1), (1, 1)),
                                   dimension_numbers=dn,
                                   feature_group_count=p['cardinality'])
    out = jax.nn.relu(bn_apply(out, p['bn2']))
    out = lax.conv_general_dilated(out, p['w3'], (1, 1, 1), 'VALID',
                                   dimension_numbers=dn)
    out = bn_apply(out, p['bn3'])
    return jax.nn.relu(out + x)


if __name__ == "__main__":
    # ResNeXtBottleneck(inplanes=128, planes=64, cardinality=2, stride=1,
    #                   downsample=None)  -> mid_planes = 4, out channels = 128
    inplanes, planes, cardinality = 128, 64, 2
    key = jax.random.PRNGKey(0)
    kx, kp = jax.random.split(key)

    x = jax.random.normal(kx, (2, inplanes, 4, 8, 8), jnp.float32)
    params = init_params(kp, inplanes, planes, cardinality)

    out = jax.block_until_ready(resnext_bottleneck_forward(x, params))
    ref = jax.block_until_ready(forward_reference(x, params))

    assert out.shape == ref.shape == (2, planes * 2, 4, 8, 8)
    # Relative check (vs the all-f32 reference): the residual is f32 now and only
    # the conv-path MXU operands are bf16, so the error is O(1e-2) absolute on
    # O(1-10) values.
    max_err = float(jnp.max(jnp.abs(out - ref)))
    ref_scale = float(jnp.max(jnp.abs(ref)))
    rel_err = max_err / max(ref_scale, 1.0)
    assert rel_err < 3e-2, f"mismatch vs reference: max_err={max_err}, rel={rel_err}"

    print("KERNEL_OK")
</pallas_src>

<mosaic_0001>
module attributes {stable_mosaic.version = 11 : i64} {
  func.func @kernel(%arg0: i32, %arg1: memref<1x4x64x128xf32, #tpu.memory_space<vmem>>, %arg2: memref<128x4xbf16, #tpu.memory_space<vmem>>, %arg3: memref<1x4xf32, #tpu.memory_space<vmem>>, %arg4: memref<108x4xbf16, #tpu.memory_space<vmem>>, %arg5: memref<1x4xf32, #tpu.memory_space<vmem>>, %arg6: memref<4x128xbf16, #tpu.memory_space<vmem>>, %arg7: memref<1x128xf32, #tpu.memory_space<vmem>>, %arg8: memref<1x4x64x128xf32, #tpu.memory_space<vmem>>, %arg9: memref<6x10x10x4xf32, #tpu.memory_space<vmem>>) attributes {dimension_semantics = [#tpu.dimension_semantics<parallel>], iteration_bounds = array<i64: 2>, scalar_prefetch = 0 : i64, scratch_operands = 1 : i64, tpu.core_type = #tpu.core_type<tc>, window_params = [{transform_indices = @transform_0, window_bounds = array<i64: 1, 4, 64, 128>}, {pipeline_mode = #tpu.pipeline_mode<synchronous>, transform_indices = @transform_1, window_bounds = array<i64: 128, 4>}, {pipeline_mode = #tpu.pipeline_mode<synchronous>, transform_indices = @transform_2, window_bounds = array<i64: 1, 4>}, {pipeline_mode = #tpu.pipeline_mode<synchronous>, transform_indices = @transform_3, window_bounds = array<i64: 108, 4>}, {pipeline_mode = #tpu.pipeline_mode<synchronous>, transform_indices = @transform_4, window_bounds = array<i64: 1, 4>}, {pipeline_mode = #tpu.pipeline_mode<synchronous>, transform_indices = @transform_5, window_bounds = array<i64: 4, 128>}, {pipeline_mode = #tpu.pipeline_mode<synchronous>, transform_indices = @transform_6, window_bounds = array<i64: 1, 128>}, {transform_indices = @transform_7, window_bounds = array<i64: 1, 4, 64, 128>}]} {
    %c0 = arith.constant 0 : index
    %c0_0 = arith.constant 0 : index
    %c0_1 = arith.constant 0 : index
    %c0_2 = arith.constant 0 : index
    %0 = vector.load %arg1[%c0, %c0_0, %c0_1, %c0_2] : memref<1x4x64x128xf32, #tpu.memory_space<vmem>>, vector<1x4x64x128xf32>
    %1 = vector.shape_cast %0 : vector<1x4x64x128xf32> to vector<4x64x128xf32>
    %2 = vector.shape_cast %1 : vector<4x64x128xf32> to vector<256x128xf32>
    %3 = arith.truncf %2 : vector<256x128xf32> to vector<256x128xbf16>
    %c0_3 = arith.constant 0 : index
    %c0_4 = arith.constant 0 : index
    %4 = vector.load %arg2[%c0_3, %c0_4] : memref<128x4xbf16, #tpu.memory_space<vmem>>, vector<128x4xbf16>
    %cst = arith.constant dense<0.000000e+00> : vector<256x4xf32>
    %5 = tpu.matmul %3, %4, %cst {dimension_numbers = #tpu.dot_dimension_numbers<[1], [0], [0], [1], [0, 0, 1, 1], [], []>} : vector<256x128xbf16>, vector<128x4xbf16>, vector<256x4xf32> -> vector<256x4xf32>
    %c0_5 = arith.constant 0 : index
    %c0_6 = arith.constant 0 : index
    %6 = vector.load %arg3[%c0_5, %c0_6] : memref<1x4xf32, #tpu.memory_space<vmem>>, vector<1x4xf32>
    %7 = vector.broadcast %6 : vector<1x4xf32> to vector<256x4xf32>
    %8 = arith.addf %5, %7 : vector<256x4xf32>
    %cst_7 = arith.constant 0.000000e+00 : f32
    %9 = vector.broadcast %cst_7 : f32 to vector<256x4xf32>
    %10 = arith.maximumf %8, %9 : vector<256x4xf32>
    %cst_8 = arith.constant 0.000000e+00 : f32
    %11 = vector.broadcast %cst_8 : f32 to vector<1x10x10x4xf32>
    %c0_9 = arith.constant 0 : index
    %c0_10 = arith.constant 0 : index
    %c0_11 = arith.constant 0 : index
    %c0_12 = arith.constant 0 : index
    %12 = vector.load %arg9[%c0_9, %c0_10, %c0_11, %c0_12] : memref<6x10x10x4xf32, #tpu.memory_space<vmem>>, vector<1x10x10x4xf32>
    tpu.vector_store %arg9[%c0_9, %c0_10, %c0_11, %c0_12], %11 {strides = array<i32>} : memref<6x10x10x4xf32, #tpu.memory_space<vmem>>, vector<1x10x10x4xf32>,
    %cst_13 = arith.constant 0.000000e+00 : f32
    %13 = vector.broadcast %cst_13 : f32 to vector<1x10x10x4xf32>
    %c5 = arith.constant 5 : index
    %c0_14 = arith.constant 0 : index
    %c0_15 = arith.constant 0 : index
    %c0_16 = arith.constant 0 : index
    %14 = vector.load %arg9[%c5, %c0_14, %c0_15, %c0_16] : memref<6x10x10x4xf32, #tpu.memory_space<vmem>>, vector<1x10x10x4xf32>
    tpu.vector_store %arg9[%c5, %c0_14, %c0_15, %c0_16], %13 {strides = array<i32>} : memref<6x10x10x4xf32, #tpu.memory_space<vmem>>, vector<1x10x10x4xf32>,
    %cst_17 = arith.constant 0.000000e+00 : f32
    %15 = vector.broadcast %cst_17 : f32 to vector<4x1x10x4xf32>
    %c1 = arith.constant 1 : index
    %c0_18 = arith.constant 0 : index
    %c0_19 = arith.constant 0 : index
    %c0_20 = arith.constant 0 : index
    %16 = vector.load %arg9[%c1, %c0_18, %c0_19, %c0_20] : memref<6x10x10x4xf32, #tpu.memory_space<vmem>>, vector<4x1x10x4xf32>
    tpu.vector_store %arg9[%c1, %c0_18, %c0_19, %c0_20], %15 {strides = array<i32>} : memref<6x10x10x4xf32, #tpu.memory_space<vmem>>, vector<4x1x10x4xf32>,
    %cst_21 = arith.constant 0.000000e+00 : f32
    %17 = vector.broadcast %cst_21 : f32 to vector<4x1x10x4xf32>
    %c1_22 = arith.constant 1 : index
    %c9 = arith.constant 9 : index
    %c0_23 = arith.constant 0 : index
    %c0_24 = arith.constant 0 : index
    %18 = vector.load %arg9[%c1_22, %c9, %c0_23, %c0_24] : memref<6x10x10x4xf32, #tpu.memory_space<vmem>>, vector<4x1x10x4xf32>
    tpu.vector_store %arg9[%c1_22, %c9, %c0_23, %c0_24], %17 {strides = array<i32>} : memref<6x10x10x4xf32, #tpu.memory_space<vmem>>, vector<4x1x10x4xf32>,
    %cst_25 = arith.constant 0.000000e+00 : f32
    %19 = vector.broadcast %cst_25 : f32 to vector<4x8x1x4xf32>
    %c1_26 = arith.constant 1 : index
    %c1_27 = arith.constant 1 : index
    %c0_28 = arith.constant 0 : index
    %c0_29 = arith.constant 0 : index
    %20 = vector.load %arg9[%c1_26, %c1_27, %c0_28, %c0_29] : memref<6x10x10x4xf32, #tpu.memory_space<vmem>>, vector<4x8x1x4xf32>
    tpu.vector_store %arg9[%c1_26, %c1_27, %c0_28, %c0_29], %19 {strides = array<i32>} : memref<6x10x10x4xf32, #tpu.memory_space<vmem>>, vector<4x8x1x4xf32>,
    %cst_30 = arith.constant 0.000000e+00 : f32
    %21 = vector.broadcast %cst_30 : f32 to vector<4x8x1x4xf32>
    %c1_31 = arith.constant 1 : index
    %c1_32 = arith.constant 1 : index
    %c9_33 = arith.constant 9 : index
    %c0_34 = arith.constant 0 : index
    %22 = vector.load %arg9[%c1_31, %c1_32, %c9_33, %c0_34] : memref<6x10x10x4xf32, #tpu.memory_space<vmem>>, vector<4x8x1x4xf32>
    tpu.vector_store %arg9[%c1_31, %c1_32, %c9_33, %c0_34], %21 {strides = array<i32>} : memref<6x10x10x4xf32, #tpu.memory_space<vmem>>, vector<4x8x1x4xf32>,
    %23 = vector.shape_cast %10 : vector<256x4xf32> to vector<4x8x8x4xf32>
    %c1_35 = arith.constant 1 : index
    %c1_36 = arith.constant 1 : index
    %c1_37 = arith.constant 1 : index
    %c0_38 = arith.constant 0 : index
    %24 = vector.load %arg9[%c1_35, %c1_36, %c1_37, %c0_38] : memref<6x10x10x4xf32, #tpu.memory_space<vmem>>, vector<4x8x8x4xf32>
    tpu.vector_store %arg9[%c1_35, %c1_36, %c1_37, %c0_38], %23 {strides = array<i32>} : memref<6x10x10x4xf32, #tpu.memory_space<vmem>>, vector<4x8x8x4xf32>,
    %c0_39 = arith.constant 0 : index
    %c0_40 = arith.constant 0 : index
    %c0_41 = arith.constant 0 : index
    %c0_42 = arith.constant 0 : index
    %25 = vector.load %arg9[%c0_39, %c0_40, %c0_41, %c0_42] : memref<6x10x10x4xf32, #tpu.memory_space<vmem>>, vector<4x8x8x4xf32>
    %26 = vector.shape_cast %25 : vector<4x8x8x4xf32> to vector<256x4xf32>
    %c0_43 = arith.constant 0 : index
    %c0_44 = arith.constant 0 : index
    %c1_45 = arith.constant 1 : index
    %c0_46 = arith.constant 0 : index
    %27 = vector.load %arg9[%c0_43, %c0_44, %c1_45, %c0_46] : memref<6x10x10x4xf32, #tpu.memory_space<vmem>>, vector<4x8x8x4xf32>
    %28 = vector.shape_cast %27 : vector<4x8x8x4xf32> to vector<256x4xf32>
    %c0_47 = arith.constant 0 : index
    %c0_48 = arith.constant 0 : index
    %c2 = arith.constant 2 : index
    %c0_49 = arith.constant 0 : index
    %29 = vector.load %arg9[%c0_47, %c0_48, %c2, %c0_49] : memref<6x10x10x4xf32, #tpu.memory_space<vmem>>, vector<4x8x8x4xf32>
    %30 = vector.shape_cast %29 : vector<4x8x8x4xf32> to vector<256x4xf32>
    %c0_50 = arith.constant 0 : index
    %c1_51 = arith.constant 1 : index
    %c0_52 = arith.constant 0 : index
    %c0_53 = arith.constant 0 : index
    %31 = vector.load %arg9[%c0_50, %c1_51, %c0_52, %c0_53] : memref<6x10x10x4xf32, #tpu.memory_space<vmem>>, vector<4x8x8x4xf32>
    %32 = vector.shape_cast %31 : vector<4x8x8x4xf32> to vector<256x4xf32>
    %c0_54 = arith.constant 0 : index
    %c1_55 = arith.constant 1 : index
    %c1_56 = arith.constant 1 : index
    %c0_57 = arith.constant 0 : index
    %33 = vector.load %arg9[%c0_54, %c1_55, %c1_56, %c0_57] : memref<6x10x10x4xf32, #tpu.memory_space<vmem>>, vector<4x8x8x4xf32>
    %34 = vector.shape_cast %33 : vector<4x8x8x4xf32> to vector<256x4xf32>
    %c0_58 = arith.constant 0 : index
    %c1_59 = arith.constant 1 : index
    %c2_60 = arith.constant 2 : index
    %c0_61 = arith.constant 0 : index
    %35 = vector.load %arg9[%c0_58, %c1_59, %c2_60, %c0_61] : memref<6x10x10x4xf32, #tpu.memory_space<vmem>>, vector<4x8x8x4xf32>
    %36 = vector.shape_cast %35 : vector<4x8x8x4xf32> to vector<256x4xf32>
    %c0_62 = arith.constant 0 : index
    %c2_63 = arith.constant 2 : index
    %c0_64 = arith.constant 0 : index
    %c0_65 = arith.constant 0 : index
    %37 = vector.load %arg9[%c0_62, %c2_63, %c0_64, %c0_65] : memref<6x10x10x4xf32, #tpu.memory_space<vmem>>, vector<4x8x8x4xf32>
    %38 = vector.shape_cast %37 : vector<4x8x8x4xf32> to vector<256x4xf32>
    %c0_66 = arith.constant 0 : index
    %c2_67 = arith.constant 2 : index
    %c1_68 = arith.constant 1 : index
    %c0_69 = arith.constant 0 : index
    %39 = vector.load %arg9[%c0_66, %c2_67, %c1_68, %c0_69] : memref<6x10x10x4xf32, #tpu.memory_space<vmem>>, vector<4x8x8x4xf32>
    %40 = vector.shape_cast %39 : vector<4x8x8x4xf32> to vector<256x4xf32>
    %c0_70 = arith.constant 0 : index
    %c2_71 = arith.constant 2 : index
    %c2_72 = arith.constant 2 : index
    %c0_73 = arith.constant 0 : index
    %41 = vector.load %arg9[%c0_70, %c2_71, %c2_72, %c0_73] : memref<6x10x10x4xf32, #tpu.memory_space<vmem>>, vector<4x8x8x4xf32>
    %42 = vector.shape_cast %41 : vector<4x8x8x4xf32> to vector<256x4xf32>
    %c1_74 = arith.constant 1 : index
    %c0_75 = arith.constant 0 : index
    %c0_76 = arith.constant 0 : index
    %c0_77 = arith.constant 0 : index
    %43 = vector.load %arg9[%c1_74, %c0_75, %c0_76, %c0_77] : memref<6x10x10x4xf32, #tpu.memory_space<vmem>>, vector<4x8x8x4xf32>
    %44 = vector.shape_cast %43 : vector<4x8x8x4xf32> to vector<256x4xf32>
    %c1_78 = arith.constant 1 : index
    %c0_79 = arith.constant 0 : index
    %c1_80 = arith.constant 1 : index
    %c0_81 = arith.constant 0 : index
    %45 = vector.load %arg9[%c1_78, %c0_79, %c1_80, %c0_81] : memref<6x10x10x4xf32, #tpu.memory_space<vmem>>, vector<4x8x8x4xf32>
    %46 = vector.shape_cast %45 : vector<4x8x8x4xf32> to vector<256x4xf32>
    %c1_82 = arith.constant 1 : index
    %c0_83 = arith.constant 0 : index
    %c2_84 = arith.constant 2 : index
    %c0_85 = arith.constant 0 : index
    %47 = vector.load %arg9[%c1_82, %c0_83, %c2_84, %c0_85] : memref<6x10x10x4xf32, #tpu.memory_space<vmem>>, vector<4x8x8x4xf32>
    %48 = vector.shape_cast %47 : vector<4x8x8x4xf32> to vector<256x4xf32>
    %c1_86 = arith.constant 1 : index
    %c1_87 = arith.constant 1 : index
    %c0_88 = arith.constant 0 : index
    %c0_89 = arith.constant 0 : index
    %49 = vector.load %arg9[%c1_86, %c1_87, %c0_88, %c0_89] : memref<6x10x10x4xf32, #tpu.memory_space<vmem>>, vector<4x8x8x4xf32>
    %50 = vector.shape_cast %49 : vector<4x8x8x4xf32> to vector<256x4xf32>
    %c1_90 = arith.constant 1 : index
    %c1_91 = arith.constant 1 : index
    %c1_92 = arith.constant 1 : index
    %c0_93 = arith.constant 0 : index
    %51 = vector.load %arg9[%c1_90, %c1_91, %c1_92, %c0_93] : memref<6x10x10x4xf32, #tpu.memory_space<vmem>>, vector<4x8x8x4xf32>
    %52 = vector.shape_cast %51 : vector<4x8x8x4xf32> to vector<256x4xf32>
    %c1_94 = arith.constant 1 : index
    %c1_95 = arith.constant 1 : index
    %c2_96 = arith.constant 2 : index
    %c0_97 = arith.constant 0 : index
    %53 = vector.load %arg9[%c1_94, %c1_95, %c2_96, %c0_97] : memref<6x10x10x4xf32, #tpu.memory_space<vmem>>, vector<4x8x8x4xf32>
    %54 = vector.shape_cast %53 : vector<4x8x8x4xf32> to vector<256x4xf32>
    %c1_98 = arith.constant 1 : index
    %c2_99 = arith.constant 2 : index
    %c0_100 = arith.constant 0 : index
    %c0_101 = arith.constant 0 : index
    %55 = vector.load %arg9[%c1_98, %c2_99, %c0_100, %c0_101] : memref<6x10x10x4xf32, #tpu.memory_space<vmem>>, vector<4x8x8x4xf32>
    %56 = vector.shape_cast %55 : vector<4x8x8x4xf32> to vector<256x4xf32>
    %c1_102 = arith.constant 1 : index
    %c2_103 = arith.constant 2 : index
    %c1_104 = arith.constant 1 : index
    %c0_105 = arith.constant 0 : index
    %57 = vector.load %arg9[%c1_102, %c2_103, %c1_104, %c0_105] : memref<6x10x10x4xf32, #tpu.memory_space<vmem>>, vector<4x8x8x4xf32>
    %58 = vector.shape_cast %57 : vector<4x8x8x4xf32> to vector<256x4xf32>
    %c1_106 = arith.constant 1 : index
    %c2_107 = arith.constant 2 : index
    %c2_108 = arith.constant 2 : index
    %c0_109 = arith.constant 0 : index
    %59 = vector.load %arg9[%c1_106, %c2_107, %c2_108, %c0_109] : memref<6x10x10x4xf32, #tpu.memory_space<vmem>>, vector<4x8x8x4xf32>
    %60 = vector.shape_cast %59 : vector<4x8x8x4xf32> to vector<256x4xf32>
    %c2_110 = arith.constant 2 : index
    %c0_111 = arith.constant 0 : index
    %c0_112 = arith.constant 0 : index
    %c0_113 = arith.constant 0 : index
    %61 = vector.load %arg9[%c2_110, %c0_111, %c0_112, %c0_113] : memref<6x10x10x4xf32, #tpu.memory_space<vmem>>, vector<4x8x8x4xf32>
    %62 = vector.shape_cast %61 : vector<4x8x8x4xf32> to vector<256x4xf32>
    %c2_114 = arith.constant 2 : index
    %c0_115 = arith.constant 0 : index
    %c1_116 = arith.constant 1 : index
    %c0_117 = arith.constant 0 : index
    %63 = vector.load %arg9[%c2_114, %c0_115, %c1_116, %c0_117] : memref<6x10x10x4xf32, #tpu.memory_space<vmem>>, vector<4x8x8x4xf32>
    %64 = vector.shape_cast %63 : vector<4x8x8x4xf32> to vector<256x4xf32>
    %c2_118 = arith.constant 2 : index
    %c0_119 = arith.constant 0 : index
    %c2_120 = arith.constant 2 : index
    %c0_121 = arith.constant 0 : index
    %65 = vector.load %arg9[%c2_118, %c0_119, %c2_120, %c0_121] : memref<6x10x10x4xf32, #tpu.memory_space<vmem>>, vector<4x8x8x4xf32>
    %66 = vector.shape_cast %65 : vector<4x8x8x4xf32> to vector<256x4xf32>
    %c2_122 = arith.constant 2 : index
    %c1_123 = arith.constant 1 : index
    %c0_124 = arith.constant 0 : index
    %c0_125 = arith.constant 0 : index
    %67 = vector.load %arg9[%c2_122, %c1_123, %c0_124, %c0_125] : memref<6x10x10x4xf32, #tpu.memory_space<vmem>>, vector<4x8x8x4xf32>
    %68 = vector.shape_cast %67 : vector<4x8x8x4xf32> to vector<256x4xf32>
    %c2_126 = arith.constant 2 : index
    %c1_127 = arith.constant 1 : index
    %c1_128 = arith.constant 1 : index
    %c0_129 = arith.constant 0 : index
    %69 = vector.load %arg9[%c2_126, %c1_127, %c1_128, %c0_129] : memref<6x10x10x4xf32, #tpu.memory_space<vmem>>, vector<4x8x8x4xf32>
    %70 = vector.shape_cast %69 : vector<4x8x8x4xf32> to vector<256x4xf32>
    %c2_130 = arith.constant 2 : index
    %c1_131 = arith.constant 1 : index
    %c2_132 = arith.constant 2 : index
    %c0_133 = arith.constant 0 : index
    %71 = vector.load %arg9[%c2_130, %c1_131, %c2_132, %c0_133] : memref<6x10x10x4xf32, #tpu.memory_space<vmem>>, vector<4x8x8x4xf32>
    %72 = vector.shape_cast %71 : vector<4x8x8x4xf32> to vector<256x4xf32>
    %c2_134 = arith.constant 2 : index
    %c2_135 = arith.constant 2 : index
    %c0_136 = arith.constant 0 : index
    %c0_137 = arith.constant 0 : index
    %73 = vector.load %arg9[%c2_134, %c2_135, %c0_136, %c0_137] : memref<6x10x10x4xf32, #tpu.memory_space<vmem>>, vector<4x8x8x4xf32>
    %74 = vector.shape_cast %73 : vector<4x8x8x4xf32> to vector<256x4xf32>
    %c2_138 = arith.constant 2 : index
    %c2_139 = arith.constant 2 : index
    %c1_140 = arith.constant 1 : index
    %c0_141 = arith.constant 0 : index
    %75 = vector.load %arg9[%c2_138, %c2_139, %c1_140, %c0_141] : memref<6x10x10x4xf32, #tpu.memory_space<vmem>>, vector<4x8x8x4xf32>
    %76 = vector.shape_cast %75 : vector<4x8x8x4xf32> to vector<256x4xf32>
    %c2_142 = arith.constant 2 : index
    %c2_143 = arith.constant 2 : index
    %c2_144 = arith.constant 2 : index
    %c0_145 = arith.constant 0 : index
    %77 = vector.load %arg9[%c2_142, %c2_143, %c2_144, %c0_145] : memref<6x10x10x4xf32, #tpu.memory_space<vmem>>, vector<4x8x8x4xf32>
    %78 = vector.shape_cast %77 : vector<4x8x8x4xf32> to vector<256x4xf32>
    %79 = tpu.concatenate %26, %28, %30, %32, %34, %36, %38, %40, %42, %44, %46, %48, %50, %52, %54, %56 in 1 : vector<256x4xf32>, vector<256x4xf32>, vector<256x4xf32>, vector<256x4xf32>, vector<256x4xf32>, vector<256x4xf32>, vector<256x4xf32>, vector<256x4xf32>, vector<256x4xf32>, vector<256x4xf32>, vector<256x4xf32>, vector<256x4xf32>, vector<256x4xf32>, vector<256x4xf32>, vector<256x4xf32>, vector<256x4xf32> -> vector<256x64xf32>
    %80 = tpu.concatenate %58, %60, %62, %64, %66, %68, %70, %72, %74, %76, %78 in 1 : vector<256x4xf32>, vector<256x4xf32>, vector<256x4xf32>, vector<256x4xf32>, vector<256x4xf32>, vector<256x4xf32>, vector<256x4xf32>, vector<256x4xf32>, vector<256x4xf32>, vector<256x4xf32>, vector<256x4xf32> -> vector<256x44xf32>
    %81 = tpu.concatenate %79, %80 in 1 : vector<256x64xf32>, vector<256x44xf32> -> vector<256x108xf32>
    %82 = arith.truncf %81 : vector<256x108xf32> to vector<256x108xbf16>
    %c0_146 = arith.constant 0 : index
    %c0_147 = arith.constant 0 : index
    %83 = vector.load %arg4[%c0_146, %c0_147] : memref<108x4xbf16, #tpu.memory_space<vmem>>, vector<108x4xbf16>
    %cst_148 = arith.constant dense<0.000000e+00> : vector<256x4xf32>
    %84 = tpu.matmul %82, %83, %cst_148 {dimension_numbers = #tpu.dot_dimension_numbers<[1], [0], [0], [1], [0, 0, 1, 1], [], []>} : vector<256x108xbf16>, vector<108x4xbf16>, vector<256x4xf32> -> vector<256x4xf32>
    %c0_149 = arith.constant 0 : index
    %c0_150 = arith.constant 0 : index
    %85 = vector.load %arg5[%c0_149, %c0_150] : memref<1x4xf32, #tpu.memory_space<vmem>>, vector<1x4xf32>
    %86 = vector.broadcast %85 : vector<1x4xf32> to vector<256x4xf32>
    %87 = arith.addf %84, %86 : vector<256x4xf32>
    %cst_151 = arith.constant 0.000000e+00 : f32
    %88 = vector.broadcast %cst_151 : f32 to vector<256x4xf32>
    %89 = arith.maximumf %87, %88 : vector<256x4xf32>
    %90 = arith.truncf %89 : vector<256x4xf32> to vector<256x4xbf16>
    %c0_152 = arith.constant 0 : index
    %c0_153 = arith.constant 0 : index
    %91 = vector.load %arg6[%c0_152, %c0_153] : memref<4x128xbf16, #tpu.memory_space<vmem>>, vector<4x128xbf16>
    %cst_154 = arith.constant dense<0.000000e+00> : vector<256x128xf32>
    %92 = tpu.matmul %90, %91, %cst_154 {dimension_numbers = #tpu.dot_dimension_numbers<[1], [0], [0], [1], [0, 0, 1, 1], [], []>} : vector<256x4xbf16>, vector<4x128xbf16>, vector<256x128xf32> -> vector<256x128xf32>
    %c0_155 = arith.constant 0 : index
    %c0_156 = arith.constant 0 : index
    %93 = vector.load %arg7[%c0_155, %c0_156] : memref<1x128xf32, #tpu.memory_space<vmem>>, vector<1x128xf32>
    %94 = vector.broadcast %93 : vector<1x128xf32> to vector<256x128xf32>
    %95 = arith.addf %92, %94 : vector<256x128xf32>
    %96 = arith.addf %95, %2 : vector<256x128xf32>
    %cst_157 = arith.constant 0.000000e+00 : f32
    %97 = vector.broadcast %cst_157 : f32 to vector<256x128xf32>
    %98 = arith.maximumf %96, %97 : vector<256x128xf32>
    %99 = vector.shape_cast %98 : vector<256x128xf32> to vector<4x64x128xf32>
    %c0_158 = arith.constant 0 : index
    %c0_159 = arith.constant 0 : index
    %c0_160 = arith.constant 0 : index
    %c0_161 = arith.constant 0 : index
    %100 = vector.load %arg8[%c0_158, %c0_159, %c0_160, %c0_161] : memref<1x4x64x128xf32, #tpu.memory_space<vmem>>, vector<1x4x64x128xf32>
    %101 = vector.shape_cast %100 : vector<1x4x64x128xf32> to vector<4x64x128xf32>
    %102 = vector.shape_cast %99 : vector<4x64x128xf32> to vector<1x4x64x128xf32>
    tpu.vector_store %arg8[%c0_158, %c0_159, %c0_160, %c0_161], %102 {strides = array<i32>} : memref<1x4x64x128xf32, #tpu.memory_space<vmem>>, vector<1x4x64x128xf32>,
    return
  }
  func.func @transform_0(%arg0: i32) -> (i32, i32, i32, i32) {
    %c0_i32 = arith.constant 0 : i32
    %c0_i32_0 = arith.constant 0 : i32
    %c0_i32_1 = arith.constant 0 : i32
    %c0_i32_2 = arith.constant 0 : i32
    return %arg0, %c0_i32, %c0_i32_0, %c0_i32_1 : i32, i32, i32, i32
  }
  func.func @transform_1(%arg0: i32) -> (i32, i32) {
    %c0_i32 = arith.constant 0 : i32
    %c0_i32_0 = arith.constant 0 : i32
    %c0_i32_1 = arith.constant 0 : i32
    return %c0_i32, %c0_i32_0 : i32, i32
  }
  func.func @transform_2(%arg0: i32) -> (i32, i32) {
    %c0_i32 = arith.constant 0 : i32
    %c0_i32_0 = arith.constant 0 : i32
    %c0_i32_1 = arith.constant 0 : i32
    return %c0_i32, %c0_i32_0 : i32, i32
  }
  func.func @transform_3(%arg0: i32) -> (i32, i32) {
    %c0_i32 = arith.constant 0 : i32
    %c0_i32_0 = arith.constant 0 : i32
    %c0_i32_1 = arith.constant 0 : i32
    return %c0_i32, %c0_i32_0 : i32, i32
  }
  func.func @transform_4(%arg0: i32) -> (i32, i32) {
    %c0_i32 = arith.constant 0 : i32
    %c0_i32_0 = arith.constant 0 : i32
    %c0_i32_1 = arith.constant 0 : i32
    return %c0_i32, %c0_i32_0 : i32, i32
  }
  func.func @transform_5(%arg0: i32) -> (i32, i32) {
    %c0_i32 = arith.constant 0 : i32
    %c0_i32_0 = arith.constant 0 : i32
    %c0_i32_1 = arith.constant 0 : i32
    return %c0_i32, %c0_i32_0 : i32, i32
  }
  func.func @transform_6(%arg0: i32) -> (i32, i32) {
    %c0_i32 = arith.constant 0 : i32
    %c0_i32_0 = arith.constant 0 : i32
    %c0_i32_1 = arith.constant 0 : i32
    return %c0_i32, %c0_i32_0 : i32, i32
  }
  func.func @transform_7(%arg0: i32) -> (i32, i32, i32, i32) {
    %c0_i32 = arith.constant 0 : i32
    %c0_i32_0 = arith.constant 0 : i32
    %c0_i32_1 = arith.constant 0 : i32
    %c0_i32_2 = arith.constant 0 : i32
    return %arg0, %c0_i32, %c0_i32_0, %c0_i32_1 : i32, i32, i32, i32
  }
}

</mosaic_0001>

<llo_original>
// kernel: tpu_custom_call.1
$region0: #{tpu_custom_call.1}
  #allocation0 [shape = 'u32[]', space=smem, size = 0x4, offset = 0x4, fixed_abs, tag = 'smem constant byte address 0x4 - core index']
  #allocation1 [shape = 'u32[144,128]{1,0:T(1,128)}', space=vmem, size = 0x12000, scoped, tag = 'internal scratch']
  #allocation2 [shape = 'f32[6,10,10,4]{3,2,1,0:T(8,128)}', space=vmem, size = 0x78000, scoped, tag = 'scratch operand']
  %s0 = inlined_call_operand.hbm [shape: f32[2,4,64,128], index: 0, kind: input, shape index: {}]
  %s1 = inlined_call_operand.vmem [shape: bf16[128,4], index: 1, kind: input, shape index: {}]
  %s2 = inlined_call_operand.vmem [shape: f32[1,4], index: 2, kind: input, shape index: {}]
  %s3 = inlined_call_operand.vmem [shape: bf16[108,4], index: 3, kind: input, shape index: {}]
  %s4 = inlined_call_operand.vmem [shape: f32[1,4], index: 4, kind: input, shape index: {}]
  %s5 = inlined_call_operand.vmem [shape: bf16[4,128], index: 5, kind: input, shape index: {}]
  %s6 = inlined_call_operand.vmem [shape: f32[1,128], index: 6, kind: input, shape index: {}]
  %s7 = inlined_call_operand.hbm [shape: f32[2,4,64,128], index: 7, kind: output, shape index: {}]
  %s8 = sld [smem:[#allocation0]]
  $region65: #{tpu_custom_call.1} parent=0
    _
  %s10 = ssub.s32 1, %s8
  %s11 = scalar_select 0, %s10, %s8
  $region1: #{tpu_custom_call.1} parent=0
    #allocation3 [shape = 'u8[262144]{0}', space=vmem, size = 0x40000, scoped, tag = 'input window, operand 0']
    #allocation4 [shape = 's32[2]{0}', space=sflag, size = 0x8, scoped, tag = 'scoped memory for tpu_custom_call.1']
    #allocation5 [shape = 's32[2]{0}', space=sflag, size = 0x8, scoped, tag = 'scoped memory for tpu_custom_call.1']
    #allocation6 [shape = 'u8[262144]{0}', space=vmem, size = 0x40000, scoped, tag = 'output window, operand 0']
    %12 = vsyncpa [#allocation4], 0
    %s13 = scalar_lea.sflag [#allocation4], 1
    %14 = vsyncpa %s13, 0
    %15 = vsyncpa [#allocation5], 0
    %s16 = scalar_lea.sflag [#allocation5], 1
    %17 = vsyncpa %s16, 0
    loop: start=0, step=1, limit=4
    $region2: #{tpu_custom_call.1} parent=1 // loop_pre_header
      _
    $region3: #{tpu_custom_call.1} parent=1 // loop_header
      %s19 = sphi 0, %s23
      %p20 = scmp.ge.s32.totalorder %s19, 4
      %s29 = sphi 0, %s31
      %s32 = sphi 0, %s29
      %s33 = sphi 0, %s32
      %s49 = sphi 0, %s33
      %s53 = sphi 0, %s53
      %s55 = sphi 0, %s53
      %s56 = sphi 0, %s55
      %s70 = sphi 0, %s56
      %s74 = sphi 0, %s74
      %s76 = sphi 0, %s74
      %s77 = sphi 0, %s76
      %s91 = sphi 0, %s77
      %s95 = sphi 0, %s95
      %s97 = sphi 0, %s95
      %s98 = sphi 0, %s97
      %s112 = sphi 0, %s98
      %s116 = sphi 0, %s116
      %s118 = sphi 0, %s116
      %s119 = sphi 0, %s118
      %s133 = sphi 0, %s119
      %s137 = sphi 0, %s137
      %s139 = sphi 0, %s137
      %s140 = sphi 0, %s139
      %s154 = sphi 0, %s140
      %s158 = sphi 0, %s158
      %s160 = sphi 0, %s158
      %s161 = sphi 0, %s160
      %s175 = sphi 0, %s161
      %s181 = sphi 0, %s183
      %s184 = sphi 0, %s181
      %s185 = sphi 0, %s184
      %s201 = sphi 0, %s185
    $region4: #{tpu_custom_call.1} parent=1 // loop_header_branch
      %22 = sbr.rel (%p20) target = $region8
    $region5: #{tpu_custom_call.1} parent=1 // loop_body
      %s24 = ssub.s32 %s19, 1
      %s25 = ssub.s32 %s19, 2
      %s26 = sadd.s32 %s19, 1
      %s27 = ssub.s32 %s19, %s26
      %p28 = scmp.eq.s32.totalorder %s27, 0
      %s30 = sadd.s32 %s29, 1
      %s31 = scalar_select %p28, %s29, %s30
      %p34 = pneg %p28
      %p35 = scmp.eq.s32.totalorder %s19, 1
      %p36 = por %p34, %p35
      %p37 = scmp.ne.s32.totalorder %s29, %s32
      %p38 = scmp.eq.s32.totalorder %s19, 0
      %p39 = por %p37, %p38
      %p40 = scmp.ne.s32.totalorder %s29, %s32
      %p41 = scmp.eq.s32.totalorder %s24, 1
      %p42 = por %p40, %p41
      %p43 = scmp.ne.s32.totalorder %s32, %s33
      %p44 = scmp.eq.s32.totalorder %s24, 0
      %p45 = por %p43, %p44
      %p46 = scmp.ne.s32.totalorder %s32, %s33
      %p47 = scmp.eq.s32.totalorder %s25, 1
      %p48 = por %p46, %p47
      %p50 = scmp.ne.s32.totalorder %s33, %s49
      %p51 = scmp.eq.s32.totalorder %s25, 0
      %p52 = por %p50, %p51
      %s54 = sadd.s32 %s53, 1
      %p57 = scmp.eq.s32.totalorder %s19, 1
      %p58 = scmp.ne.s32.totalorder %s53, %s55
      %p59 = scmp.eq.s32.totalorder %s19, 0
      %p60 = por %p58, %p59
      %p61 = scmp.ne.s32.totalorder %s53, %s55
      %p62 = scmp.eq.s32.totalorder %s24, 1
      %p63 = por %p61, %p62
      %p64 = scmp.ne.s32.totalorder %s55, %s56
      %p65 = scmp.eq.s32.totalorder %s24, 0
      %p66 = por %p64, %p65
      %p67 = scmp.ne.s32.totalorder %s55, %s56
      %p68 = scmp.eq.s32.totalorder %s25, 1
      %p69 = por %p67, %p68
      %p71 = scmp.ne.s32.totalorder %s56, %s70
      %p72 = scmp.eq.s32.totalorder %s25, 0
      %p73 = por %p71, %p72
      %s75 = sadd.s32 %s74, 1
      %p78 = scmp.eq.s32.totalorder %s19, 1
      %p79 = scmp.ne.s32.totalorder %s74, %s76
      %p80 = scmp.eq.s32.totalorder %s19, 0
      %p81 = por %p79, %p80
      %p82 = scmp.ne.s32.totalorder %s74, %s76
      %p83 = scmp.eq.s32.totalorder %s24, 1
      %p84 = por %p82, %p83
      %p85 = scmp.ne.s32.totalorder %s76, %s77
      %p86 = scmp.eq.s32.totalorder %s24, 0
      %p87 = por %p85, %p86
      %p88 = scmp.ne.s32.totalorder %s76, %s77
      %p89 = scmp.eq.s32.totalorder %s25, 1
      %p90 = por %p88, %p89
      %p92 = scmp.ne.s32.totalorder %s77, %s91
      %p93 = scmp.eq.s32.totalorder %s25, 0
      %p94 = por %p92, %p93
      %s96 = sadd.s32 %s95, 1
      %p99 = scmp.eq.s32.totalorder %s19, 1
      %p100 = scmp.ne.s32.totalorder %s95, %s97
      %p101 = scmp.eq.s32.totalorder %s19, 0
      %p102 = por %p100, %p101
      %p103 = scmp.ne.s32.totalorder %s95, %s97
      %p104 = scmp.eq.s32.totalorder %s24, 1
      %p105 = por %p103, %p104
      %p106 = scmp.ne.s32.totalorder %s97, %s98
      %p107 = scmp.eq.s32.totalorder %s24, 0
      %p108 = por %p106, %p107
      %p109 = scmp.ne.s32.totalorder %s97, %s98
      %p110 = scmp.eq.s32.totalorder %s25, 1
      %p111 = por %p109, %p110
      %p113 = scmp.ne.s32.totalorder %s98, %s112
      %p114 = scmp.eq.s32.totalorder %s25, 0
      %p115 = por %p113, %p114
      %s117 = sadd.s32 %s116, 1
      %p120 = scmp.eq.s32.totalorder %s19, 1
      %p121 = scmp.ne.s32.totalorder %s116, %s118
      %p122 = scmp.eq.s32.totalorder %s19, 0
      %p123 = por %p121, %p122
      %p124 = scmp.ne.s32.totalorder %s116, %s118
      %p125 = scmp.eq.s32.totalorder %s24, 1
      %p126 = por %p124, %p125
      %p127 = scmp.ne.s32.totalorder %s118, %s119
      %p128 = scmp.eq.s32.totalorder %s24, 0
      %p129 = por %p127, %p128
      %p130 = scmp.ne.s32.totalorder %s118, %s119
      %p131 = scmp.eq.s32.totalorder %s25, 1
      %p132 = por %p130, %p131
      %p134 = scmp.ne.s32.totalorder %s119, %s133
      %p135 = scmp.eq.s32.totalorder %s25, 0
      %p136 = por %p134, %p135
      %s138 = sadd.s32 %s137, 1
      %p141 = scmp.eq.s32.totalorder %s19, 1
      %p142 = scmp.ne.s32.totalorder %s137, %s139
      %p143 = scmp.eq.s32.totalorder %s19, 0
      %p144 = por %p142, %p143
      %p145 = scmp.ne.s32.totalorder %s137, %s139
      %p146 = scmp.eq.s32.totalorder %s24, 1
      %p147 = por %p145, %p146
      %p148 = scmp.ne.s32.totalorder %s139, %s140
      %p149 = scmp.eq.s32.totalorder %s24, 0
      %p150 = por %p148, %p149
      %p151 = scmp.ne.s32.totalorder %s139, %s140
      %p152 = scmp.eq.s32.totalorder %s25, 1
      %p153 = por %p151, %p152
      %p155 = scmp.ne.s32.totalorder %s140, %s154
      %p156 = scmp.eq.s32.totalorder %s25, 0
      %p157 = por %p155, %p156
      %s159 = sadd.s32 %s158, 1
      %p162 = scmp.eq.s32.totalorder %s19, 1
      %p163 = scmp.ne.s32.totalorder %s158, %s160
      %p164 = scmp.eq.s32.totalorder %s19, 0
      %p165 = por %p163, %p164
      %p166 = scmp.ne.s32.totalorder %s158, %s160
      %p167 = scmp.eq.s32.totalorder %s24, 1
      %p168 = por %p166, %p167
      %p169 = scmp.ne.s32.totalorder %s160, %s161
      %p170 = scmp.eq.s32.totalorder %s24, 0
      %p171 = por %p169, %p170
      %p172 = scmp.ne.s32.totalorder %s160, %s161
      %p173 = scmp.eq.s32.totalorder %s25, 1
      %p174 = por %p172, %p173
      %p176 = scmp.ne.s32.totalorder %s161, %s175
      %p177 = scmp.eq.s32.totalorder %s25, 0
      %p178 = por %p176, %p177
      %s179 = ssub.s32 %s19, %s26
      %p180 = scmp.eq.s32.totalorder %s179, 0
      %s182 = sadd.s32 %s181, 1
      %s183 = scalar_select %p180, %s181, %s182
      %p186 = pneg %p180
      %p187 = scmp.eq.s32.totalorder %s19, 1
      %p188 = por %p186, %p187
      %p189 = scmp.ne.s32.totalorder %s181, %s184
      %p190 = scmp.eq.s32.totalorder %s19, 0
      %p191 = por %p189, %p190
      %p192 = scmp.ne.s32.totalorder %s181, %s184
      %p193 = scmp.eq.s32.totalorder %s24, 1
      %p194 = por %p192, %p193
      %p195 = scmp.ne.s32.totalorder %s184, %s185
      %p196 = scmp.eq.s32.totalorder %s24, 0
      %p197 = por %p195, %p196
      %p198 = scmp.ne.s32.totalorder %s184, %s185
      %p199 = scmp.eq.s32.totalorder %s25, 1
      %p200 = por %p198, %p199
      %p202 = scmp.ne.s32.totalorder %s185, %s201
      %p203 = scmp.eq.s32.totalorder %s25, 0
      %p204 = por %p202, %p203
      %p205 = scmp.le.s32.totalorder 1, %s19
      %p206 = scmp.lt.s32.totalorder %s19, 3
      %p207 = pnand %p205, %p206
      %p208 = pneg %p207
      // Predicated region
      $region9: #{tpu_custom_call.1} parent=5 // pred_check
        _
      $region10: #{tpu_custom_call.1} parent=5 // pred_check_branch
        %210 = sbr.rel (%p207) target = $region12
      $region11: #{tpu_custom_call.1} parent=5 // pred_region
        %s211 = ssub.s32 %s19, 1
        // Predicated region
        $region13: #{tpu_custom_call.1} parent=11 // pred_check
          %p212 = pneg %p66
        $region14: #{tpu_custom_call.1} parent=11 // pred_check_branch
          %214 = sbr.rel (%p212) target = $region16
        $region15: #{tpu_custom_call.1} parent=11 // pred_region
          _
        $region16: #{tpu_custom_call.1} parent=11 // pred_fallthru
          _
        // Predicated region
        $region17: #{tpu_custom_call.1} parent=11 // pred_check
          %p215 = pneg %p87
        $region18: #{tpu_custom_call.1} parent=11 // pred_check_branch
          %217 = sbr.rel (%p215) target = $region20
        $region19: #{tpu_custom_call.1} parent=11 // pred_region
          _
        $region20: #{tpu_custom_call.1} parent=11 // pred_fallthru
          _
        // Predicated region
        $region21: #{tpu_custom_call.1} parent=11 // pred_check
          %p218 = pneg %p108
        $region22: #{tpu_custom_call.1} parent=11 // pred_check_branch
          %220 = sbr.rel (%p218) target = $region24
        $region23: #{tpu_custom_call.1} parent=11 // pred_region
          _
        $region24: #{tpu_custom_call.1} parent=11 // pred_fallthru
          _
        // Predicated region
        $region25: #{tpu_custom_call.1} parent=11 // pred_check
          %p221 = pneg %p129
        $region26: #{tpu_custom_call.1} parent=11 // pred_check_branch
          %223 = sbr.rel (%p221) target = $region28
        $region27: #{tpu_custom_call.1} parent=11 // pred_region
          _
        $region28: #{tpu_custom_call.1} parent=11 // pred_fallthru
          _
        // Predicated region
        $region29: #{tpu_custom_call.1} parent=11 // pred_check
          %p224 = pneg %p150
        $region30: #{tpu_custom_call.1} parent=11 // pred_check_branch
          %226 = sbr.rel (%p224) target = $region32
        $region31: #{tpu_custom_call.1} parent=11 // pred_region
          _
        $region32: #{tpu_custom_call.1} parent=11 // pred_fallthru
          _
        // Predicated region
        $region33: #{tpu_custom_call.1} parent=11 // pred_check
          %p227 = pneg %p171
        $region34: #{tpu_custom_call.1} parent=11 // pred_check_branch
          %229 = sbr.rel (%p227) target = $region36
        $region35: #{tpu_custom_call.1} parent=11 // pred_region
          _
        $region36: #{tpu_custom_call.1} parent=11 // pred_fallthru
          _
      $region12: #{tpu_custom_call.1} parent=5 // pred_fallthru
        _
      %p230 = scmp.lt.s32.totalorder %s19, 2
      // Predicated region
      $region37: #{tpu_custom_call.1} parent=5 // pred_check
        %p231 = pneg %p230
      $region38: #{tpu_custom_call.1} parent=5 // pred_check_branch
        %233 = sbr.rel (%p231) target = $region40
      $region39: #{tpu_custom_call.1} parent=5 // pred_region
        // Predicated region
        $region41: #{tpu_custom_call.1} parent=39 // pred_check
          %p234 = pneg %p39
        $region42: #{tpu_custom_call.1} parent=39 // pred_check_branch
          %236 = sbr.rel (%p234) target = $region44
        $region43: #{tpu_custom_call.1} parent=39 // pred_region
          %s237 = sand.u32 %s29, 1
          %s238 = scalar_lea.sflag [#allocation4], %s237
          %s239 = sand.u32 %s29, 1
          %s240 = smul.addr %s239, 256
          %s241 = scalar_lea.vmem [#allocation3], %s240
          %s243 = ssub.s32 4096, 4096
          %244 = vsyncadd %s238, %s243
          %s245 = smul.addr %s19, 32
          %s246 = smul.addr %s245, 128
          %s247 = scalar_lea.hbm %s0, %s246
          %s248 = sshll.u32 %s241, 4
          %s249 = int_to_ptr.vmem [resolvable:$true] %s248
          %254 = dma.hbm_to_vmem [thread:$0]  %s247, 4096, %s249, %s238, 128, 128, 8
        $region44: #{tpu_custom_call.1} parent=39 // pred_fallthru
          _
      $region40: #{tpu_custom_call.1} parent=5 // pred_fallthru
        _
      %p255 = scmp.le.s32.totalorder 1, %s19
      %p256 = scmp.lt.s32.totalorder %s19, 3
      %p257 = pnand %p255, %p256
      %p258 = pneg %p257
      // Predicated region
      $region45: #{tpu_custom_call.1} parent=5 // pred_check
        _
      $region46: #{tpu_custom_call.1} parent=5 // pred_check_branch
        %260 = sbr.rel (%p257) target = $region48
      $region47: #{tpu_custom_call.1} parent=5 // pred_region
        %s261 = ssub.s32 %s19, 1
        %s262 = sand.u32 %s32, 1
        %s263 = scalar_lea.sflag [#allocation4], %s262
        %s264 = sand.u32 %s32, 1
        %s265 = smul.addr %s264, 256
        %s266 = scalar_lea.vmem [#allocation3], %s265
        // Predicated region
        $region49: #{tpu_custom_call.1} parent=47 // pred_check
          %p267 = pneg %p45
        $region50: #{tpu_custom_call.1} parent=47 // pred_check_branch
          %269 = sbr.rel (%p267) target = $region52
        $region51: #{tpu_custom_call.1} parent=47 // pred_region
          %270 = dma.done %s263, 4096
        $region52: #{tpu_custom_call.1} parent=47 // pred_fallthru
          _
        %s271 = sand.u32 %s32, 1
        %s272 = scalar_lea.sflag [#allocation4], %s271
        %s273 = sand.u32 %s32, 1
        %s274 = smul.addr %s273, 256
        %s275 = scalar_lea.vmem [#allocation3], %s274
        %p276 = pneg %p45
        %p277 = pneg %p42
        %p278 = pneg %p66
        %p279 = pneg %p63
        %p280 = pneg %p87
        %p281 = pneg %p84
        %p282 = pneg %p108
        %p283 = pneg %p105
        %p284 = pneg %p129
        %p285 = pneg %p126
        %p286 = pneg %p150
        %p287 = pneg %p147
        %p288 = pneg %p171
        %p289 = pneg %p168
        %p290 = pneg %p197
        %p291 = pneg %p194
        %s292 = sand.u32 %s184, 1
        %s293 = scalar_lea.sflag [#allocation5], %s292
        %s294 = sand.u32 %s184, 1
        %s295 = smul.addr %s294, 256
        %s296 = scalar_lea.vmem [#allocation6], %s295
        %v298 = vld [vmem:[%s266] sm:$0xff]
        %v299 = vld [vmem:[%s266 + $0x8] sm:$0xff]
        %v300 = vld [vmem:[%s266 + $0x10] sm:$0xff]
        %v301 = vld [vmem:[%s266 + $0x18] sm:$0xff]
        %v302 = vld [vmem:[%s266 + $0x20] sm:$0xff]
        %v303 = vld [vmem:[%s266 + $0x28] sm:$0xff]
        %v304 = vld [vmem:[%s266 + $0x30] sm:$0xff]
        %v305 = vld [vmem:[%s266 + $0x38] sm:$0xff]
        %v306 = vld [vmem:[%s266 + $0x40] sm:$0xff]
        %v307 = vld [vmem:[%s266 + $0x48] sm:$0xff]
        %v308 = vld [vmem:[%s266 + $0x50] sm:$0xff]
        %v309 = vld [vmem:[%s266 + $0x58] sm:$0xff]
        %v310 = vld [vmem:[%s266 + $0x60] sm:$0xff]
        %v311 = vld [vmem:[%s266 + $0x68] sm:$0xff]
        %v312 = vld [vmem:[%s266 + $0x70] sm:$0xff]
        %v313 = vld [vmem:[%s266 + $0x78] sm:$0xff]
        %v314 = vld [vmem:[%s266 + $0x80] sm:$0xff]
        %v315 = vld [vmem:[%s266 + $0x88] sm:$0xff]
        %v316 = vld [vmem:[%s266 + $0x90] sm:$0xff]
        %v317 = vld [vmem:[%s266 + $0x98] sm:$0xff]
        %v318 = vld [vmem:[%s266 + $0xa0] sm:$0xff]
        %v319 = vld [vmem:[%s266 + $0xa8] sm:$0xff]
        %v320 = vld [vmem:[%s266 + $0xb0] sm:$0xff]
        %v321 = vld [vmem:[%s266 + $0xb8] sm:$0xff]
        %v322 = vld [vmem:[%s266 + $0xc0] sm:$0xff]
        %v323 = vld [vmem:[%s266 + $0xc8] sm:$0xff]
        %v324 = vld [vmem:[%s266 + $0xd0] sm:$0xff]
        %v325 = vld [vmem:[%s266 + $0xd8] sm:$0xff]
        %v326 = vld [vmem:[%s266 + $0xe0] sm:$0xff]
        %v327 = vld [vmem:[%s266 + $0xe8] sm:$0xff]
        %v328 = vld [vmem:[%s266 + $0xf0] sm:$0xff]
        %v329 = vld [vmem:[%s266 + $0xf8] sm:$0xff]
        %v330 = vpack.c.bf16 %v299, %v298
        %v331 = vpack.c.bf16 %v301, %v300
        %v332 = vpack.c.bf16 %v303, %v302
        %v333 = vpack.c.bf16 %v305, %v304
        %v334 = vpack.c.bf16 %v307, %v306
        %v335 = vpack.c.bf16 %v309, %v308
        %v336 = vpack.c.bf16 %v311, %v310
        %v337 = vpack.c.bf16 %v313, %v312
        %v338 = vpack.c.bf16 %v315, %v314
        %v339 = vpack.c.bf16 %v317, %v316
        %v340 = vpack.c.bf16 %v319, %v318
        %v341 = vpack.c.bf16 %v321, %v320
        %v342 = vpack.c.bf16 %v323, %v322
        %v343 = vpack.c.bf16 %v325, %v324
        %v344 = vpack.c.bf16 %v327, %v326
        %v345 = vpack.c.bf16 %v329, %v328
        %v346 = vld [vmem:[%s1] sm:$0xf]
        %v347 = vld [vmem:[%s1 + $0x4] sm:$0xf]
        %v348 = vld [vmem:[%s1 + $0x8] sm:$0xf]
        %v349 = vld [vmem:[%s1 + $0xc] sm:$0xf]
        %v350 = vld [vmem:[%s1 + $0x10] sm:$0xf]
        %v351 = vld [vmem:[%s1 + $0x14] sm:$0xf]
        %v352 = vld [vmem:[%s1 + $0x18] sm:$0xf]
        %v353 = vld [vmem:[%s1 + $0x1c] sm:$0xf]
        %v354 = vld [vmem:[%s1 + $0x20] sm:$0xf]
        %v355 = vld [vmem:[%s1 + $0x24] sm:$0xf]
        %v356 = vld [vmem:[%s1 + $0x28] sm:$0xf]
        %v357 = vld [vmem:[%s1 + $0x2c] sm:$0xf]
        %v358 = vld [vmem:[%s1 + $0x30] sm:$0xf]
        %v359 = vld [vmem:[%s1 + $0x34] sm:$0xf]
        %v360 = vld [vmem:[%s1 + $0x38] sm:$0xf]
        %v361 = vld [vmem:[%s1 + $0x3c] sm:$0xf]
        %v362 = vld [vmem:[%s2] sm:$0x1]
        %v364 = vlaneseq
        %v365 = vshrl.u32 %v364, 7
        %v366 = vsub.s32 0, %v365
        %v367 = vrot.slane %v362, %v366
        %v385 = vunpack.c.l.b16 %v346
        %v386 = vunpack.c.l.b16 %v347
        %v387 = vunpack.c.l.b16 %v348
        %v388 = vunpack.c.l.b16 %v349
        %v389 = vunpack.c.l.b16 %v350
        %v390 = vunpack.c.l.b16 %v351
        %v391 = vunpack.c.l.b16 %v352
        %v392 = vunpack.c.l.b16 %v353
        %v393 = vunpack.c.l.b16 %v354
        %v394 = vunpack.c.l.b16 %v355
        %v395 = vunpack.c.l.b16 %v356
        %v396 = vunpack.c.l.b16 %v357
        %v397 = vunpack.c.l.b16 %v358
        %v398 = vunpack.c.l.b16 %v359
        %v399 = vunpack.c.l.b16 %v360
        %v400 = vunpack.c.l.b16 %v361
        %v401 = vpack.c.b16 %v386, %v385
        %v402 = vpack.c.b16 %v388, %v387
        %v403 = vpack.c.b16 %v390, %v389
        %v404 = vpack.c.b16 %v392, %v391
        %v405 = vpack.c.b16 %v394, %v393
        %v406 = vpack.c.b16 %v396, %v395
        %v407 = vpack.c.b16 %v398, %v397
        %v408 = vpack.c.b16 %v400, %v399
        %417 = vmatprep.subr.bf16.mxu0 0
        %418 = vmatpush1.bf16.msra.mxu0 %v401
        %419 = vmatprep.subr.bf16.mxu0 0
        %420 = vmatpush1.bf16.msra.mxu0 %v402
        %421 = vmatprep.subr.bf16.mxu0 0
        %422 = vmatpush1.bf16.msra.mxu0 %v403
        %423 = vmatprep.subr.bf16.mxu0 0
        %424 = vmatpush1.bf16.msra.mxu0 %v404
        %425 = vmatprep.subr.bf16.mxu0 0
        %426 = vmatpush1.bf16.msra.mxu0 %v405
        %427 = vmatprep.subr.bf16.mxu0 0
        %428 = vmatpush1.bf16.msra.mxu0 %v406
        %429 = vmatprep.subr.bf16.mxu0 0
        %430 = vmatpush1.bf16.msra.mxu0 %v407
        %431 = vmatprep.subr.bf16.mxu0 0
        %432 = vmatpush1.bf16.msra.mxu0 %v408
        %433 = vmatprep.subr.bf16.mxu0 0
        %434 = vmatpush1.bf16.msra.mxu0 0
        %435 = vmatprep.subr.bf16.mxu0 0
        %436 = vmatpush1.bf16.msra.mxu0 0
        %437 = vmatprep.subr.bf16.mxu0 0
        %438 = vmatpush1.bf16.msra.mxu0 0
        %439 = vmatprep.subr.bf16.mxu0 0
        %440 = vmatpush1.bf16.msra.mxu0 0
        %441 = vmatprep.subr.bf16.mxu0 0
        %442 = vmatpush1.bf16.msra.mxu0 0
        %443 = vmatprep.subr.bf16.mxu0 0
        %444 = vmatpush1.bf16.msra.mxu0 0
        %445 = vmatprep.subr.bf16.mxu0 0
        %446 = vmatpush1.bf16.msra.mxu0 0
        %447 = vmatprep.subr.bf16.mxu0 0
        %448 = vmatpush1.bf16.msra.mxu0 0
        %449 = vmatprep.mubr.bf16.mxu0 0
        %450 = vmatmul.mubr.bf16.gmra.mrb[0].mxu0 %v330
        %v451 = vpop.f32.mrb[0].mxu0
        %v452 = vadd.f32 %v367, %v451
        %v453 = vpop.f32.mrb[0].mxu0
        %v454 = vpop.f32.mrb[0].mxu0
        %v455 = vadd.f32 %v367, %v454
        %v456 = vpop.f32.mrb[0].mxu0
        %457 = vmatprep.mubr.bf16.mxu0 0
        %458 = vmatmul.mubr.bf16.gmra.mrb[0].mxu0 %v331
        %v459 = vpop.f32.mrb[0].mxu0
        %v460 = vadd.f32 %v367, %v459
        %v461 = vpop.f32.mrb[0].mxu0
        %v462 = vpop.f32.mrb[0].mxu0
        %v463 = vadd.f32 %v367, %v462
        %v464 = vpop.f32.mrb[0].mxu0
        %465 = vmatprep.mubr.bf16.mxu0 0
        %466 = vmatmul.mubr.bf16.gmra.mrb[0].mxu0 %v332
        %v467 = vpop.f32.mrb[0].mxu0
        %v468 = vadd.f32 %v367, %v467
        %v469 = vpop.f32.mrb[0].mxu0
        %v470 = vpop.f32.mrb[0].mxu0
        %v471 = vadd.f32 %v367, %v470
        %v472 = vpop.f32.mrb[0].mxu0
        %473 = vmatprep.mubr.bf16.mxu0 0
        %474 = vmatmul.mubr.bf16.gmra.mrb[0].mxu0 %v333
        %v475 = vpop.f32.mrb[0].mxu0
        %v476 = vadd.f32 %v367, %v475
        %v477 = vpop.f32.mrb[0].mxu0
        %v478 = vpop.f32.mrb[0].mxu0
        %v479 = vadd.f32 %v367, %v478
        %v480 = vpop.f32.mrb[0].mxu0
        %481 = vmatprep.mubr.bf16.mxu0 0
        %482 = vmatmul.mubr.bf16.gmra.mrb[0].mxu0 %v334
        %v483 = vpop.f32.mrb[0].mxu0
        %v484 = vadd.f32 %v367, %v483
        %v485 = vpop.f32.mrb[0].mxu0
        %v486 = vpop.f32.mrb[0].mxu0
        %v487 = vadd.f32 %v367, %v486
        %v488 = vpop.f32.mrb[0].mxu0
        %489 = vmatprep.mubr.bf16.mxu0 0
        %490 = vmatmul.mubr.bf16.gmra.mrb[0].mxu0 %v335
        %v491 = vpop.f32.mrb[0].mxu0
        %v492 = vadd.f32 %v367, %v491
        %v493 = vpop.f32.mrb[0].mxu0
        %v494 = vpop.f32.mrb[0].mxu0
        %v495 = vadd.f32 %v367, %v494
        %v496 = vpop.f32.mrb[0].mxu0
        %497 = vmatprep.mubr.bf16.mxu0 0
        %498 = vmatmul.mubr.bf16.gmra.mrb[0].mxu0 %v336
        %v499 = vpop.f32.mrb[0].mxu0
        %v500 = vadd.f32 %v367, %v499
        %v501 = vpop.f32.mrb[0].mxu0
        %v502 = vpop.f32.mrb[0].mxu0
        %v503 = vadd.f32 %v367, %v502
        %v504 = vpop.f32.mrb[0].mxu0
        %505 = vmatprep.mubr.bf16.mxu0 0
        %506 = vmatmul.mubr.bf16.gmra.mrb[0].mxu0 %v337
        %v507 = vpop.f32.mrb[0].mxu0
        %v508 = vadd.f32 %v367, %v507
        %v509 = vpop.f32.mrb[0].mxu0
        %v510 = vpop.f32.mrb[0].mxu0
        %v511 = vadd.f32 %v367, %v510
        %v512 = vpop.f32.mrb[0].mxu0
        %513 = vmatprep.mubr.bf16.mxu0 0
        %514 = vmatmul.mubr.bf16.gmra.mrb[0].mxu0 %v338
        %v515 = vpop.f32.mrb[0].mxu0
        %v516 = vadd.f32 %v367, %v515
        %v517 = vpop.f32.mrb[0].mxu0
        %v518 = vpop.f32.mrb[0].mxu0
        %v519 = vadd.f32 %v367, %v518
        %v520 = vpop.f32.mrb[0].mxu0
        %521 = vmatprep.mubr.bf16.mxu0 0
        %522 = vmatmul.mubr.bf16.gmra.mrb[0].mxu0 %v339
        %v523 = vpop.f32.mrb[0].mxu0
        %v524 = vadd.f32 %v367, %v523
        %v525 = vpop.f32.mrb[0].mxu0
        %v526 = vpop.f32.mrb[0].mxu0
        %v527 = vadd.f32 %v367, %v526
        %v528 = vpop.f32.mrb[0].mxu0
        %529 = vmatprep.mubr.bf16.mxu0 0
        %530 = vmatmul.mubr.bf16.gmra.mrb[0].mxu0 %v340
        %v531 = vpop.f32.mrb[0].mxu0
        %v532 = vadd.f32 %v367, %v531
        %v533 = vpop.f32.mrb[0].mxu0
        %v534 = vpop.f32.mrb[0].mxu0
        %v535 = vadd.f32 %v367, %v534
        %v536 = vpop.f32.mrb[0].mxu0
        %537 = vmatprep.mubr.bf16.mxu0 0
        %538 = vmatmul.mubr.bf16.gmra.mrb[0].mxu0 %v341
        %v539 = vpop.f32.mrb[0].mxu0
        %v540 = vadd.f32 %v367, %v539
        %v541 = vpop.f32.mrb[0].mxu0
        %v542 = vpop.f32.mrb[0].mxu0
        %v543 = vadd.f32 %v367, %v542
        %v544 = vpop.f32.mrb[0].mxu0
        %545 = vmatprep.mubr.bf16.mxu0 0
        %546 = vmatmul.mubr.bf16.gmra.mrb[0].mxu0 %v342
        %v547 = vpop.f32.mrb[0].mxu0
        %v548 = vadd.f32 %v367, %v547
        %v549 = vpop.f32.mrb[0].mxu0
        %v550 = vpop.f32.mrb[0].mxu0
        %v551 = vadd.f32 %v367, %v550
        %v552 = vpop.f32.mrb[0].mxu0
        %553 = vmatprep.mubr.bf16.mxu0 0
        %554 = vmatmul.mubr.bf16.gmra.mrb[0].mxu0 %v343
        %v555 = vpop.f32.mrb[0].mxu0
        %v556 = vadd.f32 %v367, %v555
        %v557 = vpop.f32.mrb[0].mxu0
        %v558 = vpop.f32.mrb[0].mxu0
        %v559 = vadd.f32 %v367, %v558
        %v560 = vpop.f32.mrb[0].mxu0
        %561 = vmatprep.mubr.bf16.mxu0 0
        %562 = vmatmul.mubr.bf16.gmra.mrb[0].mxu0 %v344
        %v563 = vpop.f32.mrb[0].mxu0
        %v564 = vadd.f32 %v367, %v563
        %v565 = vpop.f32.mrb[0].mxu0
        %v566 = vpop.f32.mrb[0].mxu0
        %v567 = vadd.f32 %v367, %v566
        %v568 = vpop.f32.mrb[0].mxu0
        %569 = vmatprep.mubr.bf16.mxu0 0
        %570 = vmatmul.mubr.bf16.gmra.mrb[0].mxu0 %v345
        %v571 = vpop.f32.mrb[0].mxu0
        %v572 = vadd.f32 %v367, %v571
        %v573 = vpop.f32.mrb[0].mxu0
        %v574 = vpop.f32.mrb[0].mxu0
        %v575 = vadd.f32 %v367, %v574
        %v576 = vpop.f32.mrb[0].mxu0
        %577 = vdwg.mxu0
        %v578 = vmax.f32 %v452, 0.0
        %v579 = vmax.f32 %v455, 0.0
        %v580 = vmax.f32 %v460, 0.0
        %v581 = vmax.f32 %v463, 0.0
        %v582 = vmax.f32 %v468, 0.0
        %v583 = vmax.f32 %v471, 0.0
        %v584 = vmax.f32 %v476, 0.0
        %v585 = vmax.f32 %v479, 0.0
        %v586 = vmax.f32 %v484, 0.0
        %v587 = vmax.f32 %v487, 0.0
        %v588 = vmax.f32 %v492, 0.0
        %v589 = vmax.f32 %v495, 0.0
        %v590 = vmax.f32 %v500, 0.0
        %v591 = vmax.f32 %v503, 0.0
        %v592 = vmax.f32 %v508, 0.0
        %v593 = vmax.f32 %v511, 0.0
        %v594 = vmax.f32 %v516, 0.0
        %v595 = vmax.f32 %v519, 0.0
        %v596 = vmax.f32 %v524, 0.0
        %v597 = vmax.f32 %v527, 0.0
        %v598 = vmax.f32 %v532, 0.0
        %v599 = vmax.f32 %v535, 0.0
        %v600 = vmax.f32 %v540, 0.0
        %v601 = vmax.f32 %v543, 0.0
        %v602 = vmax.f32 %v548, 0.0
        %v603 = vmax.f32 %v551, 0.0
        %v604 = vmax.f32 %v556, 0.0
        %v605 = vmax.f32 %v559, 0.0
        %v606 = vmax.f32 %v564, 0.0
        %v607 = vmax.f32 %v567, 0.0
        %v608 = vmax.f32 %v572, 0.0
        %v609 = vmax.f32 %v575, 0.0
        %vm610 = vcmask 31744
        %611 = vst.msk [vmem:[#allocation2] sm:$0xff] %vm610, 0.0
        %vm612 = vcmask 25600
        %613 = vst.msk [vmem:[#allocation2 + $0x8] sm:$0x3] %vm612, 0.0
        %614 = vst.msk [vmem:[#allocation2 + $0x10] sm:$0xff] %vm610, 0.0
        %615 = vst.msk [vmem:[#allocation2 + $0x18] sm:$0x3] %vm612, 0.0
        %616 = vst.msk [vmem:[#allocation2 + $0x20] sm:$0xff] %vm610, 0.0
        %617 = vst.msk [vmem:[#allocation2 + $0x28] sm:$0x3] %vm612, 0.0
        %618 = vst.msk [vmem:[#allocation2 + $0x30] sm:$0xff] %vm610, 0.0
        %619 = vst.msk [vmem:[#allocation2 + $0x38] sm:$0x3] %vm612, 0.0
        %620 = vst.msk [vmem:[#allocation2 + $0x40] sm:$0xff] %vm610, 0.0
        %621 = vst.msk [vmem:[#allocation2 + $0x48] sm:$0x3] %vm612, 0.0
        %622 = vst.msk [vmem:[#allocation2 + $0x50] sm:$0xff] %vm610, 0.0
        %623 = vst.msk [vmem:[#allocation2 + $0x58] sm:$0x3] %vm612, 0.0
        %624 = vst.msk [vmem:[#allocation2 + $0x60] sm:$0xff] %vm610, 0.0
        %625 = vst.msk [vmem:[#allocation2 + $0x68] sm:$0x3] %vm612, 0.0
        %626 = vst.msk [vmem:[#allocation2 + $0x70] sm:$0xff] %vm610, 0.0
        %627 = vst.msk [vmem:[#allocation2 + $0x78] sm:$0x3] %vm612, 0.0
        %628 = vst.msk [vmem:[#allocation2 + $0x80] sm:$0xff] %vm610, 0.0
        %629 = vst.msk [vmem:[#allocation2 + $0x88] sm:$0x3] %vm612, 0.0
        %630 = vst.msk [vmem:[#allocation2 + $0x90] sm:$0xff] %vm610, 0.0
        %631 = vst.msk [vmem:[#allocation2 + $0x98] sm:$0x3] %vm612, 0.0
        %s632 = scalar_lea.vmem [#allocation2], 800
        %633 = vst.msk [vmem:[%s632] sm:$0xff] %vm610, 0.0
        %634 = vst.msk [vmem:[%s632 + $0x8] sm:$0x3] %vm612, 0.0
        %635 = vst.msk [vmem:[%s632 + $0x10] sm:$0xff] %vm610, 0.0
        %636 = vst.msk [vmem:[%s632 + $0x18] sm:$0x3] %vm612, 0.0
        %637 = vst.msk [vmem:[%s632 + $0x20] sm:$0xff] %vm610, 0.0
        %638 = vst.msk [vmem:[%s632 + $0x28] sm:$0x3] %vm612, 0.0
        %639 = vst.msk [vmem:[%s632 + $0x30] sm:$0xff] %vm610, 0.0
        %640 = vst.msk [vmem:[%s632 + $0x38] sm:$0x3] %vm612, 0.0
        %641 = vst.msk [vmem:[%s632 + $0x40] sm:$0xff] %vm610, 0.0
        %642 = vst.msk [vmem:[%s632 + $0x48] sm:$0x3] %vm612, 0.0
        %643 = vst.msk [vmem:[%s632 + $0x50] sm:$0xff] %vm610, 0.0
        %644 = vst.msk [vmem:[%s632 + $0x58] sm:$0x3] %vm612, 0.0
        %645 = vst.msk [vmem:[%s632 + $0x60] sm:$0xff] %vm610, 0.0
        %646 = vst.msk [vmem:[%s632 + $0x68] sm:$0x3] %vm612, 0.0
        %647 = vst.msk [vmem:[%s632 + $0x70] sm:$0xff] %vm610, 0.0
        %648 = vst.msk [vmem:[%s632 + $0x78] sm:$0x3] %vm612, 0.0
        %649 = vst.msk [vmem:[%s632 + $0x80] sm:$0xff] %vm610, 0.0
        %650 = vst.msk [vmem:[%s632 + $0x88] sm:$0x3] %vm612, 0.0
        %651 = vst.msk [vmem:[%s632 + $0x90] sm:$0xff] %vm610, 0.0
        %652 = vst.msk [vmem:[%s632 + $0x98] sm:$0x3] %vm612, 0.0
        %s653 = scalar_lea.vmem [#allocation2], 160
        %654 = vst.msk [vmem:[%s653] sm:$0xff] %vm610, 0.0
        %655 = vst.msk [vmem:[%s653 + $0x8] sm:$0x3] %vm612, 0.0
        %656 = vst.msk [vmem:[%s653 + $0xa0] sm:$0xff] %vm610, 0.0
        %657 = vst.msk [vmem:[%s653 + $0xa8] sm:$0x3] %vm612, 0.0
        %658 = vst.msk [vmem:[%s653 + $0x140] sm:$0xff] %vm610, 0.0
        %659 = vst.msk [vmem:[%s653 + $0x148] sm:$0x3] %vm612, 0.0
        %660 = vst.msk [vmem:[%s653 + $0x1e0] sm:$0xff] %vm610, 0.0
        %661 = vst.msk [vmem:[%s653 + $0x1e8] sm:$0x3] %vm612, 0.0
        %s662 = scalar_lea.vmem [#allocation2], 304
        %663 = vst.msk [vmem:[%s662] sm:$0xff] %vm610, 0.0
        %664 = vst.msk [vmem:[%s662 + $0x8] sm:$0x3] %vm612, 0.0
        %665 = vst.msk [vmem:[%s662 + $0xa0] sm:$0xff] %vm610, 0.0
        %666 = vst.msk [vmem:[%s662 + $0xa8] sm:$0x3] %vm612, 0.0
        %667 = vst.msk [vmem:[%s662 + $0x140] sm:$0xff] %vm610, 0.0
        %668 = vst.msk [vmem:[%s662 + $0x148] sm:$0x3] %vm612, 0.0
        %669 = vst.msk [vmem:[%s662 + $0x1e0] sm:$0xff] %vm610, 0.0
        %670 = vst.msk [vmem:[%s662 + $0x1e8] sm:$0x3] %vm612, 0.0
        %s671 = scalar_lea.vmem [#allocation2], 176
        %vm672 = vcmask 24576
        %673 = vst.msk [vmem:[%s671] sm:$0x1] %vm672, 0.0
        %674 = vst.msk [vmem:[%s671 + $0x10] sm:$0x1] %vm672, 0.0
        %675 = vst.msk [vmem:[%s671 + $0x20] sm:$0x1] %vm672, 0.0
        %676 = vst.msk [vmem:[%s671 + $0x30] sm:$0x1] %vm672, 0.0
        %677 = vst.msk [vmem:[%s671 + $0x40] sm:$0x1] %vm672, 0.0
        %678 = vst.msk [vmem:[%s671 + $0x50] sm:$0x1] %vm672, 0.0
        %679 = vst.msk [vmem:[%s671 + $0x60] sm:$0x1] %vm672, 0.0
        %680 = vst.msk [vmem:[%s671 + $0x70] sm:$0x1] %vm672, 0.0
        %681 = vst.msk [vmem:[%s671 + $0xa0] sm:$0x1] %vm672, 0.0
        %682 = vst.msk [vmem:[%s671 + $0xb0] sm:$0x1] %vm672, 0.0
        %683 = vst.msk [vmem:[%s671 + $0xc0] sm:$0x1] %vm672, 0.0
        %684 = vst.msk [vmem:[%s671 + $0xd0] sm:$0x1] %vm672, 0.0
        %685 = vst.msk [vmem:[%s671 + $0xe0] sm:$0x1] %vm672, 0.0
        %686 = vst.msk [vmem:[%s671 + $0xf0] sm:$0x1] %vm672, 0.0
        %687 = vst.msk [vmem:[%s671 + $0x100] sm:$0x1] %vm672, 0.0
        %688 = vst.msk [vmem:[%s671 + $0x110] sm:$0x1] %vm672, 0.0
        %689 = vst.msk [vmem:[%s671 + $0x140] sm:$0x1] %vm672, 0.0
        %690 = vst.msk [vmem:[%s671 + $0x150] sm:$0x1] %vm672, 0.0
        %691 = vst.msk [vmem:[%s671 + $0x160] sm:$0x1] %vm672, 0.0
        %692 = vst.msk [vmem:[%s671 + $0x170] sm:$0x1] %vm672, 0.0
        %693 = vst.msk [vmem:[%s671 + $0x180] sm:$0x1] %vm672, 0.0
        %694 = vst.msk [vmem:[%s671 + $0x190] sm:$0x1] %vm672, 0.0
        %695 = vst.msk [vmem:[%s671 + $0x1a0] sm:$0x1] %vm672, 0.0
        %696 = vst.msk [vmem:[%s671 + $0x1b0] sm:$0x1] %vm672, 0.0
        %697 = vst.msk [vmem:[%s671 + $0x1e0] sm:$0x1] %vm672, 0.0
        %698 = vst.msk [vmem:[%s671 + $0x1f0] sm:$0x1] %vm672, 0.0
        %699 = vst.msk [vmem:[%s671 + $0x200] sm:$0x1] %vm672, 0.0
        %700 = vst.msk [vmem:[%s671 + $0x210] sm:$0x1] %vm672, 0.0
        %701 = vst.msk [vmem:[%s671 + $0x220] sm:$0x1] %vm672, 0.0
        %702 = vst.msk [vmem:[%s671 + $0x230] sm:$0x1] %vm672, 0.0
        %703 = vst.msk [vmem:[%s671 + $0x240] sm:$0x1] %vm672, 0.0
        %704 = vst.msk [vmem:[%s671 + $0x250] sm:$0x1] %vm672, 0.0
        %705 = vst.msk [vmem:[%s671 + $0x9] sm:$0x1] %vm672, 0.0
        %706 = vst.msk [vmem:[%s671 + $0x19] sm:$0x1] %vm672, 0.0
        %707 = vst.msk [vmem:[%s671 + $0x29] sm:$0x1] %vm672, 0.0
        %708 = vst.msk [vmem:[%s671 + $0x39] sm:$0x1] %vm672, 0.0
        %709 = vst.msk [vmem:[%s671 + $0x49] sm:$0x1] %vm672, 0.0
        %710 = vst.msk [vmem:[%s671 + $0x59] sm:$0x1] %vm672, 0.0
        %711 = vst.msk [vmem:[%s671 + $0x69] sm:$0x1] %vm672, 0.0
        %712 = vst.msk [vmem:[%s671 + $0x79] sm:$0x1] %vm672, 0.0
        %713 = vst.msk [vmem:[%s671 + $0xa9] sm:$0x1] %vm672, 0.0
        %714 = vst.msk [vmem:[%s671 + $0xb9] sm:$0x1] %vm672, 0.0
        %715 = vst.msk [vmem:[%s671 + $0xc9] sm:$0x1] %vm672, 0.0
        %716 = vst.msk [vmem:[%s671 + $0xd9] sm:$0x1] %vm672, 0.0
        %717 = vst.msk [vmem:[%s671 + $0xe9] sm:$0x1] %vm672, 0.0
        %718 = vst.msk [vmem:[%s671 + $0xf9] sm:$0x1] %vm672, 0.0
        %719 = vst.msk [vmem:[%s671 + $0x109] sm:$0x1] %vm672, 0.0
        %720 = vst.msk [vmem:[%s671 + $0x119] sm:$0x1] %vm672, 0.0
        %721 = vst.msk [vmem:[%s671 + $0x149] sm:$0x1] %vm672, 0.0
        %722 = vst.msk [vmem:[%s671 + $0x159] sm:$0x1] %vm672, 0.0
        %723 = vst.msk [vmem:[%s671 + $0x169] sm:$0x1] %vm672, 0.0
        %724 = vst.msk [vmem:[%s671 + $0x179] sm:$0x1] %vm672, 0.0
        %725 = vst.msk [vmem:[%s671 + $0x189] sm:$0x1] %vm672, 0.0
        %726 = vst.msk [vmem:[%s671 + $0x199] sm:$0x1] %vm672, 0.0
        %727 = vst.msk [vmem:[%s671 + $0x1a9] sm:$0x1] %vm672, 0.0
        %728 = vst.msk [vmem:[%s671 + $0x1b9] sm:$0x1] %vm672, 0.0
        %729 = vst.msk [vmem:[%s671 + $0x1e9] sm:$0x1] %vm672, 0.0
        %730 = vst.msk [vmem:[%s671 + $0x1f9] sm:$0x1] %vm672, 0.0
        %731 = vst.msk [vmem:[%s671 + $0x209] sm:$0x1] %vm672, 0.0
        %732 = vst.msk [vmem:[%s671 + $0x219] sm:$0x1] %vm672, 0.0
        %733 = vst.msk [vmem:[%s671 + $0x229] sm:$0x1] %vm672, 0.0
        %734 = vst.msk [vmem:[%s671 + $0x239] sm:$0x1] %vm672, 0.0
        %735 = vst.msk [vmem:[%s671 + $0x249] sm:$0x1] %vm672, 0.0
        %736 = vst.msk [vmem:[%s671 + $0x259] sm:$0x1] %vm672, 0.0
        %737 = vst.msk [vmem:[%s671 + $0x1] sm:$0xff] %vm610, %v578
        %738 = vst.msk [vmem:[%s671 + $0x11] sm:$0xff] %vm610, %v579
        %739 = vst.msk [vmem:[%s671 + $0x21] sm:$0xff] %vm610, %v580
        %740 = vst.msk [vmem:[%s671 + $0x31] sm:$0xff] %vm610, %v581
        %741 = vst.msk [vmem:[%s671 + $0x41] sm:$0xff] %vm610, %v582
        %742 = vst.msk [vmem:[%s671 + $0x51] sm:$0xff] %vm610, %v583
        %743 = vst.msk [vmem:[%s671 + $0x61] sm:$0xff] %vm610, %v584
        %744 = vst.msk [vmem:[%s671 + $0x71] sm:$0xff] %vm610, %v585
        %745 = vst.msk [vmem:[%s671 + $0xa1] sm:$0xff] %vm610, %v586
        %746 = vst.msk [vmem:[%s671 + $0xb1] sm:$0xff] %vm610, %v587
        %747 = vst.msk [vmem:[%s671 + $0xc1] sm:$0xff] %vm610, %v588
        %748 = vst.msk [vmem:[%s671 + $0xd1] sm:$0xff] %vm610, %v589
        %749 = vst.msk [vmem:[%s671 + $0xe1] sm:$0xff] %vm610, %v590
        %750 = vst.msk [vmem:[%s671 + $0xf1] sm:$0xff] %vm610, %v591
        %751 = vst.msk [vmem:[%s671 + $0x101] sm:$0xff] %vm610, %v592
        %752 = vst.msk [vmem:[%s671 + $0x111] sm:$0xff] %vm610, %v593
        %753 = vst.msk [vmem:[%s671 + $0x141] sm:$0xff] %vm610, %v594
        %754 = vst.msk [vmem:[%s671 + $0x151] sm:$0xff] %vm610, %v595
        %755 = vst.msk [vmem:[%s671 + $0x161] sm:$0xff] %vm610, %v596
        %756 = vst.msk [vmem:[%s671 + $0x171] sm:$0xff] %vm610, %v597
        %757 = vst.msk [vmem:[%s671 + $0x181] sm:$0xff] %vm610, %v598
        %758 = vst.msk [vmem:[%s671 + $0x191] sm:$0xff] %vm610, %v599
        %759 = vst.msk [vmem:[%s671 + $0x1a1] sm:$0xff] %vm610, %v600
        %760 = vst.msk [vmem:[%s671 + $0x1b1] sm:$0xff] %vm610, %v601
        %761 = vst.msk [vmem:[%s671 + $0x1e1] sm:$0xff] %vm610, %v602
        %762 = vst.msk [vmem:[%s671 + $0x1f1] sm:$0xff] %vm610, %v603
        %763 = vst.msk [vmem:[%s671 + $0x201] sm:$0xff] %vm610, %v604
        %764 = vst.msk [vmem:[%s671 + $0x211] sm:$0xff] %vm610, %v605
        %765 = vst.msk [vmem:[%s671 + $0x221] sm:$0xff] %vm610, %v606
        %766 = vst.msk [vmem:[%s671 + $0x231] sm:$0xff] %vm610, %v607
        %767 = vst.msk [vmem:[%s671 + $0x241] sm:$0xff] %vm610, %v608
        %768 = vst.msk [vmem:[%s671 + $0x251] sm:$0xff] %vm610, %v609
        %v769 = vld [vmem:[#allocation2] sm:$0xff]
        %v770 = vld [vmem:[#allocation2 + $0x10] sm:$0xff]
        %v771 = vld [vmem:[#allocation2 + $0x20] sm:$0xff]
        %v772 = vld [vmem:[#allocation2 + $0x30] sm:$0xff]
        %v773 = vld [vmem:[#allocation2 + $0x40] sm:$0xff]
        %v774 = vld [vmem:[#allocation2 + $0x50] sm:$0xff]
        %v775 = vld [vmem:[#allocation2 + $0x60] sm:$0xff]
        %v776 = vld [vmem:[#allocation2 + $0x70] sm:$0xff]
        %v777 = vld [vmem:[#allocation2 + $0xa0] sm:$0xff]
        %v778 = vld [vmem:[#allocation2 + $0xb0] sm:$0xff]
        %v779 = vld [vmem:[#allocation2 + $0xc0] sm:$0xff]
        %v780 = vld [vmem:[#allocation2 + $0xd0] sm:$0xff]
        %v781 = vld [vmem:[#allocation2 + $0xe0] sm:$0xff]
        %v782 = vld [vmem:[#allocation2 + $0xf0] sm:$0xff]
        %v783 = vld [vmem:[#allocation2 + $0x100] sm:$0xff]
        %v784 = vld [vmem:[#allocation2 + $0x110] sm:$0xff]
        %v785 = vld [vmem:[#allocation2 + $0x140] sm:$0xff]
        %v786 = vld [vmem:[#allocation2 + $0x150] sm:$0xff]
        %v787 = vld [vmem:[#allocation2 + $0x160] sm:$0xff]
        %v788 = vld [vmem:[#allocation2 + $0x170] sm:$0xff]
        %v789 = vld [vmem:[#allocation2 + $0x180] sm:$0xff]
        %v790 = vld [vmem:[#allocation2 + $0x190] sm:$0xff]
        %v791 = vld [vmem:[#allocation2 + $0x1a0] sm:$0xff]
        %v792 = vld [vmem:[#allocation2 + $0x1b0] sm:$0xff]
        %v793 = vld [vmem:[#allocation2 + $0x1e0] sm:$0xff]
        %v794 = vld [vmem:[#allocation2 + $0x1f0] sm:$0xff]
        %v795 = vld [vmem:[#allocation2 + $0x200] sm:$0xff]
        %v796 = vld [vmem:[#allocation2 + $0x210] sm:$0xff]
        %v797 = vld [vmem:[#allocation2 + $0x220] sm:$0xff]
        %v798 = vld [vmem:[#allocation2 + $0x230] sm:$0xff]
        %v799 = vld [vmem:[#allocation2 + $0x240] sm:$0xff]
        %v800 = vld [vmem:[#allocation2 + $0x250] sm:$0xff]
        %v801 = vld [vmem:[#allocation2 + $0x1] sm:$0xff]
        %v802 = vld [vmem:[#allocation2 + $0x11] sm:$0xff]
        %v803 = vld [vmem:[#allocation2 + $0x21] sm:$0xff]
        %v804 = vld [vmem:[#allocation2 + $0x31] sm:$0xff]
        %v805 = vld [vmem:[#allocation2 + $0x41] sm:$0xff]
        %v806 = vld [vmem:[#allocation2 + $0x51] sm:$0xff]
        %v807 = vld [vmem:[#allocation2 + $0x61] sm:$0xff]
        %v808 = vld [vmem:[#allocation2 + $0x71] sm:$0xff]
        %v809 = vld [vmem:[#allocation2 + $0xa1] sm:$0xff]
        %v810 = vld [vmem:[#allocation2 + $0xb1] sm:$0xff]
        %v811 = vld [vmem:[#allocation2 + $0xc1] sm:$0xff]
        %v812 = vld [vmem:[#allocation2 + $0xd1] sm:$0xff]
        %v813 = vld [vmem:[#allocation2 + $0xe1] sm:$0xff]
        %v814 = vld [vmem:[#allocation2 + $0xf1] sm:$0xff]
        %v815 = vld [vmem:[#allocation2 + $0x101] sm:$0xff]
        %v816 = vld [vmem:[#allocation2 + $0x111] sm:$0xff]
        %v817 = vld [vmem:[#allocation2 + $0x141] sm:$0xff]
        %v818 = vld [vmem:[#allocation2 + $0x151] sm:$0xff]
        %v819 = vld [vmem:[#allocation2 + $0x161] sm:$0xff]
        %v820 = vld [vmem:[#allocation2 + $0x171] sm:$0xff]
        %v821 = vld [vmem:[#allocation2 + $0x181] sm:$0xff]
        %v822 = vld [vmem:[#allocation2 + $0x191] sm:$0xff]
        %v823 = vld [vmem:[#allocation2 + $0x1a1] sm:$0xff]
        %v824 = vld [vmem:[#allocation2 + $0x1b1] sm:$0xff]
        %v825 = vld [vmem:[#allocation2 + $0x1e1] sm:$0xff]
        %v826 = vld [vmem:[#allocation2 + $0x1f1] sm:$0xff]
        %v827 = vld [vmem:[#allocation2 + $0x201] sm:$0xff]
        %v828 = vld [vmem:[#allocation2 + $0x211] sm:$0xff]
        %v829 = vld [vmem:[#allocation2 + $0x221] sm:$0xff]
        %v830 = vld [vmem:[#allocation2 + $0x231] sm:$0xff]
        %v831 = vld [vmem:[#allocation2 + $0x241] sm:$0xff]
        %v832 = vld [vmem:[#allocation2 + $0x251] sm:$0xff]
        %v833 = vld [vmem:[#allocation2 + $0x2] sm:$0xff]
        %v834 = vld [vmem:[#allocation2 + $0x12] sm:$0xff]
        %v835 = vld [vmem:[#allocation2 + $0x22] sm:$0xff]
        %v836 = vld [vmem:[#allocation2 + $0x32] sm:$0xff]
        %v837 = vld [vmem:[#allocation2 + $0x42] sm:$0xff]
        %v838 = vld [vmem:[#allocation2 + $0x52] sm:$0xff]
        %v839 = vld [vmem:[#allocation2 + $0x62] sm:$0xff]
        %v840 = vld [vmem:[#allocation2 + $0x72] sm:$0xff]
        %v841 = vld [vmem:[#allocation2 + $0xa2] sm:$0xff]
        %v842 = vld [vmem:[#allocation2 + $0xb2] sm:$0xff]
        %v843 = vld [vmem:[#allocation2 + $0xc2] sm:$0xff]
        %v844 = vld [vmem:[#allocation2 + $0xd2] sm:$0xff]
        %v845 = vld [vmem:[#allocation2 + $0xe2] sm:$0xff]
        %v846 = vld [vmem:[#allocation2 + $0xf2] sm:$0xff]
        %v847 = vld [vmem:[#allocation2 + $0x102] sm:$0xff]
        %v848 = vld [vmem:[#allocation2 + $0x112] sm:$0xff]
        %v849 = vld [vmem:[#allocation2 + $0x142] sm:$0xff]
        %v850 = vld [vmem:[#allocation2 + $0x152] sm:$0xff]
        %v851 = vld [vmem:[#allocation2 + $0x162] sm:$0xff]
        %v852 = vld [vmem:[#allocation2 + $0x172] sm:$0xff]
        %v853 = vld [vmem:[#allocation2 + $0x182] sm:$0xff]
        %v854 = vld [vmem:[#allocation2 + $0x192] sm:$0xff]
        %v855 = vld [vmem:[#allocation2 + $0x1a2] sm:$0xff]
        %v856 = vld [vmem:[#allocation2 + $0x1b2] sm:$0xff]
        %v857 = vld [vmem:[#allocation2 + $0x1e2] sm:$0xff]
        %v858 = vld [vmem:[#allocation2 + $0x1f2] sm:$0xff]
        %v859 = vld [vmem:[#allocation2 + $0x202] sm:$0xff]
        %v860 = vld [vmem:[#allocation2 + $0x212] sm:$0xff]
        %v861 = vld [vmem:[#allocation2 + $0x222] sm:$0xff]
        %v862 = vld [vmem:[#allocation2 + $0x232] sm:$0xff]
        %v863 = vld [vmem:[#allocation2 + $0x242] sm:$0xff]
        %v864 = vld [vmem:[#allocation2 + $0x252] sm:$0xff]
        %s865 = scalar_lea.vmem [#allocation2], 16
        %v866 = vld [vmem:[%s865] sm:$0xff]
        %v867 = vld [vmem:[%s865 + $0x10] sm:$0xff]
        %v868 = vld [vmem:[%s865 + $0x20] sm:$0xff]
        %v869 = vld [vmem:[%s865 + $0x30] sm:$0xff]
        %v870 = vld [vmem:[%s865 + $0x40] sm:$0xff]
        %v871 = vld [vmem:[%s865 + $0x50] sm:$0xff]
        %v872 = vld [vmem:[%s865 + $0x60] sm:$0xff]
        %v873 = vld [vmem:[%s865 + $0x70] sm:$0xff]
        %v874 = vld [vmem:[%s865 + $0xa0] sm:$0xff]
        %v875 = vld [vmem:[%s865 + $0xb0] sm:$0xff]
        %v876 = vld [vmem:[%s865 + $0xc0] sm:$0xff]
        %v877 = vld [vmem:[%s865 + $0xd0] sm:$0xff]
        %v878 = vld [vmem:[%s865 + $0xe0] sm:$0xff]
        %v879 = vld [vmem:[%s865 + $0xf0] sm:$0xff]
        %v880 = vld [vmem:[%s865 + $0x100] sm:$0xff]
        %v881 = vld [vmem:[%s865 + $0x110] sm:$0xff]
        %v882 = vld [vmem:[%s865 + $0x140] sm:$0xff]
        %v883 = vld [vmem:[%s865 + $0x150] sm:$0xff]
        %v884 = vld [vmem:[%s865 + $0x160] sm:$0xff]
        %v885 = vld [vmem:[%s865 + $0x170] sm:$0xff]
        %v886 = vld [vmem:[%s865 + $0x180] sm:$0xff]
        %v887 = vld [vmem:[%s865 + $0x190] sm:$0xff]
        %v888 = vld [vmem:[%s865 + $0x1a0] sm:$0xff]
        %v889 = vld [vmem:[%s865 + $0x1b0] sm:$0xff]
        %v890 = vld [vmem:[%s865 + $0x1e0] sm:$0xff]
        %v891 = vld [vmem:[%s865 + $0x1f0] sm:$0xff]
        %v892 = vld [vmem:[%s865 + $0x200] sm:$0xff]
        %v893 = vld [vmem:[%s865 + $0x210] sm:$0xff]
        %v894 = vld [vmem:[%s865 + $0x220] sm:$0xff]
        %v895 = vld [vmem:[%s865 + $0x230] sm:$0xff]
        %v896 = vld [vmem:[%s865 + $0x240] sm:$0xff]
        %v897 = vld [vmem:[%s865 + $0x250] sm:$0xff]
        %v898 = vld [vmem:[%s865 + $0x1] sm:$0xff]
        %v899 = vld [vmem:[%s865 + $0x11] sm:$0xff]
        %v900 = vld [vmem:[%s865 + $0x21] sm:$0xff]
        %v901 = vld [vmem:[%s865 + $0x31] sm:$0xff]
        %v902 = vld [vmem:[%s865 + $0x41] sm:$0xff]
        %v903 = vld [vmem:[%s865 + $0x51] sm:$0xff]
        %v904 = vld [vmem:[%s865 + $0x61] sm:$0xff]
        %v905 = vld [vmem:[%s865 + $0x71] sm:$0xff]
        %v906 = vld [vmem:[%s865 + $0xa1] sm:$0xff]
        %v907 = vld [vmem:[%s865 + $0xb1] sm:$0xff]
        %v908 = vld [vmem:[%s865 + $0xc1] sm:$0xff]
        %v909 = vld [vmem:[%s865 + $0xd1] sm:$0xff]
        %v910 = vld [vmem:[%s865 + $0xe1] sm:$0xff]
        %v911 = vld [vmem:[%s865 + $0xf1] sm:$0xff]
        %v912 = vld [vmem:[%s865 + $0x101] sm:$0xff]
        %v913 = vld [vmem:[%s865 + $0x111] sm:$0xff]
        %v914 = vld [vmem:[%s865 + $0x141] sm:$0xff]
        %v915 = vld [vmem:[%s865 + $0x151] sm:$0xff]
        %v916 = vld [vmem:[%s865 + $0x161] sm:$0xff]
        %v917 = vld [vmem:[%s865 + $0x171] sm:$0xff]
        %v918 = vld [vmem:[%s865 + $0x181] sm:$0xff]
        %v919 = vld [vmem:[%s865 + $0x191] sm:$0xff]
        %v920 = vld [vmem:[%s865 + $0x1a1] sm:$0xff]
        %v921 = vld [vmem:[%s865 + $0x1b1] sm:$0xff]
        %v922 = vld [vmem:[%s865 + $0x1e1] sm:$0xff]
        %v923 = vld [vmem:[%s865 + $0x1f1] sm:$0xff]
        %v924 = vld [vmem:[%s865 + $0x201] sm:$0xff]
        %v925 = vld [vmem:[%s865 + $0x211] sm:$0xff]
        %v926 = vld [vmem:[%s865 + $0x221] sm:$0xff]
        %v927 = vld [vmem:[%s865 + $0x231] sm:$0xff]
        %v928 = vld [vmem:[%s865 + $0x241] sm:$0xff]
        %v929 = vld [vmem:[%s865 + $0x251] sm:$0xff]
        %v930 = vld [vmem:[%s865 + $0x2] sm:$0xff]
        %v931 = vld [vmem:[%s865 + $0x12] sm:$0xff]
        %v932 = vld [vmem:[%s865 + $0x22] sm:$0xff]
        %v933 = vld [vmem:[%s865 + $0x32] sm:$0xff]
        %v934 = vld [vmem:[%s865 + $0x42] sm:$0xff]
        %v935 = vld [vmem:[%s865 + $0x52] sm:$0xff]
        %v936 = vld [vmem:[%s865 + $0x62] sm:$0xff]
        %v937 = vld [vmem:[%s865 + $0x72] sm:$0xff]
        %v938 = vld [vmem:[%s865 + $0xa2] sm:$0xff]
        %v939 = vld [vmem:[%s865 + $0xb2] sm:$0xff]
        %v940 = vld [vmem:[%s865 + $0xc2] sm:$0xff]
        %v941 = vld [vmem:[%s865 + $0xd2] sm:$0xff]
        %v942 = vld [vmem:[%s865 + $0xe2] sm:$0xff]
        %v943 = vld [vmem:[%s865 + $0xf2] sm:$0xff]
        %v944 = vld [vmem:[%s865 + $0x102] sm:$0xff]
        %v945 = vld [vmem:[%s865 + $0x112] sm:$0xff]
        %v946 = vld [vmem:[%s865 + $0x142] sm:$0xff]
        %v947 = vld [vmem:[%s865 + $0x152] sm:$0xff]
        %v948 = vld [vmem:[%s865 + $0x162] sm:$0xff]
        %v949 = vld [vmem:[%s865 + $0x172] sm:$0xff]
        %v950 = vld [vmem:[%s865 + $0x182] sm:$0xff]
        %v951 = vld [vmem:[%s865 + $0x192] sm:$0xff]
        %v952 = vld [vmem:[%s865 + $0x1a2] sm:$0xff]
        %v953 = vld [vmem:[%s865 + $0x1b2] sm:$0xff]
        %v954 = vld [vmem:[%s865 + $0x1e2] sm:$0xff]
        %v955 = vld [vmem:[%s865 + $0x1f2] sm:$0xff]
        %v956 = vld [vmem:[%s865 + $0x202] sm:$0xff]
        %v957 = vld [vmem:[%s865 + $0x212] sm:$0xff]
        %v958 = vld [vmem:[%s865 + $0x222] sm:$0xff]
        %v959 = vld [vmem:[%s865 + $0x232] sm:$0xff]
        %v960 = vld [vmem:[%s865 + $0x242] sm:$0xff]
        %v961 = vld [vmem:[%s865 + $0x252] sm:$0xff]
        %s962 = scalar_lea.vmem [#allocation2], 32
        %v963 = vld [vmem:[%s962] sm:$0xff]
        %v964 = vld [vmem:[%s962 + $0x10] sm:$0xff]
        %v965 = vld [vmem:[%s962 + $0x20] sm:$0xff]
        %v966 = vld [vmem:[%s962 + $0x30] sm:$0xff]
        %v967 = vld [vmem:[%s962 + $0x40] sm:$0xff]
        %v968 = vld [vmem:[%s962 + $0x50] sm:$0xff]
        %v969 = vld [vmem:[%s962 + $0x60] sm:$0xff]
        %v970 = vld [vmem:[%s962 + $0x70] sm:$0xff]
        %v971 = vld [vmem:[%s962 + $0xa0] sm:$0xff]
        %v972 = vld [vmem:[%s962 + $0xb0] sm:$0xff]
        %v973 = vld [vmem:[%s962 + $0xc0] sm:$0xff]
        %v974 = vld [vmem:[%s962 + $0xd0] sm:$0xff]
        %v975 = vld [vmem:[%s962 + $0xe0] sm:$0xff]
        %v976 = vld [vmem:[%s962 + $0xf0] sm:$0xff]
        %v977 = vld [vmem:[%s962 + $0x100] sm:$0xff]
        %v978 = vld [vmem:[%s962 + $0x110] sm:$0xff]
        %v979 = vld [vmem:[%s962 + $0x140] sm:$0xff]
        %v980 = vld [vmem:[%s962 + $0x150] sm:$0xff]
        %v981 = vld [vmem:[%s962 + $0x160] sm:$0xff]
        %v982 = vld [vmem:[%s962 + $0x170] sm:$0xff]
        %v983 = vld [vmem:[%s962 + $0x180] sm:$0xff]
        %v984 = vld [vmem:[%s962 + $0x190] sm:$0xff]
        %v985 = vld [vmem:[%s962 + $0x1a0] sm:$0xff]
        %v986 = vld [vmem:[%s962 + $0x1b0] sm:$0xff]
        %v987 = vld [vmem:[%s962 + $0x1e0] sm:$0xff]
        %v988 = vld [vmem:[%s962 + $0x1f0] sm:$0xff]
        %v989 = vld [vmem:[%s962 + $0x200] sm:$0xff]
        %v990 = vld [vmem:[%s962 + $0x210] sm:$0xff]
        %v991 = vld [vmem:[%s962 + $0x220] sm:$0xff]
        %v992 = vld [vmem:[%s962 + $0x230] sm:$0xff]
        %v993 = vld [vmem:[%s962 + $0x240] sm:$0xff]
        %v994 = vld [vmem:[%s962 + $0x250] sm:$0xff]
        %v995 = vld [vmem:[%s962 + $0x1] sm:$0xff]
        %v996 = vld [vmem:[%s962 + $0x11] sm:$0xff]
        %v997 = vld [vmem:[%s962 + $0x21] sm:$0xff]
        %v998 = vld [vmem:[%s962 + $0x31] sm:$0xff]
        %v999 = vld [vmem:[%s962 + $0x41] sm:$0xff]
        %v1000 = vld [vmem:[%s962 + $0x51] sm:$0xff]
        %v1001 = vld [vmem:[%s962 + $0x61] sm:$0xff]
        %v1002 = vld [vmem:[%s962 + $0x71] sm:$0xff]
        %v1003 = vld [vmem:[%s962 + $0xa1] sm:$0xff]
        %v1004 = vld [vmem:[%s962 + $0xb1] sm:$0xff]
        %v1005 = vld [vmem:[%s962 + $0xc1] sm:$0xff]
        %v1006 = vld [vmem:[%s962 + $0xd1] sm:$0xff]
        %v1007 = vld [vmem:[%s962 + $0xe1] sm:$0xff]
        %v1008 = vld [vmem:[%s962 + $0xf1] sm:$0xff]
        %v1009 = vld [vmem:[%s962 + $0x101] sm:$0xff]
        %v1010 = vld [vmem:[%s962 + $0x111] sm:$0xff]
        %v1011 = vld [vmem:[%s962 + $0x141] sm:$0xff]
        %v1012 = vld [vmem:[%s962 + $0x151] sm:$0xff]
        %v1013 = vld [vmem:[%s962 + $0x161] sm:$0xff]
        %v1014 = vld [vmem:[%s962 + $0x171] sm:$0xff]
        %v1015 = vld [vmem:[%s962 + $0x181] sm:$0xff]
        %v1016 = vld [vmem:[%s962 + $0x191] sm:$0xff]
        %v1017 = vld [vmem:[%s962 + $0x1a1] sm:$0xff]
        %v1018 = vld [vmem:[%s962 + $0x1b1] sm:$0xff]
        %v1019 = vld [vmem:[%s962 + $0x1e1] sm:$0xff]
        %v1020 = vld [vmem:[%s962 + $0x1f1] sm:$0xff]
        %v1021 = vld [vmem:[%s962 + $0x201] sm:$0xff]
        %v1022 = vld [vmem:[%s962 + $0x211] sm:$0xff]
        %v1023 = vld [vmem:[%s962 + $0x221] sm:$0xff]
        %v1024 = vld [vmem:[%s962 + $0x231] sm:$0xff]
        %v1025 = vld [vmem:[%s962 + $0x241] sm:$0xff]
        %v1026 = vld [vmem:[%s962 + $0x251] sm:$0xff]
        %v1027 = vld [vmem:[%s962 + $0x2] sm:$0xff]
        %v1028 = vld [vmem:[%s962 + $0x12] sm:$0xff]
        %v1029 = vld [vmem:[%s962 + $0x22] sm:$0xff]
        %v1030 = vld [vmem:[%s962 + $0x32] sm:$0xff]
        %v1031 = vld [vmem:[%s962 + $0x42] sm:$0xff]
        %v1032 = vld [vmem:[%s962 + $0x52] sm:$0xff]
        %v1033 = vld [vmem:[%s962 + $0x62] sm:$0xff]
        %v1034 = vld [vmem:[%s962 + $0x72] sm:$0xff]
        %v1035 = vld [vmem:[%s962 + $0xa2] sm:$0xff]
        %v1036 = vld [vmem:[%s962 + $0xb2] sm:$0xff]
        %v1037 = vld [vmem:[%s962 + $0xc2] sm:$0xff]
        %v1038 = vld [vmem:[%s962 + $0xd2] sm:$0xff]
        %v1039 = vld [vmem:[%s962 + $0xe2] sm:$0xff]
        %v1040 = vld [vmem:[%s962 + $0xf2] sm:$0xff]
        %v1041 = vld [vmem:[%s962 + $0x102] sm:$0xff]
        %v1042 = vld [vmem:[%s962 + $0x112] sm:$0xff]
        %v1043 = vld [vmem:[%s962 + $0x142] sm:$0xff]
        %v1044 = vld [vmem:[%s962 + $0x152] sm:$0xff]
        %v1045 = vld [vmem:[%s962 + $0x162] sm:$0xff]
        %v1046 = vld [vmem:[%s962 + $0x172] sm:$0xff]
        %v1047 = vld [vmem:[%s962 + $0x182] sm:$0xff]
        %v1048 = vld [vmem:[%s962 + $0x192] sm:$0xff]
        %v1049 = vld [vmem:[%s962 + $0x1a2] sm:$0xff]
        %v1050 = vld [vmem:[%s962 + $0x1b2] sm:$0xff]
        %v1051 = vld [vmem:[%s962 + $0x1e2] sm:$0xff]
        %v1052 = vld [vmem:[%s962 + $0x1f2] sm:$0xff]
        %v1053 = vld [vmem:[%s962 + $0x202] sm:$0xff]
        %v1054 = vld [vmem:[%s962 + $0x212] sm:$0xff]
        %v1055 = vld [vmem:[%s962 + $0x222] sm:$0xff]
        %v1056 = vld [vmem:[%s962 + $0x232] sm:$0xff]
        %v1057 = vld [vmem:[%s962 + $0x242] sm:$0xff]
        %v1058 = vld [vmem:[%s962 + $0x252] sm:$0xff]
        %v1059 = vld [vmem:[%s653] sm:$0xff]
        %v1060 = vld [vmem:[%s653 + $0x10] sm:$0xff]
        %v1061 = vld [vmem:[%s653 + $0x20] sm:$0xff]
        %v1062 = vld [vmem:[%s653 + $0x30] sm:$0xff]
        %v1063 = vld [vmem:[%s653 + $0x40] sm:$0xff]
        %v1064 = vld [vmem:[%s653 + $0x50] sm:$0xff]
        %v1065 = vld [vmem:[%s653 + $0x60] sm:$0xff]
        %v1066 = vld [vmem:[%s653 + $0x70] sm:$0xff]
        %v1067 = vld [vmem:[%s653 + $0xa0] sm:$0xff]
        %v1068 = vld [vmem:[%s653 + $0xb0] sm:$0xff]
        %v1069 = vld [vmem:[%s653 + $0xc0] sm:$0xff]
        %v1070 = vld [vmem:[%s653 + $0xd0] sm:$0xff]
        %v1071 = vld [vmem:[%s653 + $0xe0] sm:$0xff]
        %v1072 = vld [vmem:[%s653 + $0xf0] sm:$0xff]
        %v1073 = vld [vmem:[%s653 + $0x100] sm:$0xff]
        %v1074 = vld [vmem:[%s653 + $0x110] sm:$0xff]
        %v1075 = vld [vmem:[%s653 + $0x140] sm:$0xff]
        %v1076 = vld [vmem:[%s653 + $0x150] sm:$0xff]
        %v1077 = vld [vmem:[%s653 + $0x160] sm:$0xff]
        %v1078 = vld [vmem:[%s653 + $0x170] sm:$0xff]
        %v1079 = vld [vmem:[%s653 + $0x180] sm:$0xff]
        %v1080 = vld [vmem:[%s653 + $0x190] sm:$0xff]
        %v1081 = vld [vmem:[%s653 + $0x1a0] sm:$0xff]
        %v1082 = vld [vmem:[%s653 + $0x1b0] sm:$0xff]
        %v1083 = vld [vmem:[%s653 + $0x1e0] sm:$0xff]
        %v1084 = vld [vmem:[%s653 + $0x1f0] sm:$0xff]
        %v1085 = vld [vmem:[%s653 + $0x200] sm:$0xff]
        %v1086 = vld [vmem:[%s653 + $0x210] sm:$0xff]
        %v1087 = vld [vmem:[%s653 + $0x220] sm:$0xff]
        %v1088 = vld [vmem:[%s653 + $0x230] sm:$0xff]
        %v1089 = vld [vmem:[%s653 + $0x240] sm:$0xff]
        %v1090 = vld [vmem:[%s653 + $0x250] sm:$0xff]
        %v1091 = vld [vmem:[%s653 + $0x1] sm:$0xff]
        %v1092 = vld [vmem:[%s653 + $0x11] sm:$0xff]
        %v1093 = vld [vmem:[%s653 + $0x21] sm:$0xff]
        %v1094 = vld [vmem:[%s653 + $0x31] sm:$0xff]
        %v1095 = vld [vmem:[%s653 + $0x41] sm:$0xff]
        %v1096 = vld [vmem:[%s653 + $0x51] sm:$0xff]
        %v1097 = vld [vmem:[%s653 + $0x61] sm:$0xff]
        %v1098 = vld [vmem:[%s653 + $0x71] sm:$0xff]
        %v1099 = vld [vmem:[%s653 + $0xa1] sm:$0xff]
        %v1100 = vld [vmem:[%s653 + $0xb1] sm:$0xff]
        %v1101 = vld [vmem:[%s653 + $0xc1] sm:$0xff]
        %v1102 = vld [vmem:[%s653 + $0xd1] sm:$0xff]
        %v1103 = vld [vmem:[%s653 + $0xe1] sm:$0xff]
        %v1104 = vld [vmem:[%s653 + $0xf1] sm:$0xff]
        %v1105 = vld [vmem:[%s653 + $0x101] sm:$0xff]
        %v1106 = vld [vmem:[%s653 + $0x111] sm:$0xff]
        %v1107 = vld [vmem:[%s653 + $0x141] sm:$0xff]
        %v1108 = vld [vmem:[%s653 + $0x151] sm:$0xff]
        %v1109 = vld [vmem:[%s653 + $0x161] sm:$0xff]
        %v1110 = vld [vmem:[%s653 + $0x171] sm:$0xff]
        %v1111 = vld [vmem:[%s653 + $0x181] sm:$0xff]
        %v1112 = vld [vmem:[%s653 + $0x191] sm:$0xff]
        %v1113 = vld [vmem:[%s653 + $0x1a1] sm:$0xff]
        %v1114 = vld [vmem:[%s653 + $0x1b1] sm:$0xff]
        %v1115 = vld [vmem:[%s653 + $0x1e1] sm:$0xff]
        %v1116 = vld [vmem:[%s653 + $0x1f1] sm:$0xff]
        %v1117 = vld [vmem:[%s653 + $0x201] sm:$0xff]
        %v1118 = vld [vmem:[%s653 + $0x211] sm:$0xff]
        %v1119 = vld [vmem:[%s653 + $0x221] sm:$0xff]
        %v1120 = vld [vmem:[%s653 + $0x231] sm:$0xff]
        %v1121 = vld [vmem:[%s653 + $0x241] sm:$0xff]
        %v1122 = vld [vmem:[%s653 + $0x251] sm:$0xff]
        %v1123 = vld [vmem:[%s653 + $0x2] sm:$0xff]
        %v1124 = vld [vmem:[%s653 + $0x12] sm:$0xff]
        %v1125 = vld [vmem:[%s653 + $0x22] sm:$0xff]
        %v1126 = vld [vmem:[%s653 + $0x32] sm:$0xff]
        %v1127 = vld [vmem:[%s653 + $0x42] sm:$0xff]
        %v1128 = vld [vmem:[%s653 + $0x52] sm:$0xff]
        %v1129 = vld [vmem:[%s653 + $0x62] sm:$0xff]
        %v1130 = vld [vmem:[%s653 + $0x72] sm:$0xff]
        %v1131 = vld [vmem:[%s653 + $0xa2] sm:$0xff]
        %v1132 = vld [vmem:[%s653 + $0xb2] sm:$0xff]
        %v1133 = vld [vmem:[%s653 + $0xc2] sm:$0xff]
        %v1134 = vld [vmem:[%s653 + $0xd2] sm:$0xff]
        %v1135 = vld [vmem:[%s653 + $0xe2] sm:$0xff]
        %v1136 = vld [vmem:[%s653 + $0xf2] sm:$0xff]
        %v1137 = vld [vmem:[%s653 + $0x102] sm:$0xff]
        %v1138 = vld [vmem:[%s653 + $0x112] sm:$0xff]
        %v1139 = vld [vmem:[%s653 + $0x142] sm:$0xff]
        %v1140 = vld [vmem:[%s653 + $0x152] sm:$0xff]
        %v1141 = vld [vmem:[%s653 + $0x162] sm:$0xff]
        %v1142 = vld [vmem:[%s653 + $0x172] sm:$0xff]
        %v1143 = vld [vmem:[%s653 + $0x182] sm:$0xff]
        %v1144 = vld [vmem:[%s653 + $0x192] sm:$0xff]
        %v1145 = vld [vmem:[%s653 + $0x1a2] sm:$0xff]
        %v1146 = vld [vmem:[%s653 + $0x1b2] sm:$0xff]
        %v1147 = vld [vmem:[%s653 + $0x1e2] sm:$0xff]
        %v1148 = vld [vmem:[%s653 + $0x1f2] sm:$0xff]
        %v1149 = vld [vmem:[%s653 + $0x202] sm:$0xff]
        %v1150 = vld [vmem:[%s653 + $0x212] sm:$0xff]
        %v1151 = vld [vmem:[%s653 + $0x222] sm:$0xff]
        %v1152 = vld [vmem:[%s653 + $0x232] sm:$0xff]
        %v1153 = vld [vmem:[%s653 + $0x242] sm:$0xff]
        %v1154 = vld [vmem:[%s653 + $0x252] sm:$0xff]
        %v1155 = vld [vmem:[%s671] sm:$0xff]
        %v1156 = vld [vmem:[%s671 + $0x10] sm:$0xff]
        %v1157 = vld [vmem:[%s671 + $0x20] sm:$0xff]
        %v1158 = vld [vmem:[%s671 + $0x30] sm:$0xff]
        %v1159 = vld [vmem:[%s671 + $0x40] sm:$0xff]
        %v1160 = vld [vmem:[%s671 + $0x50] sm:$0xff]
        %v1161 = vld [vmem:[%s671 + $0x60] sm:$0xff]
        %v1162 = vld [vmem:[%s671 + $0x70] sm:$0xff]
        %v1163 = vld [vmem:[%s671 + $0xa0] sm:$0xff]
        %v1164 = vld [vmem:[%s671 + $0xb0] sm:$0xff]
        %v1165 = vld [vmem:[%s671 + $0xc0] sm:$0xff]
        %v1166 = vld [vmem:[%s671 + $0xd0] sm:$0xff]
        %v1167 = vld [vmem:[%s671 + $0xe0] sm:$0xff]
        %v1168 = vld [vmem:[%s671 + $0xf0] sm:$0xff]
        %v1169 = vld [vmem:[%s671 + $0x100] sm:$0xff]
        %v1170 = vld [vmem:[%s671 + $0x110] sm:$0xff]
        %v1171 = vld [vmem:[%s671 + $0x140] sm:$0xff]
        %v1172 = vld [vmem:[%s671 + $0x150] sm:$0xff]
        %v1173 = vld [vmem:[%s671 + $0x160] sm:$0xff]
        %v1174 = vld [vmem:[%s671 + $0x170] sm:$0xff]
        %v1175 = vld [vmem:[%s671 + $0x180] sm:$0xff]
        %v1176 = vld [vmem:[%s671 + $0x190] sm:$0xff]
        %v1177 = vld [vmem:[%s671 + $0x1a0] sm:$0xff]
        %v1178 = vld [vmem:[%s671 + $0x1b0] sm:$0xff]
        %v1179 = vld [vmem:[%s671 + $0x1e0] sm:$0xff]
        %v1180 = vld [vmem:[%s671 + $0x1f0] sm:$0xff]
        %v1181 = vld [vmem:[%s671 + $0x200] sm:$0xff]
        %v1182 = vld [vmem:[%s671 + $0x210] sm:$0xff]
        %v1183 = vld [vmem:[%s671 + $0x220] sm:$0xff]
        %v1184 = vld [vmem:[%s671 + $0x230] sm:$0xff]
        %v1185 = vld [vmem:[%s671 + $0x240] sm:$0xff]
        %v1186 = vld [vmem:[%s671 + $0x250] sm:$0xff]
        %v1187 = vld [vmem:[%s671 + $0x1] sm:$0xff]
        %v1188 = vld [vmem:[%s671 + $0x11] sm:$0xff]
        %v1189 = vld [vmem:[%s671 + $0x21] sm:$0xff]
        %v1190 = vld [vmem:[%s671 + $0x31] sm:$0xff]
        %v1191 = vld [vmem:[%s671 + $0x41] sm:$0xff]
        %v1192 = vld [vmem:[%s671 + $0x51] sm:$0xff]
        %v1193 = vld [vmem:[%s671 + $0x61] sm:$0xff]
        %v1194 = vld [vmem:[%s671 + $0x71] sm:$0xff]
        %v1195 = vld [vmem:[%s671 + $0xa1] sm:$0xff]
        %v1196 = vld [vmem:[%s671 + $0xb1] sm:$0xff]
        %v1197 = vld [vmem:[%s671 + $0xc1] sm:$0xff]
        %v1198 = vld [vmem:[%s671 + $0xd1] sm:$0xff]
        %v1199 = vld [vmem:[%s671 + $0xe1] sm:$0xff]
        %v1200 = vld [vmem:[%s671 + $0xf1] sm:$0xff]
        %v1201 = vld [vmem:[%s671 + $0x101] sm:$0xff]
        %v1202 = vld [vmem:[%s671 + $0x111] sm:$0xff]
        %v1203 = vld [vmem:[%s671 + $0x141] sm:$0xff]
        %v1204 = vld [vmem:[%s671 + $0x151] sm:$0xff]
        %v1205 = vld [vmem:[%s671 + $0x161] sm:$0xff]
        %v1206 = vld [vmem:[%s671 + $0x171] sm:$0xff]
        %v1207 = vld [vmem:[%s671 + $0x181] sm:$0xff]
        %v1208 = vld [vmem:[%s671 + $0x191] sm:$0xff]
        %v1209 = vld [vmem:[%s671 + $0x1a1] sm:$0xff]
        %v1210 = vld [vmem:[%s671 + $0x1b1] sm:$0xff]
        %v1211 = vld [vmem:[%s671 + $0x1e1] sm:$0xff]
        %v1212 = vld [vmem:[%s671 + $0x1f1] sm:$0xff]
        %v1213 = vld [vmem:[%s671 + $0x201] sm:$0xff]
        %v1214 = vld [vmem:[%s671 + $0x211] sm:$0xff]
        %v1215 = vld [vmem:[%s671 + $0x221] sm:$0xff]
        %v1216 = vld [vmem:[%s671 + $0x231] sm:$0xff]
        %v1217 = vld [vmem:[%s671 + $0x241] sm:$0xff]
        %v1218 = vld [vmem:[%s671 + $0x251] sm:$0xff]
        %v1219 = vld [vmem:[%s671 + $0x2] sm:$0xff]
        %v1220 = vld [vmem:[%s671 + $0x12] sm:$0xff]
        %v1221 = vld [vmem:[%s671 + $0x22] sm:$0xff]
        %v1222 = vld [vmem:[%s671 + $0x32] sm:$0xff]
        %v1223 = vld [vmem:[%s671 + $0x42] sm:$0xff]
        %v1224 = vld [vmem:[%s671 + $0x52] sm:$0xff]
        %v1225 = vld [vmem:[%s671 + $0x62] sm:$0xff]
        %v1226 = vld [vmem:[%s671 + $0x72] sm:$0xff]
        %v1227 = vld [vmem:[%s671 + $0xa2] sm:$0xff]
        %v1228 = vld [vmem:[%s671 + $0xb2] sm:$0xff]
        %v1229 = vld [vmem:[%s671 + $0xc2] sm:$0xff]
        %v1230 = vld [vmem:[%s671 + $0xd2] sm:$0xff]
        %v1231 = vld [vmem:[%s671 + $0xe2] sm:$0xff]
        %v1232 = vld [vmem:[%s671 + $0xf2] sm:$0xff]
        %v1233 = vld [vmem:[%s671 + $0x102] sm:$0xff]
        %v1234 = vld [vmem:[%s671 + $0x112] sm:$0xff]
        %v1235 = vld [vmem:[%s671 + $0x142] sm:$0xff]
        %v1236 = vld [vmem:[%s671 + $0x152] sm:$0xff]
        %v1237 = vld [vmem:[%s671 + $0x162] sm:$0xff]
        %v1238 = vld [vmem:[%s671 + $0x172] sm:$0xff]
        %v1239 = vld [vmem:[%s671 + $0x182] sm:$0xff]
        %v1240 = vld [vmem:[%s671 + $0x192] sm:$0xff]
        %v1241 = vld [vmem:[%s671 + $0x1a2] sm:$0xff]
        %v1242 = vld [vmem:[%s671 + $0x1b2] sm:$0xff]
        %v1243 = vld [vmem:[%s671 + $0x1e2] sm:$0xff]
        %v1244 = vld [vmem:[%s671 + $0x1f2] sm:$0xff]
        %v1245 = vld [vmem:[%s671 + $0x202] sm:$0xff]
        %v1246 = vld [vmem:[%s671 + $0x212] sm:$0xff]
        %v1247 = vld [vmem:[%s671 + $0x222] sm:$0xff]
        %v1248 = vld [vmem:[%s671 + $0x232] sm:$0xff]
        %v1249 = vld [vmem:[%s671 + $0x242] sm:$0xff]
        %v1250 = vld [vmem:[%s671 + $0x252] sm:$0xff]
        %s1251 = scalar_lea.vmem [#allocation2], 192
        %v1252 = vld [vmem:[%s1251] sm:$0xff]
        %v1253 = vld [vmem:[%s1251 + $0x10] sm:$0xff]
        %v1254 = vld [vmem:[%s1251 + $0x20] sm:$0xff]
        %v1255 = vld [vmem:[%s1251 + $0x30] sm:$0xff]
        %v1256 = vld [vmem:[%s1251 + $0x40] sm:$0xff]
        %v1257 = vld [vmem:[%s1251 + $0x50] sm:$0xff]
        %v1258 = vld [vmem:[%s1251 + $0x60] sm:$0xff]
        %v1259 = vld [vmem:[%s1251 + $0x70] sm:$0xff]
        %v1260 = vld [vmem:[%s1251 + $0xa0] sm:$0xff]
        %v1261 = vld [vmem:[%s1251 + $0xb0] sm:$0xff]
        %v1262 = vld [vmem:[%s1251 + $0xc0] sm:$0xff]
        %v1263 = vld [vmem:[%s1251 + $0xd0] sm:$0xff]
        %v1264 = vld [vmem:[%s1251 + $0xe0] sm:$0xff]
        %v1265 = vld [vmem:[%s1251 + $0xf0] sm:$0xff]
        %v1266 = vld [vmem:[%s1251 + $0x100] sm:$0xff]
        %v1267 = vld [vmem:[%s1251 + $0x110] sm:$0xff]
        %v1268 = vld [vmem:[%s1251 + $0x140] sm:$0xff]
        %v1269 = vld [vmem:[%s1251 + $0x150] sm:$0xff]
        %v1270 = vld [vmem:[%s1251 + $0x160] sm:$0xff]
        %v1271 = vld [vmem:[%s1251 + $0x170] sm:$0xff]
        %v1272 = vld [vmem:[%s1251 + $0x180] sm:$0xff]
        %v1273 = vld [vmem:[%s1251 + $0x190] sm:$0xff]
        %v1274 = vld [vmem:[%s1251 + $0x1a0] sm:$0xff]
        %v1275 = vld [vmem:[%s1251 + $0x1b0] sm:$0xff]
        %v1276 = vld [vmem:[%s1251 + $0x1e0] sm:$0xff]
        %v1277 = vld [vmem:[%s1251 + $0x1f0] sm:$0xff]
        %v1278 = vld [vmem:[%s1251 + $0x200] sm:$0xff]
        %v1279 = vld [vmem:[%s1251 + $0x210] sm:$0xff]
        %v1280 = vld [vmem:[%s1251 + $0x220] sm:$0xff]
        %v1281 = vld [vmem:[%s1251 + $0x230] sm:$0xff]
        %v1282 = vld [vmem:[%s1251 + $0x240] sm:$0xff]
        %v1283 = vld [vmem:[%s1251 + $0x250] sm:$0xff]
        %v1284 = vld [vmem:[%s1251 + $0x1] sm:$0xff]
        %v1285 = vld [vmem:[%s1251 + $0x11] sm:$0xff]
        %v1286 = vld [vmem:[%s1251 + $0x21] sm:$0xff]
        %v1287 = vld [vmem:[%s1251 + $0x31] sm:$0xff]
        %v1288 = vld [vmem:[%s1251 + $0x41] sm:$0xff]
        %v1289 = vld [vmem:[%s1251 + $0x51] sm:$0xff]
        %v1290 = vld [vmem:[%s1251 + $0x61] sm:$0xff]
        %v1291 = vld [vmem:[%s1251 + $0x71] sm:$0xff]
        %v1292 = vld [vmem:[%s1251 + $0xa1] sm:$0xff]
        %v1293 = vld [vmem:[%s1251 + $0xb1] sm:$0xff]
        %v1294 = vld [vmem:[%s1251 + $0xc1] sm:$0xff]
        %v1295 = vld [vmem:[%s1251 + $0xd1] sm:$0xff]
        %v1296 = vld [vmem:[%s1251 + $0xe1] sm:$0xff]
        %v1297 = vld [vmem:[%s1251 + $0xf1] sm:$0xff]
        %v1298 = vld [vmem:[%s1251 + $0x101] sm:$0xff]
        %v1299 = vld [vmem:[%s1251 + $0x111] sm:$0xff]
        %v1300 = vld [vmem:[%s1251 + $0x141] sm:$0xff]
        %v1301 = vld [vmem:[%s1251 + $0x151] sm:$0xff]
        %v1302 = vld [vmem:[%s1251 + $0x161] sm:$0xff]
        %v1303 = vld [vmem:[%s1251 + $0x171] sm:$0xff]
        %v1304 = vld [vmem:[%s1251 + $0x181] sm:$0xff]
        %v1305 = vld [vmem:[%s1251 + $0x191] sm:$0xff]
        %v1306 = vld [vmem:[%s1251 + $0x1a1] sm:$0xff]
        %v1307 = vld [vmem:[%s1251 + $0x1b1] sm:$0xff]
        %v1308 = vld [vmem:[%s1251 + $0x1e1] sm:$0xff]
        %v1309 = vld [vmem:[%s1251 + $0x1f1] sm:$0xff]
        %v1310 = vld [vmem:[%s1251 + $0x201] sm:$0xff]
        %v1311 = vld [vmem:[%s1251 + $0x211] sm:$0xff]
        %v1312 = vld [vmem:[%s1251 + $0x221] sm:$0xff]
        %v1313 = vld [vmem:[%s1251 + $0x231] sm:$0xff]
        %v1314 = vld [vmem:[%s1251 + $0x241] sm:$0xff]
        %v1315 = vld [vmem:[%s1251 + $0x251] sm:$0xff]
        %v1316 = vld [vmem:[%s1251 + $0x2] sm:$0xff]
        %v1317 = vld [vmem:[%s1251 + $0x12] sm:$0xff]
        %v1318 = vld [vmem:[%s1251 + $0x22] sm:$0xff]
        %v1319 = vld [vmem:[%s1251 + $0x32] sm:$0xff]
        %v1320 = vld [vmem:[%s1251 + $0x42] sm:$0xff]
        %v1321 = vld [vmem:[%s1251 + $0x52] sm:$0xff]
        %v1322 = vld [vmem:[%s1251 + $0x62] sm:$0xff]
        %v1323 = vld [vmem:[%s1251 + $0x72] sm:$0xff]
        %v1324 = vld [vmem:[%s1251 + $0xa2] sm:$0xff]
        %v1325 = vld [vmem:[%s1251 + $0xb2] sm:$0xff]
        %v1326 = vld [vmem:[%s1251 + $0xc2] sm:$0xff]
        %v1327 = vld [vmem:[%s1251 + $0xd2] sm:$0xff]
        %v1328 = vld [vmem:[%s1251 + $0xe2] sm:$0xff]
        %v1329 = vld [vmem:[%s1251 + $0xf2] sm:$0xff]
        %v1330 = vld [vmem:[%s1251 + $0x102] sm:$0xff]
        %v1331 = vld [vmem:[%s1251 + $0x112] sm:$0xff]
        %v1332 = vld [vmem:[%s1251 + $0x142] sm:$0xff]
        %v1333 = vld [vmem:[%s1251 + $0x152] sm:$0xff]
        %v1334 = vld [vmem:[%s1251 + $0x162] sm:$0xff]
        %v1335 = vld [vmem:[%s1251 + $0x172] sm:$0xff]
        %v1336 = vld [vmem:[%s1251 + $0x182] sm:$0xff]
        %v1337 = vld [vmem:[%s1251 + $0x192] sm:$0xff]
        %v1338 = vld [vmem:[%s1251 + $0x1a2] sm:$0xff]
        %v1339 = vld [vmem:[%s1251 + $0x1b2] sm:$0xff]
        %v1340 = vld [vmem:[%s1251 + $0x1e2] sm:$0xff]
        %v1341 = vld [vmem:[%s1251 + $0x1f2] sm:$0xff]
        %v1342 = vld [vmem:[%s1251 + $0x202] sm:$0xff]
        %v1343 = vld [vmem:[%s1251 + $0x212] sm:$0xff]
        %v1344 = vld [vmem:[%s1251 + $0x222] sm:$0xff]
        %v1345 = vld [vmem:[%s1251 + $0x232] sm:$0xff]
        %v1346 = vld [vmem:[%s1251 + $0x242] sm:$0xff]
        %v1347 = vld [vmem:[%s1251 + $0x252] sm:$0xff]
        %s1348 = scalar_lea.vmem [#allocation2], 320
        %v1349 = vld [vmem:[%s1348] sm:$0xff]
        %v1350 = vld [vmem:[%s1348 + $0x10] sm:$0xff]
        %v1351 = vld [vmem:[%s1348 + $0x20] sm:$0xff]
        %v1352 = vld [vmem:[%s1348 + $0x30] sm:$0xff]
        %v1353 = vld [vmem:[%s1348 + $0x40] sm:$0xff]
        %v1354 = vld [vmem:[%s1348 + $0x50] sm:$0xff]
        %v1355 = vld [vmem:[%s1348 + $0x60] sm:$0xff]
        %v1356 = vld [vmem:[%s1348 + $0x70] sm:$0xff]
        %v1357 = vld [vmem:[%s1348 + $0xa0] sm:$0xff]
        %v1358 = vld [vmem:[%s1348 + $0xb0] sm:$0xff]
        %v1359 = vld [vmem:[%s1348 + $0xc0] sm:$0xff]
        %v1360 = vld [vmem:[%s1348 + $0xd0] sm:$0xff]
        %v1361 = vld [vmem:[%s1348 + $0xe0] sm:$0xff]
        %v1362 = vld [vmem:[%s1348 + $0xf0] sm:$0xff]
        %v1363 = vld [vmem:[%s1348 + $0x100] sm:$0xff]
        %v1364 = vld [vmem:[%s1348 + $0x110] sm:$0xff]
        %v1365 = vld [vmem:[%s1348 + $0x140] sm:$0xff]
        %v1366 = vld [vmem:[%s1348 + $0x150] sm:$0xff]
        %v1367 = vld [vmem:[%s1348 + $0x160] sm:$0xff]
        %v1368 = vld [vmem:[%s1348 + $0x170] sm:$0xff]
        %v1369 = vld [vmem:[%s1348 + $0x180] sm:$0xff]
        %v1370 = vld [vmem:[%s1348 + $0x190] sm:$0xff]
        %v1371 = vld [vmem:[%s1348 + $0x1a0] sm:$0xff]
        %v1372 = vld [vmem:[%s1348 + $0x1b0] sm:$0xff]
        %v1373 = vld [vmem:[%s1348 + $0x1e0] sm:$0xff]
        %v1374 = vld [vmem:[%s1348 + $0x1f0] sm:$0xff]
        %v1375 = vld [vmem:[%s1348 + $0x200] sm:$0xff]
        %v1376 = vld [vmem:[%s1348 + $0x210] sm:$0xff]
        %v1377 = vld [vmem:[%s1348 + $0x220] sm:$0xff]
        %v1378 = vld [vmem:[%s1348 + $0x230] sm:$0xff]
        %v1379 = vld [vmem:[%s1348 + $0x240] sm:$0xff]
        %v1380 = vld [vmem:[%s1348 + $0x250] sm:$0xff]
        %v1381 = vld [vmem:[%s1348 + $0x1] sm:$0xff]
        %v1382 = vld [vmem:[%s1348 + $0x11] sm:$0xff]
        %v1383 = vld [vmem:[%s1348 + $0x21] sm:$0xff]
        %v1384 = vld [vmem:[%s1348 + $0x31] sm:$0xff]
        %v1385 = vld [vmem:[%s1348 + $0x41] sm:$0xff]
        %v1386 = vld [vmem:[%s1348 + $0x51] sm:$0xff]
        %v1387 = vld [vmem:[%s1348 + $0x61] sm:$0xff]
        %v1388 = vld [vmem:[%s1348 + $0x71] sm:$0xff]
        %v1389 = vld [vmem:[%s1348 + $0xa1] sm:$0xff]
        %v1390 = vld [vmem:[%s1348 + $0xb1] sm:$0xff]
        %v1391 = vld [vmem:[%s1348 + $0xc1] sm:$0xff]
        %v1392 = vld [vmem:[%s1348 + $0xd1] sm:$0xff]
        %v1393 = vld [vmem:[%s1348 + $0xe1] sm:$0xff]
        %v1394 = vld [vmem:[%s1348 + $0xf1] sm:$0xff]
        %v1395 = vld [vmem:[%s1348 + $0x101] sm:$0xff]
        %v1396 = vld [vmem:[%s1348 + $0x111] sm:$0xff]
        %v1397 = vld [vmem:[%s1348 + $0x141] sm:$0xff]
        %v1398 = vld [vmem:[%s1348 + $0x151] sm:$0xff]
        %v1399 = vld [vmem:[%s1348 + $0x161] sm:$0xff]
        %v1400 = vld [vmem:[%s1348 + $0x171] sm:$0xff]
        %v1401 = vld [vmem:[%s1348 + $0x181] sm:$0xff]
        %v1402 = vld [vmem:[%s1348 + $0x191] sm:$0xff]
        %v1403 = vld [vmem:[%s1348 + $0x1a1] sm:$0xff]
        %v1404 = vld [vmem:[%s1348 + $0x1b1] sm:$0xff]
        %v1405 = vld [vmem:[%s1348 + $0x1e1] sm:$0xff]
        %v1406 = vld [vmem:[%s1348 + $0x1f1] sm:$0xff]
        %v1407 = vld [vmem:[%s1348 + $0x201] sm:$0xff]
        %v1408 = vld [vmem:[%s1348 + $0x211] sm:$0xff]
        %v1409 = vld [vmem:[%s1348 + $0x221] sm:$0xff]
        %v1410 = vld [vmem:[%s1348 + $0x231] sm:$0xff]
        %v1411 = vld [vmem:[%s1348 + $0x241] sm:$0xff]
        %v1412 = vld [vmem:[%s1348 + $0x251] sm:$0xff]
        %v1413 = vld [vmem:[%s1348 + $0x2] sm:$0xff]
        %v1414 = vld [vmem:[%s1348 + $0x12] sm:$0xff]
        %v1415 = vld [vmem:[%s1348 + $0x22] sm:$0xff]
        %v1416 = vld [vmem:[%s1348 + $0x32] sm:$0xff]
        %v1417 = vld [vmem:[%s1348 + $0x42] sm:$0xff]
        %v1418 = vld [vmem:[%s1348 + $0x52] sm:$0xff]
        %v1419 = vld [vmem:[%s1348 + $0x62] sm:$0xff]
        %v1420 = vld [vmem:[%s1348 + $0x72] sm:$0xff]
        %v1421 = vld [vmem:[%s1348 + $0xa2] sm:$0xff]
        %v1422 = vld [vmem:[%s1348 + $0xb2] sm:$0xff]
        %v1423 = vld [vmem:[%s1348 + $0xc2] sm:$0xff]
        %v1424 = vld [vmem:[%s1348 + $0xd2] sm:$0xff]
        %v1425 = vld [vmem:[%s1348 + $0xe2] sm:$0xff]
        %v1426 = vld [vmem:[%s1348 + $0xf2] sm:$0xff]
        %v1427 = vld [vmem:[%s1348 + $0x102] sm:$0xff]
        %v1428 = vld [vmem:[%s1348 + $0x112] sm:$0xff]
        %v1429 = vld [vmem:[%s1348 + $0x142] sm:$0xff]
        %v1430 = vld [vmem:[%s1348 + $0x152] sm:$0xff]
        %v1431 = vld [vmem:[%s1348 + $0x162] sm:$0xff]
        %v1432 = vld [vmem:[%s1348 + $0x172] sm:$0xff]
        %v1433 = vld [vmem:[%s1348 + $0x182] sm:$0xff]
        %v1434 = vld [vmem:[%s1348 + $0x192] sm:$0xff]
        %v1435 = vld [vmem:[%s1348 + $0x1a2] sm:$0xff]
        %v1436 = vld [vmem:[%s1348 + $0x1b2] sm:$0xff]
        %v1437 = vld [vmem:[%s1348 + $0x1e2] sm:$0xff]
        %v1438 = vld [vmem:[%s1348 + $0x1f2] sm:$0xff]
        %v1439 = vld [vmem:[%s1348 + $0x202] sm:$0xff]
        %v1440 = vld [vmem:[%s1348 + $0x212] sm:$0xff]
        %v1441 = vld [vmem:[%s1348 + $0x222] sm:$0xff]
        %v1442 = vld [vmem:[%s1348 + $0x232] sm:$0xff]
        %v1443 = vld [vmem:[%s1348 + $0x242] sm:$0xff]
        %v1444 = vld [vmem:[%s1348 + $0x252] sm:$0xff]
        %s1445 = scalar_lea.vmem [#allocation2], 336
        %v1446 = vld [vmem:[%s1445] sm:$0xff]
        %v1447 = vld [vmem:[%s1445 + $0x10] sm:$0xff]
        %v1448 = vld [vmem:[%s1445 + $0x20] sm:$0xff]
        %v1449 = vld [vmem:[%s1445 + $0x30] sm:$0xff]
        %v1450 = vld [vmem:[%s1445 + $0x40] sm:$0xff]
        %v1451 = vld [vmem:[%s1445 + $0x50] sm:$0xff]
        %v1452 = vld [vmem:[%s1445 + $0x60] sm:$0xff]
        %v1453 = vld [vmem:[%s1445 + $0x70] sm:$0xff]
        %v1454 = vld [vmem:[%s1445 + $0xa0] sm:$0xff]
        %v1455 = vld [vmem:[%s1445 + $0xb0] sm:$0xff]
        %v1456 = vld [vmem:[%s1445 + $0xc0] sm:$0xff]
        %v1457 = vld [vmem:[%s1445 + $0xd0] sm:$0xff]
        %v1458 = vld [vmem:[%s1445 + $0xe0] sm:$0xff]
        %v1459 = vld [vmem:[%s1445 + $0xf0] sm:$0xff]
        %v1460 = vld [vmem:[%s1445 + $0x100] sm:$0xff]
        %v1461 = vld [vmem:[%s1445 + $0x110] sm:$0xff]
        %v1462 = vld [vmem:[%s1445 + $0x140] sm:$0xff]
        %v1463 = vld [vmem:[%s1445 + $0x150] sm:$0xff]
        %v1464 = vld [vmem:[%s1445 + $0x160] sm:$0xff]
        %v1465 = vld [vmem:[%s1445 + $0x170] sm:$0xff]
        %v1466 = vld [vmem:[%s1445 + $0x180] sm:$0xff]
        %v1467 = vld [vmem:[%s1445 + $0x190] sm:$0xff]
        %v1468 = vld [vmem:[%s1445 + $0x1a0] sm:$0xff]
        %v1469 = vld [vmem:[%s1445 + $0x1b0] sm:$0xff]
        %v1470 = vld [vmem:[%s1445 + $0x1e0] sm:$0xff]
        %v1471 = vld [vmem:[%s1445 + $0x1f0] sm:$0xff]
        %v1472 = vld [vmem:[%s1445 + $0x200] sm:$0xff]
        %v1473 = vld [vmem:[%s1445 + $0x210] sm:$0xff]
        %v1474 = vld [vmem:[%s1445 + $0x220] sm:$0xff]
        %v1475 = vld [vmem:[%s1445 + $0x230] sm:$0xff]
        %v1476 = vld [vmem:[%s1445 + $0x240] sm:$0xff]
        %v1477 = vld [vmem:[%s1445 + $0x250] sm:$0xff]
        %v1478 = vld [vmem:[%s1445 + $0x1] sm:$0xff]
        %v1479 = vld [vmem:[%s1445 + $0x11] sm:$0xff]
        %v1480 = vld [vmem:[%s1445 + $0x21] sm:$0xff]
        %v1481 = vld [vmem:[%s1445 + $0x31] sm:$0xff]
        %v1482 = vld [vmem:[%s1445 + $0x41] sm:$0xff]
        %v1483 = vld [vmem:[%s1445 + $0x51] sm:$0xff]
        %v1484 = vld [vmem:[%s1445 + $0x61] sm:$0xff]
        %v1485 = vld [vmem:[%s1445 + $0x71] sm:$0xff]
        %v1486 = vld [vmem:[%s1445 + $0xa1] sm:$0xff]
        %v1487 = vld [vmem:[%s1445 + $0xb1] sm:$0xff]
        %v1488 = vld [vmem:[%s1445 + $0xc1] sm:$0xff]
        %v1489 = vld [vmem:[%s1445 + $0xd1] sm:$0xff]
        %v1490 = vld [vmem:[%s1445 + $0xe1] sm:$0xff]
        %v1491 = vld [vmem:[%s1445 + $0xf1] sm:$0xff]
        %v1492 = vld [vmem:[%s1445 + $0x101] sm:$0xff]
        %v1493 = vld [vmem:[%s1445 + $0x111] sm:$0xff]
        %v1494 = vld [vmem:[%s1445 + $0x141] sm:$0xff]
        %v1495 = vld [vmem:[%s1445 + $0x151] sm:$0xff]
        %v1496 = vld [vmem:[%s1445 + $0x161] sm:$0xff]
        %v1497 = vld [vmem:[%s1445 + $0x171] sm:$0xff]
        %v1498 = vld [vmem:[%s1445 + $0x181] sm:$0xff]
        %v1499 = vld [vmem:[%s1445 + $0x191] sm:$0xff]
        %v1500 = vld [vmem:[%s1445 + $0x1a1] sm:$0xff]
        %v1501 = vld [vmem:[%s1445 + $0x1b1] sm:$0xff]
        %v1502 = vld [vmem:[%s1445 + $0x1e1] sm:$0xff]
        %v1503 = vld [vmem:[%s1445 + $0x1f1] sm:$0xff]
        %v1504 = vld [vmem:[%s1445 + $0x201] sm:$0xff]
        %v1505 = vld [vmem:[%s1445 + $0x211] sm:$0xff]
        %v1506 = vld [vmem:[%s1445 + $0x221] sm:$0xff]
        %v1507 = vld [vmem:[%s1445 + $0x231] sm:$0xff]
        %v1508 = vld [vmem:[%s1445 + $0x241] sm:$0xff]
        %v1509 = vld [vmem:[%s1445 + $0x251] sm:$0xff]
        %v1510 = vld [vmem:[%s1445 + $0x2] sm:$0xff]
        %v1511 = vld [vmem:[%s1445 + $0x12] sm:$0xff]
        %v1512 = vld [vmem:[%s1445 + $0x22] sm:$0xff]
        %v1513 = vld [vmem:[%s1445 + $0x32] sm:$0xff]
        %v1514 = vld [vmem:[%s1445 + $0x42] sm:$0xff]
        %v1515 = vld [vmem:[%s1445 + $0x52] sm:$0xff]
        %v1516 = vld [vmem:[%s1445 + $0x62] sm:$0xff]
        %v1517 = vld [vmem:[%s1445 + $0x72] sm:$0xff]
        %v1518 = vld [vmem:[%s1445 + $0xa2] sm:$0xff]
        %v1519 = vld [vmem:[%s1445 + $0xb2] sm:$0xff]
        %v1520 = vld [vmem:[%s1445 + $0xc2] sm:$0xff]
        %v1521 = vld [vmem:[%s1445 + $0xd2] sm:$0xff]
        %v1522 = vld [vmem:[%s1445 + $0xe2] sm:$0xff]
        %v1523 = vld [vmem:[%s1445 + $0xf2] sm:$0xff]
        %v1524 = vld [vmem:[%s1445 + $0x102] sm:$0xff]
        %v1525 = vld [vmem:[%s1445 + $0x112] sm:$0xff]
        %v1526 = vld [vmem:[%s1445 + $0x142] sm:$0xff]
        %v1527 = vld [vmem:[%s1445 + $0x152] sm:$0xff]
        %v1528 = vld [vmem:[%s1445 + $0x162] sm:$0xff]
        %v1529 = vld [vmem:[%s1445 + $0x172] sm:$0xff]
        %v1530 = vld [vmem:[%s1445 + $0x182] sm:$0xff]
        %v1531 = vld [vmem:[%s1445 + $0x192] sm:$0xff]
        %v1532 = vld [vmem:[%s1445 + $0x1a2] sm:$0xff]
        %v1533 = vld [vmem:[%s1445 + $0x1b2] sm:$0xff]
        %v1534 = vld [vmem:[%s1445 + $0x1e2] sm:$0xff]
        %v1535 = vld [vmem:[%s1445 + $0x1f2] sm:$0xff]
        %v1536 = vld [vmem:[%s1445 + $0x202] sm:$0xff]
        %v1537 = vld [vmem:[%s1445 + $0x212] sm:$0xff]
        %v1538 = vld [vmem:[%s1445 + $0x222] sm:$0xff]
        %v1539 = vld [vmem:[%s1445 + $0x232] sm:$0xff]
        %v1540 = vld [vmem:[%s1445 + $0x242] sm:$0xff]
        %v1541 = vld [vmem:[%s1445 + $0x252] sm:$0xff]
        %s1542 = scalar_lea.vmem [#allocation2], 352
        %v1543 = vld [vmem:[%s1542] sm:$0xff]
        %v1544 = vld [vmem:[%s1542 + $0x10] sm:$0xff]
        %v1545 = vld [vmem:[%s1542 + $0x20] sm:$0xff]
        %v1546 = vld [vmem:[%s1542 + $0x30] sm:$0xff]
        %v1547 = vld [vmem:[%s1542 + $0x40] sm:$0xff]
        %v1548 = vld [vmem:[%s1542 + $0x50] sm:$0xff]
        %v1549 = vld [vmem:[%s1542 + $0x60] sm:$0xff]
        %v1550 = vld [vmem:[%s1542 + $0x70] sm:$0xff]
        %v1551 = vld [vmem:[%s1542 + $0xa0] sm:$0xff]
        %v1552 = vld [vmem:[%s1542 + $0xb0] sm:$0xff]
        %v1553 = vld [vmem:[%s1542 + $0xc0] sm:$0xff]
        %v1554 = vld [vmem:[%s1542 + $0xd0] sm:$0xff]
        %v1555 = vld [vmem:[%s1542 + $0xe0] sm:$0xff]
        %v1556 = vld [vmem:[%s1542 + $0xf0] sm:$0xff]
        %v1557 = vld [vmem:[%s1542 + $0x100] sm:$0xff]
        %v1558 = vld [vmem:[%s1542 + $0x110] sm:$0xff]
        %v1559 = vld [vmem:[%s1542 + $0x140] sm:$0xff]
        %v1560 = vld [vmem:[%s1542 + $0x150] sm:$0xff]
        %v1561 = vld [vmem:[%s1542 + $0x160] sm:$0xff]
        %v1562 = vld [vmem:[%s1542 + $0x170] sm:$0xff]
        %v1563 = vld [vmem:[%s1542 + $0x180] sm:$0xff]
        %v1564 = vld [vmem:[%s1542 + $0x190] sm:$0xff]
        %v1565 = vld [vmem:[%s1542 + $0x1a0] sm:$0xff]
        %v1566 = vld [vmem:[%s1542 + $0x1b0] sm:$0xff]
        %v1567 = vld [vmem:[%s1542 + $0x1e0] sm:$0xff]
        %v1568 = vld [vmem:[%s1542 + $0x1f0] sm:$0xff]
        %v1569 = vld [vmem:[%s1542 + $0x200] sm:$0xff]
        %v1570 = vld [vmem:[%s1542 + $0x210] sm:$0xff]
        %v1571 = vld [vmem:[%s1542 + $0x220] sm:$0xff]
        %v1572 = vld [vmem:[%s1542 + $0x230] sm:$0xff]
        %v1573 = vld [vmem:[%s1542 + $0x240] sm:$0xff]
        %v1574 = vld [vmem:[%s1542 + $0x250] sm:$0xff]
        %v1575 = vld [vmem:[%s1542 + $0x1] sm:$0xff]
        %v1576 = vld [vmem:[%s1542 + $0x11] sm:$0xff]
        %v1577 = vld [vmem:[%s1542 + $0x21] sm:$0xff]
        %v1578 = vld [vmem:[%s1542 + $0x31] sm:$0xff]
        %v1579 = vld [vmem:[%s1542 + $0x41] sm:$0xff]
        %v1580 = vld [vmem:[%s1542 + $0x51] sm:$0xff]
        %v1581 = vld [vmem:[%s1542 + $0x61] sm:$0xff]
        %v1582 = vld [vmem:[%s1542 + $0x71] sm:$0xff]
        %v1583 = vld [vmem:[%s1542 + $0xa1] sm:$0xff]
        %v1584 = vld [vmem:[%s1542 + $0xb1] sm:$0xff]
        %v1585 = vld [vmem:[%s1542 + $0xc1] sm:$0xff]
        %v1586 = vld [vmem:[%s1542 + $0xd1] sm:$0xff]
        %v1587 = vld [vmem:[%s1542 + $0xe1] sm:$0xff]
        %v1588 = vld [vmem:[%s1542 + $0xf1] sm:$0xff]
        %v1589 = vld [vmem:[%s1542 + $0x101] sm:$0xff]
        %v1590 = vld [vmem:[%s1542 + $0x111] sm:$0xff]
        %v1591 = vld [vmem:[%s1542 + $0x141] sm:$0xff]
        %v1592 = vld [vmem:[%s1542 + $0x151] sm:$0xff]
        %v1593 = vld [vmem:[%s1542 + $0x161] sm:$0xff]
        %v1594 = vld [vmem:[%s1542 + $0x171] sm:$0xff]
        %v1595 = vld [vmem:[%s1542 + $0x181] sm:$0xff]
        %v1596 = vld [vmem:[%s1542 + $0x191] sm:$0xff]
        %v1597 = vld [vmem:[%s1542 + $0x1a1] sm:$0xff]
        %v1598 = vld [vmem:[%s1542 + $0x1b1] sm:$0xff]
        %v1599 = vld [vmem:[%s1542 + $0x1e1] sm:$0xff]
        %v1600 = vld [vmem:[%s1542 + $0x1f1] sm:$0xff]
        %v1601 = vld [vmem:[%s1542 + $0x201] sm:$0xff]
        %v1602 = vld [vmem:[%s1542 + $0x211] sm:$0xff]
        %v1603 = vld [vmem:[%s1542 + $0x221] sm:$0xff]
        %v1604 = vld [vmem:[%s1542 + $0x231] sm:$0xff]
        %v1605 = vld [vmem:[%s1542 + $0x241] sm:$0xff]
        %v1606 = vld [vmem:[%s1542 + $0x251] sm:$0xff]
        %v1607 = vld [vmem:[%s1542 + $0x2] sm:$0xff]
        %v1608 = vld [vmem:[%s1542 + $0x12] sm:$0xff]
        %v1609 = vld [vmem:[%s1542 + $0x22] sm:$0xff]
        %v1610 = vld [vmem:[%s1542 + $0x32] sm:$0xff]
        %v1611 = vld [vmem:[%s1542 + $0x42] sm:$0xff]
        %v1612 = vld [vmem:[%s1542 + $0x52] sm:$0xff]
        %v1613 = vld [vmem:[%s1542 + $0x62] sm:$0xff]
        %v1614 = vld [vmem:[%s1542 + $0x72] sm:$0xff]
        %v1615 = vld [vmem:[%s1542 + $0xa2] sm:$0xff]
        %v1616 = vld [vmem:[%s1542 + $0xb2] sm:$0xff]
        %v1617 = vld [vmem:[%s1542 + $0xc2] sm:$0xff]
        %v1618 = vld [vmem:[%s1542 + $0xd2] sm:$0xff]
        %v1619 = vld [vmem:[%s1542 + $0xe2] sm:$0xff]
        %v1620 = vld [vmem:[%s1542 + $0xf2] sm:$0xff]
        %v1621 = vld [vmem:[%s1542 + $0x102] sm:$0xff]
        %v1622 = vld [vmem:[%s1542 + $0x112] sm:$0xff]
        %v1623 = vld [vmem:[%s1542 + $0x142] sm:$0xff]
        %v1624 = vld [vmem:[%s1542 + $0x152] sm:$0xff]
        %v1625 = vld [vmem:[%s1542 + $0x162] sm:$0xff]
        %v1626 = vld [vmem:[%s1542 + $0x172] sm:$0xff]
        %v1627 = vld [vmem:[%s1542 + $0x182] sm:$0xff]
        %v1628 = vld [vmem:[%s1542 + $0x192] sm:$0xff]
        %v1629 = vld [vmem:[%s1542 + $0x1a2] sm:$0xff]
        %v1630 = vld [vmem:[%s1542 + $0x1b2] sm:$0xff]
        %v1631 = vld [vmem:[%s1542 + $0x1e2] sm:$0xff]
        %v1632 = vld [vmem:[%s1542 + $0x1f2] sm:$0xff]
        %v1633 = vld [vmem:[%s1542 + $0x202] sm:$0xff]
        %v1634 = vld [vmem:[%s1542 + $0x212] sm:$0xff]
        %v1635 = vld [vmem:[%s1542 + $0x222] sm:$0xff]
        %v1636 = vld [vmem:[%s1542 + $0x232] sm:$0xff]
        %v1637 = vld [vmem:[%s1542 + $0x242] sm:$0xff]
        %v1638 = vld [vmem:[%s1542 + $0x252] sm:$0xff]
        %1671 = vrot.lane.b32.xlu0 %v801, 4
        %v1672 = vpop.permute.xlu0 %1671
        %1673 = vrot.lane.b32.xlu0 %v802, 4
        %v1674 = vpop.permute.xlu0 %1673
        %1675 = vrot.lane.b32.xlu0 %v803, 4
        %v1676 = vpop.permute.xlu0 %1675
        %1677 = vrot.lane.b32.xlu0 %v804, 4
        %v1678 = vpop.permute.xlu0 %1677
        %1679 = vrot.lane.b32.xlu0 %v805, 4
        %v1680 = vpop.permute.xlu0 %1679
        %1681 = vrot.lane.b32.xlu0 %v806, 4
        %v1682 = vpop.permute.xlu0 %1681
        %1683 = vrot.lane.b32.xlu0 %v807, 4
        %v1684 = vpop.permute.xlu0 %1683
        %1685 = vrot.lane.b32.xlu0 %v808, 4
        %v1686 = vpop.permute.xlu0 %1685
        %1687 = vrot.lane.b32.xlu0 %v809, 4
        %v1688 = vpop.permute.xlu0 %1687
        %1689 = vrot.lane.b32.xlu0 %v810, 4
        %v1690 = vpop.permute.xlu0 %1689
        %1691 = vrot.lane.b32.xlu0 %v811, 4
        %v1692 = vpop.permute.xlu0 %1691
        %1693 = vrot.lane.b32.xlu0 %v812, 4
        %v1694 = vpop.permute.xlu0 %1693
        %1695 = vrot.lane.b32.xlu0 %v813, 4
        %v1696 = vpop.permute.xlu0 %1695
        %1697 = vrot.lane.b32.xlu0 %v814, 4
        %v1698 = vpop.permute.xlu0 %1697
        %1699 = vrot.lane.b32.xlu0 %v815, 4
        %v1700 = vpop.permute.xlu0 %1699
        %1701 = vrot.lane.b32.xlu0 %v816, 4
        %v1702 = vpop.permute.xlu0 %1701
        %1703 = vrot.lane.b32.xlu0 %v817, 4
        %v1704 = vpop.permute.xlu0 %1703
        %1705 = vrot.lane.b32.xlu0 %v818, 4
        %v1706 = vpop.permute.xlu0 %1705
        %1707 = vrot.lane.b32.xlu0 %v819, 4
        %v1708 = vpop.permute.xlu0 %1707
        %1709 = vrot.lane.b32.xlu0 %v820, 4
        %v1710 = vpop.permute.xlu0 %1709
        %1711 = vrot.lane.b32.xlu0 %v821, 4
        %v1712 = vpop.permute.xlu0 %1711
        %1713 = vrot.lane.b32.xlu0 %v822, 4
        %v1714 = vpop.permute.xlu0 %1713
        %1715 = vrot.lane.b32.xlu0 %v823, 4
        %v1716 = vpop.permute.xlu0 %1715
        %1717 = vrot.lane.b32.xlu0 %v824, 4
        %v1718 = vpop.permute.xlu0 %1717
        %1719 = vrot.lane.b32.xlu0 %v825, 4
        %v1720 = vpop.permute.xlu0 %1719
        %1721 = vrot.lane.b32.xlu0 %v826, 4
        %v1722 = vpop.permute.xlu0 %1721
        %1723 = vrot.lane.b32.xlu0 %v827, 4
        %v1724 = vpop.permute.xlu0 %1723
        %1725 = vrot.lane.b32.xlu0 %v828, 4
        %v1726 = vpop.permute.xlu0 %1725
        %1727 = vrot.lane.b32.xlu0 %v829, 4
        %v1728 = vpop.permute.xlu0 %1727
        %1729 = vrot.lane.b32.xlu0 %v830, 4
        %v1730 = vpop.permute.xlu0 %1729
        %1731 = vrot.lane.b32.xlu0 %v831, 4
        %v1732 = vpop.permute.xlu0 %1731
        %1733 = vrot.lane.b32.xlu0 %v832, 4
        %v1734 = vpop.permute.xlu0 %1733
        %1799 = vrot.lane.b32.xlu0 %v833, 8
        %v1800 = vpop.permute.xlu0 %1799
        %1801 = vrot.lane.b32.xlu0 %v834, 8
        %v1802 = vpop.permute.xlu0 %1801
        %1803 = vrot.lane.b32.xlu0 %v835, 8
        %v1804 = vpop.permute.xlu0 %1803
        %1805 = vrot.lane.b32.xlu0 %v836, 8
        %v1806 = vpop.permute.xlu0 %1805
        %1807 = vrot.lane.b32.xlu0 %v837, 8
        %v1808 = vpop.permute.xlu0 %1807
        %1809 = vrot.lane.b32.xlu0 %v838, 8
        %v1810 = vpop.permute.xlu0 %1809
        %1811 = vrot.lane.b32.xlu0 %v839, 8
        %v1812 = vpop.permute.xlu0 %1811
        %1813 = vrot.lane.b32.xlu0 %v840, 8
        %v1814 = vpop.permute.xlu0 %1813
        %1815 = vrot.lane.b32.xlu0 %v841, 8
        %v1816 = vpop.permute.xlu0 %1815
        %1817 = vrot.lane.b32.xlu0 %v842, 8
        %v1818 = vpop.permute.xlu0 %1817
        %1819 = vrot.lane.b32.xlu0 %v843, 8
        %v1820 = vpop.permute.xlu0 %1819
        %1821 = vrot.lane.b32.xlu0 %v844, 8
        %v1822 = vpop.permute.xlu0 %1821
        %1823 = vrot.lane.b32.xlu0 %v845, 8
        %v1824 = vpop.permute.xlu0 %1823
        %1825 = vrot.lane.b32.xlu0 %v846, 8
        %v1826 = vpop.permute.xlu0 %1825
        %1827 = vrot.lane.b32.xlu0 %v847, 8
        %v1828 = vpop.permute.xlu0 %1827
        %1829 = vrot.lane.b32.xlu0 %v848, 8
        %v1830 = vpop.permute.xlu0 %1829
        %1831 = vrot.lane.b32.xlu0 %v849, 8
        %v1832 = vpop.permute.xlu0 %1831
        %1833 = vrot.lane.b32.xlu0 %v850, 8
        %v1834 = vpop.permute.xlu0 %1833
        %1835 = vrot.lane.b32.xlu0 %v851, 8
        %v1836 = vpop.permute.xlu0 %1835
        %1837 = vrot.lane.b32.xlu0 %v852, 8
        %v1838 = vpop.permute.xlu0 %1837
        %1839 = vrot.lane.b32.xlu0 %v853, 8
        %v1840 = vpop.permute.xlu0 %1839
        %1841 = vrot.lane.b32.xlu0 %v854, 8
        %v1842 = vpop.permute.xlu0 %1841
        %1843 = vrot.lane.b32.xlu0 %v855, 8
        %v1844 = vpop.permute.xlu0 %1843
        %1845 = vrot.lane.b32.xlu0 %v856, 8
        %v1846 = vpop.permute.xlu0 %1845
        %1847 = vrot.lane.b32.xlu0 %v857, 8
        %v1848 = vpop.permute.xlu0 %1847
        %1849 = vrot.lane.b32.xlu0 %v858, 8
        %v1850 = vpop.permute.xlu0 %1849
        %1851 = vrot.lane.b32.xlu0 %v859, 8
        %v1852 = vpop.permute.xlu0 %1851
        %1853 = vrot.lane.b32.xlu0 %v860, 8
        %v1854 = vpop.permute.xlu0 %1853
        %1855 = vrot.lane.b32.xlu0 %v861, 8
        %v1856 = vpop.permute.xlu0 %1855
        %1857 = vrot.lane.b32.xlu0 %v862, 8
        %v1858 = vpop.permute.xlu0 %1857
        %1859 = vrot.lane.b32.xlu0 %v863, 8
        %v1860 = vpop.permute.xlu0 %1859
        %1861 = vrot.lane.b32.xlu0 %v864, 8
        %v1862 = vpop.permute.xlu0 %1861
        %1927 = vrot.lane.b32.xlu0 %v866, 12
        %v1928 = vpop.permute.xlu0 %1927
        %1929 = vrot.lane.b32.xlu0 %v867, 12
        %v1930 = vpop.permute.xlu0 %1929
        %1931 = vrot.lane.b32.xlu0 %v868, 12
        %v1932 = vpop.permute.xlu0 %1931
        %1933 = vrot.lane.b32.xlu0 %v869, 12
        %v1934 = vpop.permute.xlu0 %1933
        %1935 = vrot.lane.b32.xlu0 %v870, 12
        %v1936 = vpop.permute.xlu0 %1935
        %1937 = vrot.lane.b32.xlu0 %v871, 12
        %v1938 = vpop.permute.xlu0 %1937
        %1939 = vrot.lane.b32.xlu0 %v872, 12
        %v1940 = vpop.permute.xlu0 %1939
        %1941 = vrot.lane.b32.xlu0 %v873, 12
        %v1942 = vpop.permute.xlu0 %1941
        %1943 = vrot.lane.b32.xlu0 %v874, 12
        %v1944 = vpop.permute.xlu0 %1943
        %1945 = vrot.lane.b32.xlu0 %v875, 12
        %v1946 = vpop.permute.xlu0 %1945
        %1947 = vrot.lane.b32.xlu0 %v876, 12
        %v1948 = vpop.permute.xlu0 %1947
        %1949 = vrot.lane.b32.xlu0 %v877, 12
        %v1950 = vpop.permute.xlu0 %1949
        %1951 = vrot.lane.b32.xlu0 %v878, 12
        %v1952 = vpop.permute.xlu0 %1951
        %1953 = vrot.lane.b32.xlu0 %v879, 12
        %v1954 = vpop.permute.xlu0 %1953
        %1955 = vrot.lane.b32.xlu0 %v880, 12
        %v1956 = vpop.permute.xlu0 %1955
        %1957 = vrot.lane.b32.xlu0 %v881, 12
        %v1958 = vpop.permute.xlu0 %1957
        %1959 = vrot.lane.b32.xlu0 %v882, 12
        %v1960 = vpop.permute.xlu0 %1959
        %1961 = vrot.lane.b32.xlu0 %v883, 12
        %v1962 = vpop.permute.xlu0 %1961
        %1963 = vrot.lane.b32.xlu0 %v884, 12
        %v1964 = vpop.permute.xlu0 %1963
        %1965 = vrot.lane.b32.xlu0 %v885, 12
        %v1966 = vpop.permute.xlu0 %1965
        %1967 = vrot.lane.b32.xlu0 %v886, 12
        %v1968 = vpop.permute.xlu0 %1967
        %1969 = vrot.lane.b32.xlu0 %v887, 12
        %v1970 = vpop.permute.xlu0 %1969
        %1971 = vrot.lane.b32.xlu0 %v888, 12
        %v1972 = vpop.permute.xlu0 %1971
        %1973 = vrot.lane.b32.xlu0 %v889, 12
        %v1974 = vpop.permute.xlu0 %1973
        %1975 = vrot.lane.b32.xlu0 %v890, 12
        %v1976 = vpop.permute.xlu0 %1975
        %1977 = vrot.lane.b32.xlu0 %v891, 12
        %v1978 = vpop.permute.xlu0 %1977
        %1979 = vrot.lane.b32.xlu0 %v892, 12
        %v1980 = vpop.permute.xlu0 %1979
        %1981 = vrot.lane.b32.xlu0 %v893, 12
        %v1982 = vpop.permute.xlu0 %1981
        %1983 = vrot.lane.b32.xlu0 %v894, 12
        %v1984 = vpop.permute.xlu0 %1983
        %1985 = vrot.lane.b32.xlu0 %v895, 12
        %v1986 = vpop.permute.xlu0 %1985
        %1987 = vrot.lane.b32.xlu0 %v896, 12
        %v1988 = vpop.permute.xlu0 %1987
        %1989 = vrot.lane.b32.xlu0 %v897, 12
        %v1990 = vpop.permute.xlu0 %1989
        %2055 = vrot.lane.b32.xlu0 %v898, 16
        %v2056 = vpop.permute.xlu0 %2055
        %2057 = vrot.lane.b32.xlu0 %v899, 16
        %v2058 = vpop.permute.xlu0 %2057
        %2059 = vrot.lane.b32.xlu0 %v900, 16
        %v2060 = vpop.permute.xlu0 %2059
        %2061 = vrot.lane.b32.xlu0 %v901, 16
        %v2062 = vpop.permute.xlu0 %2061
        %2063 = vrot.lane.b32.xlu0 %v902, 16
        %v2064 = vpop.permute.xlu0 %2063
        %2065 = vrot.lane.b32.xlu0 %v903, 16
        %v2066 = vpop.permute.xlu0 %2065
        %2067 = vrot.lane.b32.xlu0 %v904, 16
        %v2068 = vpop.permute.xlu0 %2067
        %2069 = vrot.lane.b32.xlu0 %v905, 16
        %v2070 = vpop.permute.xlu0 %2069
        %2071 = vrot.lane.b32.xlu0 %v906, 16
        %v2072 = vpop.permute.xlu0 %2071
        %2073 = vrot.lane.b32.xlu0 %v907, 16
        %v2074 = vpop.permute.xlu0 %2073
        %2075 = vrot.lane.b32.xlu0 %v908, 16
        %v2076 = vpop.permute.xlu0 %2075
        %2077 = vrot.lane.b32.xlu0 %v909, 16
        %v2078 = vpop.permute.xlu0 %2077
        %2079 = vrot.lane.b32.xlu0 %v910, 16
        %v2080 = vpop.permute.xlu0 %2079
        %2081 = vrot.lane.b32.xlu0 %v911, 16
        %v2082 = vpop.permute.xlu0 %2081
        %2083 = vrot.lane.b32.xlu0 %v912, 16
        %v2084 = vpop.permute.xlu0 %2083
        %2085 = vrot.lane.b32.xlu0 %v913, 16
        %v2086 = vpop.permute.xlu0 %2085
        %2087 = vrot.lane.b32.xlu0 %v914, 16
        %v2088 = vpop.permute.xlu0 %2087
        %2089 = vrot.lane.b32.xlu0 %v915, 16
        %v2090 = vpop.permute.xlu0 %2089
        %2091 = vrot.lane.b32.xlu0 %v916, 16
        %v2092 = vpop.permute.xlu0 %2091
        %2093 = vrot.lane.b32.xlu0 %v917, 16
        %v2094 = vpop.permute.xlu0 %2093
        %2095 = vrot.lane.b32.xlu0 %v918, 16
        %v2096 = vpop.permute.xlu0 %2095
        %2097 = vrot.lane.b32.xlu0 %v919, 16
        %v2098 = vpop.permute.xlu0 %2097
        %2099 = vrot.lane.b32.xlu0 %v920, 16
        %v2100 = vpop.permute.xlu0 %2099
        %2101 = vrot.lane.b32.xlu0 %v921, 16
        %v2102 = vpop.permute.xlu0 %2101
        %2103 = vrot.lane.b32.xlu0 %v922, 16
        %v2104 = vpop.permute.xlu0 %2103
        %2105 = vrot.lane.b32.xlu0 %v923, 16
        %v2106 = vpop.permute.xlu0 %2105
        %2107 = vrot.lane.b32.xlu0 %v924, 16
        %v2108 = vpop.permute.xlu0 %2107
        %2109 = vrot.lane.b32.xlu0 %v925, 16
        %v2110 = vpop.permute.xlu0 %2109
        %2111 = vrot.lane.b32.xlu0 %v926, 16
        %v2112 = vpop.permute.xlu0 %2111
        %2113 = vrot.lane.b32.xlu0 %v927, 16
        %v2114 = vpop.permute.xlu0 %2113
        %2115 = vrot.lane.b32.xlu0 %v928, 16
        %v2116 = vpop.permute.xlu0 %2115
        %2117 = vrot.lane.b32.xlu0 %v929, 16
        %v2118 = vpop.permute.xlu0 %2117
        %2183 = vrot.lane.b32.xlu0 %v930, 20
        %v2184 = vpop.permute.xlu0 %2183
        %2185 = vrot.lane.b32.xlu0 %v931, 20
        %v2186 = vpop.permute.xlu0 %2185
        %2187 = vrot.lane.b32.xlu0 %v932, 20
        %v2188 = vpop.permute.xlu0 %2187
        %2189 = vrot.lane.b32.xlu0 %v933, 20
        %v2190 = vpop.permute.xlu0 %2189
        %2191 = vrot.lane.b32.xlu0 %v934, 20
        %v2192 = vpop.permute.xlu0 %2191
        %2193 = vrot.lane.b32.xlu0 %v935, 20
        %v2194 = vpop.permute.xlu0 %2193
        %2195 = vrot.lane.b32.xlu0 %v936, 20
        %v2196 = vpop.permute.xlu0 %2195
        %2197 = vrot.lane.b32.xlu0 %v937, 20
        %v2198 = vpop.permute.xlu0 %2197
        %2199 = vrot.lane.b32.xlu0 %v938, 20
        %v2200 = vpop.permute.xlu0 %2199
        %2201 = vrot.lane.b32.xlu0 %v939, 20
        %v2202 = vpop.permute.xlu0 %2201
        %2203 = vrot.lane.b32.xlu0 %v940, 20
        %v2204 = vpop.permute.xlu0 %2203
        %2205 = vrot.lane.b32.xlu0 %v941, 20
        %v2206 = vpop.permute.xlu0 %2205
        %2207 = vrot.lane.b32.xlu0 %v942, 20
        %v2208 = vpop.permute.xlu0 %2207
        %2209 = vrot.lane.b32.xlu0 %v943, 20
        %v2210 = vpop.permute.xlu0 %2209
        %2211 = vrot.lane.b32.xlu0 %v944, 20
        %v2212 = vpop.permute.xlu0 %2211
        %2213 = vrot.lane.b32.xlu0 %v945, 20
        %v2214 = vpop.permute.xlu0 %2213
        %2215 = vrot.lane.b32.xlu0 %v946, 20
        %v2216 = vpop.permute.xlu0 %2215
        %2217 = vrot.lane.b32.xlu0 %v947, 20
        %v2218 = vpop.permute.xlu0 %2217
        %2219 = vrot.lane.b32.xlu0 %v948, 20
        %v2220 = vpop.permute.xlu0 %2219
        %2221 = vrot.lane.b32.xlu0 %v949, 20
        %v2222 = vpop.permute.xlu0 %2221
        %2223 = vrot.lane.b32.xlu0 %v950, 20
        %v2224 = vpop.permute.xlu0 %2223
        %2225 = vrot.lane.b32.xlu0 %v951, 20
        %v2226 = vpop.permute.xlu0 %2225
        %2227 = vrot.lane.b32.xlu0 %v952, 20
        %v2228 = vpop.permute.xlu0 %2227
        %2229 = vrot.lane.b32.xlu0 %v953, 20
        %v2230 = vpop.permute.xlu0 %2229
        %2231 = vrot.lane.b32.xlu0 %v954, 20
        %v2232 = vpop.permute.xlu0 %2231
        %2233 = vrot.lane.b32.xlu0 %v955, 20
        %v2234 = vpop.permute.xlu0 %2233
        %2235 = vrot.lane.b32.xlu0 %v956, 20
        %v2236 = vpop.permute.xlu0 %2235
        %2237 = vrot.lane.b32.xlu0 %v957, 20
        %v2238 = vpop.permute.xlu0 %2237
        %2239 = vrot.lane.b32.xlu0 %v958, 20
        %v2240 = vpop.permute.xlu0 %2239
        %2241 = vrot.lane.b32.xlu0 %v959, 20
        %v2242 = vpop.permute.xlu0 %2241
        %2243 = vrot.lane.b32.xlu0 %v960, 20
        %v2244 = vpop.permute.xlu0 %2243
        %2245 = vrot.lane.b32.xlu0 %v961, 20
        %v2246 = vpop.permute.xlu0 %2245
        %2311 = vrot.lane.b32.xlu0 %v963, 24
        %v2312 = vpop.permute.xlu0 %2311
        %2313 = vrot.lane.b32.xlu0 %v964, 24
        %v2314 = vpop.permute.xlu0 %2313
        %2315 = vrot.lane.b32.xlu0 %v965, 24
        %v2316 = vpop.permute.xlu0 %2315
        %2317 = vrot.lane.b32.xlu0 %v966, 24
        %v2318 = vpop.permute.xlu0 %2317
        %2319 = vrot.lane.b32.xlu0 %v967, 24
        %v2320 = vpop.permute.xlu0 %2319
        %2321 = vrot.lane.b32.xlu0 %v968, 24
        %v2322 = vpop.permute.xlu0 %2321
        %2323 = vrot.lane.b32.xlu0 %v969, 24
        %v2324 = vpop.permute.xlu0 %2323
        %2325 = vrot.lane.b32.xlu0 %v970, 24
        %v2326 = vpop.permute.xlu0 %2325
        %2327 = vrot.lane.b32.xlu0 %v971, 24
        %v2328 = vpop.permute.xlu0 %2327
        %2329 = vrot.lane.b32.xlu0 %v972, 24
        %v2330 = vpop.permute.xlu0 %2329
        %2331 = vrot.lane.b32.xlu0 %v973, 24
        %v2332 = vpop.permute.xlu0 %2331
        %2333 = vrot.lane.b32.xlu0 %v974, 24
        %v2334 = vpop.permute.xlu0 %2333
        %2335 = vrot.lane.b32.xlu0 %v975, 24
        %v2336 = vpop.permute.xlu0 %2335
        %2337 = vrot.lane.b32.xlu0 %v976, 24
        %v2338 = vpop.permute.xlu0 %2337
        %2339 = vrot.lane.b32.xlu0 %v977, 24
        %v2340 = vpop.permute.xlu0 %2339
        %2341 = vrot.lane.b32.xlu0 %v978, 24
        %v2342 = vpop.permute.xlu0 %2341
        %2343 = vrot.lane.b32.xlu0 %v979, 24
        %v2344 = vpop.permute.xlu0 %2343
        %2345 = vrot.lane.b32.xlu0 %v980, 24
        %v2346 = vpop.permute.xlu0 %2345
        %2347 = vrot.lane.b32.xlu0 %v981, 24
        %v2348 = vpop.permute.xlu0 %2347
        %2349 = vrot.lane.b32.xlu0 %v982, 24
        %v2350 = vpop.permute.xlu0 %2349
        %2351 = vrot.lane.b32.xlu0 %v983, 24
        %v2352 = vpop.permute.xlu0 %2351
        %2353 = vrot.lane.b32.xlu0 %v984, 24
        %v2354 = vpop.permute.xlu0 %2353
        %2355 = vrot.lane.b32.xlu0 %v985, 24
        %v2356 = vpop.permute.xlu0 %2355
        %2357 = vrot.lane.b32.xlu0 %v986, 24
        %v2358 = vpop.permute.xlu0 %2357
        %2359 = vrot.lane.b32.xlu0 %v987, 24
        %v2360 = vpop.permute.xlu0 %2359
        %2361 = vrot.lane.b32.xlu0 %v988, 24
        %v2362 = vpop.permute.xlu0 %2361
        %2363 = vrot.lane.b32.xlu0 %v989, 24
        %v2364 = vpop.permute.xlu0 %2363
        %2365 = vrot.lane.b32.xlu0 %v990, 24
        %v2366 = vpop.permute.xlu0 %2365
        %2367 = vrot.lane.b32.xlu0 %v991, 24
        %v2368 = vpop.permute.xlu0 %2367
        %2369 = vrot.lane.b32.xlu0 %v992, 24
        %v2370 = vpop.permute.xlu0 %2369
        %2371 = vrot.lane.b32.xlu0 %v993, 24
        %v2372 = vpop.permute.xlu0 %2371
        %2373 = vrot.lane.b32.xlu0 %v994, 24
        %v2374 = vpop.permute.xlu0 %2373
        %2439 = vrot.lane.b32.xlu0 %v995, 28
        %v2440 = vpop.permute.xlu0 %2439
        %2441 = vrot.lane.b32.xlu0 %v996, 28
        %v2442 = vpop.permute.xlu0 %2441
        %2443 = vrot.lane.b32.xlu0 %v997, 28
        %v2444 = vpop.permute.xlu0 %2443
        %2445 = vrot.lane.b32.xlu0 %v998, 28
        %v2446 = vpop.permute.xlu0 %2445
        %2447 = vrot.lane.b32.xlu0 %v999, 28
        %v2448 = vpop.permute.xlu0 %2447
        %2449 = vrot.lane.b32.xlu0 %v1000, 28
        %v2450 = vpop.permute.xlu0 %2449
        %2451 = vrot.lane.b32.xlu0 %v1001, 28
        %v2452 = vpop.permute.xlu0 %2451
        %2453 = vrot.lane.b32.xlu0 %v1002, 28
        %v2454 = vpop.permute.xlu0 %2453
        %2455 = vrot.lane.b32.xlu0 %v1003, 28
        %v2456 = vpop.permute.xlu0 %2455
        %2457 = vrot.lane.b32.xlu0 %v1004, 28
        %v2458 = vpop.permute.xlu0 %2457
        %2459 = vrot.lane.b32.xlu0 %v1005, 28
        %v2460 = vpop.permute.xlu0 %2459
        %2461 = vrot.lane.b32.xlu0 %v1006, 28
        %v2462 = vpop.permute.xlu0 %2461
        %2463 = vrot.lane.b32.xlu0 %v1007, 28
        %v2464 = vpop.permute.xlu0 %2463
        %2465 = vrot.lane.b32.xlu0 %v1008, 28
        %v2466 = vpop.permute.xlu0 %2465
        %2467 = vrot.lane.b32.xlu0 %v1009, 28
        %v2468 = vpop.permute.xlu0 %2467
        %2469 = vrot.lane.b32.xlu0 %v1010, 28
        %v2470 = vpop.permute.xlu0 %2469
        %2471 = vrot.lane.b32.xlu0 %v1011, 28
        %v2472 = vpop.permute.xlu0 %2471
        %2473 = vrot.lane.b32.xlu0 %v1012, 28
        %v2474 = vpop.permute.xlu0 %2473
        %2475 = vrot.lane.b32.xlu0 %v1013, 28
        %v2476 = vpop.permute.xlu0 %2475
        %2477 = vrot.lane.b32.xlu0 %v1014, 28
        %v2478 = vpop.permute.xlu0 %2477
        %2479 = vrot.lane.b32.xlu0 %v1015, 28
        %v2480 = vpop.permute.xlu0 %2479
        %2481 = vrot.lane.b32.xlu0 %v1016, 28
        %v2482 = vpop.permute.xlu0 %2481
        %2483 = vrot.lane.b32.xlu0 %v1017, 28
        %v2484 = vpop.permute.xlu0 %2483
        %2485 = vrot.lane.b32.xlu0 %v1018, 28
        %v2486 = vpop.permute.xlu0 %2485
        %2487 = vrot.lane.b32.xlu0 %v1019, 28
        %v2488 = vpop.permute.xlu0 %2487
        %2489 = vrot.lane.b32.xlu0 %v1020, 28
        %v2490 = vpop.permute.xlu0 %2489
        %2491 = vrot.lane.b32.xlu0 %v1021, 28
        %v2492 = vpop.permute.xlu0 %2491
        %2493 = vrot.lane.b32.xlu0 %v1022, 28
        %v2494 = vpop.permute.xlu0 %2493
        %2495 = vrot.lane.b32.xlu0 %v1023, 28
        %v2496 = vpop.permute.xlu0 %2495
        %2497 = vrot.lane.b32.xlu0 %v1024, 28
        %v2498 = vpop.permute.xlu0 %2497
        %2499 = vrot.lane.b32.xlu0 %v1025, 28
        %v2500 = vpop.permute.xlu0 %2499
        %2501 = vrot.lane.b32.xlu0 %v1026, 28
        %v2502 = vpop.permute.xlu0 %2501
        %2567 = vrot.lane.b32.xlu0 %v1027, 32
        %v2568 = vpop.permute.xlu0 %2567
        %2569 = vrot.lane.b32.xlu0 %v1028, 32
        %v2570 = vpop.permute.xlu0 %2569
        %2571 = vrot.lane.b32.xlu0 %v1029, 32
        %v2572 = vpop.permute.xlu0 %2571
        %2573 = vrot.lane.b32.xlu0 %v1030, 32
        %v2574 = vpop.permute.xlu0 %2573
        %2575 = vrot.lane.b32.xlu0 %v1031, 32
        %v2576 = vpop.permute.xlu0 %2575
        %2577 = vrot.lane.b32.xlu0 %v1032, 32
        %v2578 = vpop.permute.xlu0 %2577
        %2579 = vrot.lane.b32.xlu0 %v1033, 32
        %v2580 = vpop.permute.xlu0 %2579
        %2581 = vrot.lane.b32.xlu0 %v1034, 32
        %v2582 = vpop.permute.xlu0 %2581
        %2583 = vrot.lane.b32.xlu0 %v1035, 32
        %v2584 = vpop.permute.xlu0 %2583
        %2585 = vrot.lane.b32.xlu0 %v1036, 32
        %v2586 = vpop.permute.xlu0 %2585
        %2587 = vrot.lane.b32.xlu0 %v1037, 32
        %v2588 = vpop.permute.xlu0 %2587
        %2589 = vrot.lane.b32.xlu0 %v1038, 32
        %v2590 = vpop.permute.xlu0 %2589
        %2591 = vrot.lane.b32.xlu0 %v1039, 32
        %v2592 = vpop.permute.xlu0 %2591
        %2593 = vrot.lane.b32.xlu0 %v1040, 32
        %v2594 = vpop.permute.xlu0 %2593
        %2595 = vrot.lane.b32.xlu0 %v1041, 32
        %v2596 = vpop.permute.xlu0 %2595
        %2597 = vrot.lane.b32.xlu0 %v1042, 32
        %v2598 = vpop.permute.xlu0 %2597
        %2599 = vrot.lane.b32.xlu0 %v1043, 32
        %v2600 = vpop.permute.xlu0 %2599
        %2601 = vrot.lane.b32.xlu0 %v1044, 32
        %v2602 = vpop.permute.xlu0 %2601
        %2603 = vrot.lane.b32.xlu0 %v1045, 32
        %v2604 = vpop.permute.xlu0 %2603
        %2605 = vrot.lane.b32.xlu0 %v1046, 32
        %v2606 = vpop.permute.xlu0 %2605
        %2607 = vrot.lane.b32.xlu0 %v1047, 32
        %v2608 = vpop.permute.xlu0 %2607
        %2609 = vrot.lane.b32.xlu0 %v1048, 32
        %v2610 = vpop.permute.xlu0 %2609
        %2611 = vrot.lane.b32.xlu0 %v1049, 32
        %v2612 = vpop.permute.xlu0 %2611
        %2613 = vrot.lane.b32.xlu0 %v1050, 32
        %v2614 = vpop.permute.xlu0 %2613
        %2615 = vrot.lane.b32.xlu0 %v1051, 32
        %v2616 = vpop.permute.xlu0 %2615
        %2617 = vrot.lane.b32.xlu0 %v1052, 32
        %v2618 = vpop.permute.xlu0 %2617
        %2619 = vrot.lane.b32.xlu0 %v1053, 32
        %v2620 = vpop.permute.xlu0 %2619
        %2621 = vrot.lane.b32.xlu0 %v1054, 32
        %v2622 = vpop.permute.xlu0 %2621
        %2623 = vrot.lane.b32.xlu0 %v1055, 32
        %v2624 = vpop.permute.xlu0 %2623
        %2625 = vrot.lane.b32.xlu0 %v1056, 32
        %v2626 = vpop.permute.xlu0 %2625
        %2627 = vrot.lane.b32.xlu0 %v1057, 32
        %v2628 = vpop.permute.xlu0 %2627
        %2629 = vrot.lane.b32.xlu0 %v1058, 32
        %v2630 = vpop.permute.xlu0 %2629
        %2695 = vrot.lane.b32.xlu0 %v1059, 36
        %v2696 = vpop.permute.xlu0 %2695
        %2697 = vrot.lane.b32.xlu0 %v1060, 36
        %v2698 = vpop.permute.xlu0 %2697
        %2699 = vrot.lane.b32.xlu0 %v1061, 36
        %v2700 = vpop.permute.xlu0 %2699
        %2701 = vrot.lane.b32.xlu0 %v1062, 36
        %v2702 = vpop.permute.xlu0 %2701
        %2703 = vrot.lane.b32.xlu0 %v1063, 36
        %v2704 = vpop.permute.xlu0 %2703
        %2705 = vrot.lane.b32.xlu0 %v1064, 36
        %v2706 = vpop.permute.xlu0 %2705
        %2707 = vrot.lane.b32.xlu0 %v1065, 36
        %v2708 = vpop.permute.xlu0 %2707
        %2709 = vrot.lane.b32.xlu0 %v1066, 36
        %v2710 = vpop.permute.xlu0 %2709
        %2711 = vrot.lane.b32.xlu0 %v1067, 36
        %v2712 = vpop.permute.xlu0 %2711
        %2713 = vrot.lane.b32.xlu0 %v1068, 36
        %v2714 = vpop.permute.xlu0 %2713
        %2715 = vrot.lane.b32.xlu0 %v1069, 36
        %v2716 = vpop.permute.xlu0 %2715
        %2717 = vrot.lane.b32.xlu0 %v1070, 36
        %v2718 = vpop.permute.xlu0 %2717
        %2719 = vrot.lane.b32.xlu0 %v1071, 36
        %v2720 = vpop.permute.xlu0 %2719
        %2721 = vrot.lane.b32.xlu0 %v1072, 36
        %v2722 = vpop.permute.xlu0 %2721
        %2723 = vrot.lane.b32.xlu0 %v1073, 36
        %v2724 = vpop.permute.xlu0 %2723
        %2725 = vrot.lane.b32.xlu0 %v1074, 36
        %v2726 = vpop.permute.xlu0 %2725
        %2727 = vrot.lane.b32.xlu0 %v1075, 36
        %v2728 = vpop.permute.xlu0 %2727
        %2729 = vrot.lane.b32.xlu0 %v1076, 36
        %v2730 = vpop.permute.xlu0 %2729
        %2731 = vrot.lane.b32.xlu0 %v1077, 36
        %v2732 = vpop.permute.xlu0 %2731
        %2733 = vrot.lane.b32.xlu0 %v1078, 36
        %v2734 = vpop.permute.xlu0 %2733
        %2735 = vrot.lane.b32.xlu0 %v1079, 36
        %v2736 = vpop.permute.xlu0 %2735
        %2737 = vrot.lane.b32.xlu0 %v1080, 36
        %v2738 = vpop.permute.xlu0 %2737
        %2739 = vrot.lane.b32.xlu0 %v1081, 36
        %v2740 = vpop.permute.xlu0 %2739
        %2741 = vrot.lane.b32.xlu0 %v1082, 36
        %v2742 = vpop.permute.xlu0 %2741
        %2743 = vrot.lane.b32.xlu0 %v1083, 36
        %v2744 = vpop.permute.xlu0 %2743
        %2745 = vrot.lane.b32.xlu0 %v1084, 36
        %v2746 = vpop.permute.xlu0 %2745
        %2747 = vrot.lane.b32.xlu0 %v1085, 36
        %v2748 = vpop.permute.xlu0 %2747
        %2749 = vrot.lane.b32.xlu0 %v1086, 36
        %v2750 = vpop.permute.xlu0 %2749
        %2751 = vrot.lane.b32.xlu0 %v1087, 36
        %v2752 = vpop.permute.xlu0 %2751
        %2753 = vrot.lane.b32.xlu0 %v1088, 36
        %v2754 = vpop.permute.xlu0 %2753
        %2755 = vrot.lane.b32.xlu0 %v1089, 36
        %v2756 = vpop.permute.xlu0 %2755
        %2757 = vrot.lane.b32.xlu0 %v1090, 36
        %v2758 = vpop.permute.xlu0 %2757
        %2823 = vrot.lane.b32.xlu0 %v1091, 40
        %v2824 = vpop.permute.xlu0 %2823
        %2825 = vrot.lane.b32.xlu0 %v1092, 40
        %v2826 = vpop.permute.xlu0 %2825
        %2827 = vrot.lane.b32.xlu0 %v1093, 40
        %v2828 = vpop.permute.xlu0 %2827
        %2829 = vrot.lane.b32.xlu0 %v1094, 40
        %v2830 = vpop.permute.xlu0 %2829
        %2831 = vrot.lane.b32.xlu0 %v1095, 40
        %v2832 = vpop.permute.xlu0 %2831
        %2833 = vrot.lane.b32.xlu0 %v1096, 40
        %v2834 = vpop.permute.xlu0 %2833
        %2835 = vrot.lane.b32.xlu0 %v1097, 40
        %v2836 = vpop.permute.xlu0 %2835
        %2837 = vrot.lane.b32.xlu0 %v1098, 40
        %v2838 = vpop.permute.xlu0 %2837
        %2839 = vrot.lane.b32.xlu0 %v1099, 40
        %v2840 = vpop.permute.xlu0 %2839
        %2841 = vrot.lane.b32.xlu0 %v1100, 40
        %v2842 = vpop.permute.xlu0 %2841
        %2843 = vrot.lane.b32.xlu0 %v1101, 40
        %v2844 = vpop.permute.xlu0 %2843
        %2845 = vrot.lane.b32.xlu0 %v1102, 40
        %v2846 = vpop.permute.xlu0 %2845
        %2847 = vrot.lane.b32.xlu0 %v1103, 40
        %v2848 = vpop.permute.xlu0 %2847
        %2849 = vrot.lane.b32.xlu0 %v1104, 40
        %v2850 = vpop.permute.xlu0 %2849
        %2851 = vrot.lane.b32.xlu0 %v1105, 40
        %v2852 = vpop.permute.xlu0 %2851
        %2853 = vrot.lane.b32.xlu0 %v1106, 40
        %v2854 = vpop.permute.xlu0 %2853
        %2855 = vrot.lane.b32.xlu0 %v1107, 40
        %v2856 = vpop.permute.xlu0 %2855
        %2857 = vrot.lane.b32.xlu0 %v1108, 40
        %v2858 = vpop.permute.xlu0 %2857
        %2859 = vrot.lane.b32.xlu0 %v1109, 40
        %v2860 = vpop.permute.xlu0 %2859
        %2861 = vrot.lane.b32.xlu0 %v1110, 40
        %v2862 = vpop.permute.xlu0 %2861
        %2863 = vrot.lane.b32.xlu0 %v1111, 40
        %v2864 = vpop.permute.xlu0 %2863
        %2865 = vrot.lane.b32.xlu0 %v1112, 40
        %v2866 = vpop.permute.xlu0 %2865
        %2867 = vrot.lane.b32.xlu0 %v1113, 40
        %v2868 = vpop.permute.xlu0 %2867
        %2869 = vrot.lane.b32.xlu0 %v1114, 40
        %v2870 = vpop.permute.xlu0 %2869
        %2871 = vrot.lane.b32.xlu0 %v1115, 40
        %v2872 = vpop.permute.xlu0 %2871
        %2873 = vrot.lane.b32.xlu0 %v1116, 40
        %v2874 = vpop.permute.xlu0 %2873
        %2875 = vrot.lane.b32.xlu0 %v1117, 40
        %v2876 = vpop.permute.xlu0 %2875
        %2877 = vrot.lane.b32.xlu0 %v1118, 40
        %v2878 = vpop.permute.xlu0 %2877
        %2879 = vrot.lane.b32.xlu0 %v1119, 40
        %v2880 = vpop.permute.xlu0 %2879
        %2881 = vrot.lane.b32.xlu0 %v1120, 40
        %v2882 = vpop.permute.xlu0 %2881
        %2883 = vrot.lane.b32.xlu0 %v1121, 40
        %v2884 = vpop.permute.xlu0 %2883
        %2885 = vrot.lane.b32.xlu0 %v1122, 40
        %v2886 = vpop.permute.xlu0 %2885
        %2951 = vrot.lane.b32.xlu0 %v1123, 44
        %v2952 = vpop.permute.xlu0 %2951
        %2953 = vrot.lane.b32.xlu0 %v1124, 44
        %v2954 = vpop.permute.xlu0 %2953
        %2955 = vrot.lane.b32.xlu0 %v1125, 44
        %v2956 = vpop.permute.xlu0 %2955
        %2957 = vrot.lane.b32.xlu0 %v1126, 44
        %v2958 = vpop.permute.xlu0 %2957
        %2959 = vrot.lane.b32.xlu0 %v1127, 44
        %v2960 = vpop.permute.xlu0 %2959
        %2961 = vrot.lane.b32.xlu0 %v1128, 44
        %v2962 = vpop.permute.xlu0 %2961
        %2963 = vrot.lane.b32.xlu0 %v1129, 44
        %v2964 = vpop.permute.xlu0 %2963
        %2965 = vrot.lane.b32.xlu0 %v1130, 44
        %v2966 = vpop.permute.xlu0 %2965
        %2967 = vrot.lane.b32.xlu0 %v1131, 44
        %v2968 = vpop.permute.xlu0 %2967
        %2969 = vrot.lane.b32.xlu0 %v1132, 44
        %v2970 = vpop.permute.xlu0 %2969
        %2971 = vrot.lane.b32.xlu0 %v1133, 44
        %v2972 = vpop.permute.xlu0 %2971
        %2973 = vrot.lane.b32.xlu0 %v1134, 44
        %v2974 = vpop.permute.xlu0 %2973
        %2975 = vrot.lane.b32.xlu0 %v1135, 44
        %v2976 = vpop.permute.xlu0 %2975
        %2977 = vrot.lane.b32.xlu0 %v1136, 44
        %v2978 = vpop.permute.xlu0 %2977
        %2979 = vrot.lane.b32.xlu0 %v1137, 44
        %v2980 = vpop.permute.xlu0 %2979
        %2981 = vrot.lane.b32.xlu0 %v1138, 44
        %v2982 = vpop.permute.xlu0 %2981
        %2983 = vrot.lane.b32.xlu0 %v1139, 44
        %v2984 = vpop.permute.xlu0 %2983
        %2985 = vrot.lane.b32.xlu0 %v1140, 44
        %v2986 = vpop.permute.xlu0 %2985
        %2987 = vrot.lane.b32.xlu0 %v1141, 44
        %v2988 = vpop.permute.xlu0 %2987
        %2989 = vrot.lane.b32.xlu0 %v1142, 44
        %v2990 = vpop.permute.xlu0 %2989
        %2991 = vrot.lane.b32.xlu0 %v1143, 44
        %v2992 = vpop.permute.xlu0 %2991
        %2993 = vrot.lane.b32.xlu0 %v1144, 44
        %v2994 = vpop.permute.xlu0 %2993
        %2995 = vrot.lane.b32.xlu0 %v1145, 44
        %v2996 = vpop.permute.xlu0 %2995
        %2997 = vrot.lane.b32.xlu0 %v1146, 44
        %v2998 = vpop.permute.xlu0 %2997
        %2999 = vrot.lane.b32.xlu0 %v1147, 44
        %v3000 = vpop.permute.xlu0 %2999
        %3001 = vrot.lane.b32.xlu0 %v1148, 44
        %v3002 = vpop.permute.xlu0 %3001
        %3003 = vrot.lane.b32.xlu0 %v1149, 44
        %v3004 = vpop.permute.xlu0 %3003
        %3005 = vrot.lane.b32.xlu0 %v1150, 44
        %v3006 = vpop.permute.xlu0 %3005
        %3007 = vrot.lane.b32.xlu0 %v1151, 44
        %v3008 = vpop.permute.xlu0 %3007
        %3009 = vrot.lane.b32.xlu0 %v1152, 44
        %v3010 = vpop.permute.xlu0 %3009
        %3011 = vrot.lane.b32.xlu0 %v1153, 44
        %v3012 = vpop.permute.xlu0 %3011
        %3013 = vrot.lane.b32.xlu0 %v1154, 44
        %v3014 = vpop.permute.xlu0 %3013
        %3079 = vrot.lane.b32.xlu0 %v1155, 48
        %v3080 = vpop.permute.xlu0 %3079
        %3081 = vrot.lane.b32.xlu0 %v1156, 48
        %v3082 = vpop.permute.xlu0 %3081
        %3083 = vrot.lane.b32.xlu0 %v1157, 48
        %v3084 = vpop.permute.xlu0 %3083
        %3085 = vrot.lane.b32.xlu0 %v1158, 48
        %v3086 = vpop.permute.xlu0 %3085
        %3087 = vrot.lane.b32.xlu0 %v1159, 48
        %v3088 = vpop.permute.xlu0 %3087
        %3089 = vrot.lane.b32.xlu0 %v1160, 48
        %v3090 = vpop.permute.xlu0 %3089
        %3091 = vrot.lane.b32.xlu0 %v1161, 48
        %v3092 = vpop.permute.xlu0 %3091
        %3093 = vrot.lane.b32.xlu0 %v1162, 48
        %v3094 = vpop.permute.xlu0 %3093
        %3095 = vrot.lane.b32.xlu0 %v1163, 48
        %v3096 = vpop.permute.xlu0 %3095
        %3097 = vrot.lane.b32.xlu0 %v1164, 48
        %v3098 = vpop.permute.xlu0 %3097
        %3099 = vrot.lane.b32.xlu0 %v1165, 48
        %v3100 = vpop.permute.xlu0 %3099
        %3101 = vrot.lane.b32.xlu0 %v1166, 48
        %v3102 = vpop.permute.xlu0 %3101
        %3103 = vrot.lane.b32.xlu0 %v1167, 48
        %v3104 = vpop.permute.xlu0 %3103
        %3105 = vrot.lane.b32.xlu0 %v1168, 48
        %v3106 = vpop.permute.xlu0 %3105
        %3107 = vrot.lane.b32.xlu0 %v1169, 48
        %v3108 = vpop.permute.xlu0 %3107
        %3109 = vrot.lane.b32.xlu0 %v1170, 48
        %v3110 = vpop.permute.xlu0 %3109
        %3111 = vrot.lane.b32.xlu0 %v1171, 48
        %v3112 = vpop.permute.xlu0 %3111
        %3113 = vrot.lane.b32.xlu0 %v1172, 48
        %v3114 = vpop.permute.xlu0 %3113
        %3115 = vrot.lane.b32.xlu0 %v1173, 48
        %v3116 = vpop.permute.xlu0 %3115
        %3117 = vrot.lane.b32.xlu0 %v1174, 48
        %v3118 = vpop.permute.xlu0 %3117
        %3119 = vrot.lane.b32.xlu0 %v1175, 48
        %v3120 = vpop.permute.xlu0 %3119
        %3121 = vrot.lane.b32.xlu0 %v1176, 48
        %v3122 = vpop.permute.xlu0 %3121
        %3123 = vrot.lane.b32.xlu0 %v1177, 48
        %v3124 = vpop.permute.xlu0 %3123
        %3125 = vrot.lane.b32.xlu0 %v1178, 48
        %v3126 = vpop.permute.xlu0 %3125
        %3127 = vrot.lane.b32.xlu0 %v1179, 48
        %v3128 = vpop.permute.xlu0 %3127
        %3129 = vrot.lane.b32.xlu0 %v1180, 48
        %v3130 = vpop.permute.xlu0 %3129
        %3131 = vrot.lane.b32.xlu0 %v1181, 48
        %v3132 = vpop.permute.xlu0 %3131
        %3133 = vrot.lane.b32.xlu0 %v1182, 48
        %v3134 = vpop.permute.xlu0 %3133
        %3135 = vrot.lane.b32.xlu0 %v1183, 48
        %v3136 = vpop.permute.xlu0 %3135
        %3137 = vrot.lane.b32.xlu0 %v1184, 48
        %v3138 = vpop.permute.xlu0 %3137
        %3139 = vrot.lane.b32.xlu0 %v1185, 48
        %v3140 = vpop.permute.xlu0 %3139
        %3141 = vrot.lane.b32.xlu0 %v1186, 48
        %v3142 = vpop.permute.xlu0 %3141
        %3207 = vrot.lane.b32.xlu0 %v1187, 52
        %v3208 = vpop.permute.xlu0 %3207
        %3209 = vrot.lane.b32.xlu0 %v1188, 52
        %v3210 = vpop.permute.xlu0 %3209
        %3211 = vrot.lane.b32.xlu0 %v1189, 52
        %v3212 = vpop.permute.xlu0 %3211
        %3213 = vrot.lane.b32.xlu0 %v1190, 52
        %v3214 = vpop.permute.xlu0 %3213
        %3215 = vrot.lane.b32.xlu0 %v1191, 52
        %v3216 = vpop.permute.xlu0 %3215
        %3217 = vrot.lane.b32.xlu0 %v1192, 52
        %v3218 = vpop.permute.xlu0 %3217
        %3219 = vrot.lane.b32.xlu0 %v1193, 52
        %v3220 = vpop.permute.xlu0 %3219
        %3221 = vrot.lane.b32.xlu0 %v1194, 52
        %v3222 = vpop.permute.xlu0 %3221
        %3223 = vrot.lane.b32.xlu0 %v1195, 52
        %v3224 = vpop.permute.xlu0 %3223
        %3225 = vrot.lane.b32.xlu0 %v1196, 52
        %v3226 = vpop.permute.xlu0 %3225
        %3227 = vrot.lane.b32.xlu0 %v1197, 52
        %v3228 = vpop.permute.xlu0 %3227
        %3229 = vrot.lane.b32.xlu0 %v1198, 52
        %v3230 = vpop.permute.xlu0 %3229
        %3231 = vrot.lane.b32.xlu0 %v1199, 52
        %v3232 = vpop.permute.xlu0 %3231
        %3233 = vrot.lane.b32.xlu0 %v1200, 52
        %v3234 = vpop.permute.xlu0 %3233
        %3235 = vrot.lane.b32.xlu0 %v1201, 52
        %v3236 = vpop.permute.xlu0 %3235
        %3237 = vrot.lane.b32.xlu0 %v1202, 52
        %v3238 = vpop.permute.xlu0 %3237
        %3239 = vrot.lane.b32.xlu0 %v1203, 52
        %v3240 = vpop.permute.xlu0 %3239
        %3241 = vrot.lane.b32.xlu0 %v1204, 52
        %v3242 = vpop.permute.xlu0 %3241
        %3243 = vrot.lane.b32.xlu0 %v1205, 52
        %v3244 = vpop.permute.xlu0 %3243
        %3245 = vrot.lane.b32.xlu0 %v1206, 52
        %v3246 = vpop.permute.xlu0 %3245
        %3247 = vrot.lane.b32.xlu0 %v1207, 52
        %v3248 = vpop.permute.xlu0 %3247
        %3249 = vrot.lane.b32.xlu0 %v1208, 52
        %v3250 = vpop.permute.xlu0 %3249
        %3251 = vrot.lane.b32.xlu0 %v1209, 52
        %v3252 = vpop.permute.xlu0 %3251
        %3253 = vrot.lane.b32.xlu0 %v1210, 52
        %v3254 = vpop.permute.xlu0 %3253
        %3255 = vrot.lane.b32.xlu0 %v1211, 52
        %v3256 = vpop.permute.xlu0 %3255
        %3257 = vrot.lane.b32.xlu0 %v1212, 52
        %v3258 = vpop.permute.xlu0 %3257
        %3259 = vrot.lane.b32.xlu0 %v1213, 52
        %v3260 = vpop.permute.xlu0 %3259
        %3261 = vrot.lane.b32.xlu0 %v1214, 52
        %v3262 = vpop.permute.xlu0 %3261
        %3263 = vrot.lane.b32.xlu0 %v1215, 52
        %v3264 = vpop.permute.xlu0 %3263
        %3265 = vrot.lane.b32.xlu0 %v1216, 52
        %v3266 = vpop.permute.xlu0 %3265
        %3267 = vrot.lane.b32.xlu0 %v1217, 52
        %v3268 = vpop.permute.xlu0 %3267
        %3269 = vrot.lane.b32.xlu0 %v1218, 52
        %v3270 = vpop.permute.xlu0 %3269
        %3335 = vrot.lane.b32.xlu0 %v1219, 56
        %v3336 = vpop.permute.xlu0 %3335
        %3337 = vrot.lane.b32.xlu0 %v1220, 56
        %v3338 = vpop.permute.xlu0 %3337
        %3339 = vrot.lane.b32.xlu0 %v1221, 56
        %v3340 = vpop.permute.xlu0 %3339
        %3341 = vrot.lane.b32.xlu0 %v1222, 56
        %v3342 = vpop.permute.xlu0 %3341
        %3343 = vrot.lane.b32.xlu0 %v1223, 56
        %v3344 = vpop.permute.xlu0 %3343
        %3345 = vrot.lane.b32.xlu0 %v1224, 56
        %v3346 = vpop.permute.xlu0 %3345
        %3347 = vrot.lane.b32.xlu0 %v1225, 56
        %v3348 = vpop.permute.xlu0 %3347
        %3349 = vrot.lane.b32.xlu0 %v1226, 56
        %v3350 = vpop.permute.xlu0 %3349
        %3351 = vrot.lane.b32.xlu0 %v1227, 56
        %v3352 = vpop.permute.xlu0 %3351
        %3353 = vrot.lane.b32.xlu0 %v1228, 56
        %v3354 = vpop.permute.xlu0 %3353
        %3355 = vrot.lane.b32.xlu0 %v1229, 56
        %v3356 = vpop.permute.xlu0 %3355
        %3357 = vrot.lane.b32.xlu0 %v1230, 56
        %v3358 = vpop.permute.xlu0 %3357
        %3359 = vrot.lane.b32.xlu0 %v1231, 56
        %v3360 = vpop.permute.xlu0 %3359
        %3361 = vrot.lane.b32.xlu0 %v1232, 56
        %v3362 = vpop.permute.xlu0 %3361
        %3363 = vrot.lane.b32.xlu0 %v1233, 56
        %v3364 = vpop.permute.xlu0 %3363
        %3365 = vrot.lane.b32.xlu0 %v1234, 56
        %v3366 = vpop.permute.xlu0 %3365
        %3367 = vrot.lane.b32.xlu0 %v1235, 56
        %v3368 = vpop.permute.xlu0 %3367
        %3369 = vrot.lane.b32.xlu0 %v1236, 56
        %v3370 = vpop.permute.xlu0 %3369
        %3371 = vrot.lane.b32.xlu0 %v1237, 56
        %v3372 = vpop.permute.xlu0 %3371
        %3373 = vrot.lane.b32.xlu0 %v1238, 56
        %v3374 = vpop.permute.xlu0 %3373
        %3375 = vrot.lane.b32.xlu0 %v1239, 56
        %v3376 = vpop.permute.xlu0 %3375
        %3377 = vrot.lane.b32.xlu0 %v1240, 56
        %v3378 = vpop.permute.xlu0 %3377
        %3379 = vrot.lane.b32.xlu0 %v1241, 56
        %v3380 = vpop.permute.xlu0 %3379
        %3381 = vrot.lane.b32.xlu0 %v1242, 56
        %v3382 = vpop.permute.xlu0 %3381
        %3383 = vrot.lane.b32.xlu0 %v1243, 56
        %v3384 = vpop.permute.xlu0 %3383
        %3385 = vrot.lane.b32.xlu0 %v1244, 56
        %v3386 = vpop.permute.xlu0 %3385
        %3387 = vrot.lane.b32.xlu0 %v1245, 56
        %v3388 = vpop.permute.xlu0 %3387
        %3389 = vrot.lane.b32.xlu0 %v1246, 56
        %v3390 = vpop.permute.xlu0 %3389
        %3391 = vrot.lane.b32.xlu0 %v1247, 56
        %v3392 = vpop.permute.xlu0 %3391
        %3393 = vrot.lane.b32.xlu0 %v1248, 56
        %v3394 = vpop.permute.xlu0 %3393
        %3395 = vrot.lane.b32.xlu0 %v1249, 56
        %v3396 = vpop.permute.xlu0 %3395
        %3397 = vrot.lane.b32.xlu0 %v1250, 56
        %v3398 = vpop.permute.xlu0 %3397
        %3463 = vrot.lane.b32.xlu0 %v1252, 60
        %v3464 = vpop.permute.xlu0 %3463
        %3465 = vrot.lane.b32.xlu0 %v1253, 60
        %v3466 = vpop.permute.xlu0 %3465
        %3467 = vrot.lane.b32.xlu0 %v1254, 60
        %v3468 = vpop.permute.xlu0 %3467
        %3469 = vrot.lane.b32.xlu0 %v1255, 60
        %v3470 = vpop.permute.xlu0 %3469
        %3471 = vrot.lane.b32.xlu0 %v1256, 60
        %v3472 = vpop.permute.xlu0 %3471
        %3473 = vrot.lane.b32.xlu0 %v1257, 60
        %v3474 = vpop.permute.xlu0 %3473
        %3475 = vrot.lane.b32.xlu0 %v1258, 60
        %v3476 = vpop.permute.xlu0 %3475
        %3477 = vrot.lane.b32.xlu0 %v1259, 60
        %v3478 = vpop.permute.xlu0 %3477
        %3479 = vrot.lane.b32.xlu0 %v1260, 60
        %v3480 = vpop.permute.xlu0 %3479
        %3481 = vrot.lane.b32.xlu0 %v1261, 60
        %v3482 = vpop.permute.xlu0 %3481
        %3483 = vrot.lane.b32.xlu0 %v1262, 60
        %v3484 = vpop.permute.xlu0 %3483
        %3485 = vrot.lane.b32.xlu0 %v1263, 60
        %v3486 = vpop.permute.xlu0 %3485
        %3487 = vrot.lane.b32.xlu0 %v1264, 60
        %v3488 = vpop.permute.xlu0 %3487
        %3489 = vrot.lane.b32.xlu0 %v1265, 60
        %v3490 = vpop.permute.xlu0 %3489
        %3491 = vrot.lane.b32.xlu0 %v1266, 60
        %v3492 = vpop.permute.xlu0 %3491
        %3493 = vrot.lane.b32.xlu0 %v1267, 60
        %v3494 = vpop.permute.xlu0 %3493
        %3495 = vrot.lane.b32.xlu0 %v1268, 60
        %v3496 = vpop.permute.xlu0 %3495
        %3497 = vrot.lane.b32.xlu0 %v1269, 60
        %v3498 = vpop.permute.xlu0 %3497
        %3499 = vrot.lane.b32.xlu0 %v1270, 60
        %v3500 = vpop.permute.xlu0 %3499
        %3501 = vrot.lane.b32.xlu0 %v1271, 60
        %v3502 = vpop.permute.xlu0 %3501
        %3503 = vrot.lane.b32.xlu0 %v1272, 60
        %v3504 = vpop.permute.xlu0 %3503
        %3505 = vrot.lane.b32.xlu0 %v1273, 60
        %v3506 = vpop.permute.xlu0 %3505
        %3507 = vrot.lane.b32.xlu0 %v1274, 60
        %v3508 = vpop.permute.xlu0 %3507
        %3509 = vrot.lane.b32.xlu0 %v1275, 60
        %v3510 = vpop.permute.xlu0 %3509
        %3511 = vrot.lane.b32.xlu0 %v1276, 60
        %v3512 = vpop.permute.xlu0 %3511
        %3513 = vrot.lane.b32.xlu0 %v1277, 60
        %v3514 = vpop.permute.xlu0 %3513
        %3515 = vrot.lane.b32.xlu0 %v1278, 60
        %v3516 = vpop.permute.xlu0 %3515
        %3517 = vrot.lane.b32.xlu0 %v1279, 60
        %v3518 = vpop.permute.xlu0 %3517
        %3519 = vrot.lane.b32.xlu0 %v1280, 60
        %v3520 = vpop.permute.xlu0 %3519
        %3521 = vrot.lane.b32.xlu0 %v1281, 60
        %v3522 = vpop.permute.xlu0 %3521
        %3523 = vrot.lane.b32.xlu0 %v1282, 60
        %v3524 = vpop.permute.xlu0 %3523
        %3525 = vrot.lane.b32.xlu0 %v1283, 60
        %v3526 = vpop.permute.xlu0 %3525
        %v3559 = vsel %vm610, %v769, %v1672
        %v3560 = vsel %vm610, %v770, %v1674
        %v3561 = vsel %vm610, %v771, %v1676
        %v3562 = vsel %vm610, %v772, %v1678
        %v3563 = vsel %vm610, %v773, %v1680
        %v3564 = vsel %vm610, %v774, %v1682
        %v3565 = vsel %vm610, %v775, %v1684
        %v3566 = vsel %vm610, %v776, %v1686
        %v3567 = vsel %vm610, %v777, %v1688
        %v3568 = vsel %vm610, %v778, %v1690
        %v3569 = vsel %vm610, %v779, %v1692
        %v3570 = vsel %vm610, %v780, %v1694
        %v3571 = vsel %vm610, %v781, %v1696
        %v3572 = vsel %vm610, %v782, %v1698
        %v3573 = vsel %vm610, %v783, %v1700
        %v3574 = vsel %vm610, %v784, %v1702
        %v3575 = vsel %vm610, %v785, %v1704
        %v3576 = vsel %vm610, %v786, %v1706
        %v3577 = vsel %vm610, %v787, %v1708
        %v3578 = vsel %vm610, %v788, %v1710
        %v3579 = vsel %vm610, %v789, %v1712
        %v3580 = vsel %vm610, %v790, %v1714
        %v3581 = vsel %vm610, %v791, %v1716
        %v3582 = vsel %vm610, %v792, %v1718
        %v3583 = vsel %vm610, %v793, %v1720
        %v3584 = vsel %vm610, %v794, %v1722
        %v3585 = vsel %vm610, %v795, %v1724
        %v3586 = vsel %vm610, %v796, %v1726
        %v3587 = vsel %vm610, %v797, %v1728
        %v3588 = vsel %vm610, %v798, %v1730
        %v3589 = vsel %vm610, %v799, %v1732
        %v3590 = vsel %vm610, %v800, %v1734
        %vm3591 = vcmask 64512
        %v3592 = vsel %vm3591, %v3559, %v1800
        %v3593 = vsel %vm3591, %v3560, %v1802
        %v3594 = vsel %vm3591, %v3561, %v1804
        %v3595 = vsel %vm3591, %v3562, %v1806
        %v3596 = vsel %vm3591, %v3563, %v1808
        %v3597 = vsel %vm3591, %v3564, %v1810
        %v3598 = vsel %vm3591, %v3565, %v1812
        %v3599 = vsel %vm3591, %v3566, %v1814
        %v3600 = vsel %vm3591, %v3567, %v1816
        %v3601 = vsel %vm3591, %v3568, %v1818
        %v3602 = vsel %vm3591, %v3569, %v1820
        %v3603 = vsel %vm3591, %v3570, %v1822
        %v3604 = vsel %vm3591, %v3571, %v1824
        %v3605 = vsel %vm3591, %v3572, %v1826
        %v3606 = vsel %vm3591, %v3573, %v1828
        %v3607 = vsel %vm3591, %v3574, %v1830
        %v3608 = vsel %vm3591, %v3575, %v1832
        %v3609 = vsel %vm3591, %v3576, %v1834
        %v3610 = vsel %vm3591, %v3577, %v1836
        %v3611 = vsel %vm3591, %v3578, %v1838
        %v3612 = vsel %vm3591, %v3579, %v1840
        %v3613 = vsel %vm3591, %v3580, %v1842
        %v3614 = vsel %vm3591, %v3581, %v1844
        %v3615 = vsel %vm3591, %v3582, %v1846
        %v3616 = vsel %vm3591, %v3583, %v1848
        %v3617 = vsel %vm3591, %v3584, %v1850
        %v3618 = vsel %vm3591, %v3585, %v1852
        %v3619 = vsel %vm3591, %v3586, %v1854
        %v3620 = vsel %vm3591, %v3587, %v1856
        %v3621 = vsel %vm3591, %v3588, %v1858
        %v3622 = vsel %vm3591, %v3589, %v1860
        %v3623 = vsel %vm3591, %v3590, %v1862
        %vm3624 = vcmask 97280
        %v3625 = vsel %vm3624, %v3592, %v1928
        %v3626 = vsel %vm3624, %v3593, %v1930
        %v3627 = vsel %vm3624, %v3594, %v1932
        %v3628 = vsel %vm3624, %v3595, %v1934
        %v3629 = vsel %vm3624, %v3596, %v1936
        %v3630 = vsel %vm3624, %v3597, %v1938
        %v3631 = vsel %vm3624, %v3598, %v1940
        %v3632 = vsel %vm3624, %v3599, %v1942
        %v3633 = vsel %vm3624, %v3600, %v1944
        %v3634 = vsel %vm3624, %v3601, %v1946
        %v3635 = vsel %vm3624, %v3602, %v1948
        %v3636 = vsel %vm3624, %v3603, %v1950
        %v3637 = vsel %vm3624, %v3604, %v1952
        %v3638 = vsel %vm3624, %v3605, %v1954
        %v3639 = vsel %vm3624, %v3606, %v1956
        %v3640 = vsel %vm3624, %v3607, %v1958
        %v3641 = vsel %vm3624, %v3608, %v1960
        %v3642 = vsel %vm3624, %v3609, %v1962
        %v3643 = vsel %vm3624, %v3610, %v1964
        %v3644 = vsel %vm3624, %v3611, %v1966
        %v3645 = vsel %vm3624, %v3612, %v1968
        %v3646 = vsel %vm3624, %v3613, %v1970
        %v3647 = vsel %vm3624, %v3614, %v1972
        %v3648 = vsel %vm3624, %v3615, %v1974
        %v3649 = vsel %vm3624, %v3616, %v1976
        %v3650 = vsel %vm3624, %v3617, %v1978
        %v3651 = vsel %vm3624, %v3618, %v1980
        %v3652 = vsel %vm3624, %v3619, %v1982
        %v3653 = vsel %vm3624, %v3620, %v1984
        %v3654 = vsel %vm3624, %v3621, %v1986
        %v3655 = vsel %vm3624, %v3622, %v1988
        %v3656 = vsel %vm3624, %v3623, %v1990
        %vm3657 = vcmask 130048
        %v3658 = vsel %vm3657, %v3625, %v2056
        %v3659 = vsel %vm3657, %v3626, %v2058
        %v3660 = vsel %vm3657, %v3627, %v2060
        %v3661 = vsel %vm3657, %v3628, %v2062
        %v3662 = vsel %vm3657, %v3629, %v2064
        %v3663 = vsel %vm3657, %v3630, %v2066
        %v3664 = vsel %vm3657, %v3631, %v2068
        %v3665 = vsel %vm3657, %v3632, %v2070
        %v3666 = vsel %vm3657, %v3633, %v2072
        %v3667 = vsel %vm3657, %v3634, %v2074
        %v3668 = vsel %vm3657, %v3635, %v2076
        %v3669 = vsel %vm3657, %v3636, %v2078
        %v3670 = vsel %vm3657, %v3637, %v2080
        %v3671 = vsel %vm3657, %v3638, %v2082
        %v3672 = vsel %vm3657, %v3639, %v2084
        %v3673 = vsel %vm3657, %v3640, %v2086
        %v3674 = vsel %vm3657, %v3641, %v2088
        %v3675 = vsel %vm3657, %v3642, %v2090
        %v3676 = vsel %vm3657, %v3643, %v2092
        %v3677 = vsel %vm3657, %v3644, %v2094
        %v3678 = vsel %vm3657, %v3645, %v2096
        %v3679 = vsel %vm3657, %v3646, %v2098
        %v3680 = vsel %vm3657, %v3647, %v2100
        %v3681 = vsel %vm3657, %v3648, %v2102
        %v3682 = vsel %vm3657, %v3649, %v2104
        %v3683 = vsel %vm3657, %v3650, %v2106
        %v3684 = vsel %vm3657, %v3651, %v2108
        %v3685 = vsel %vm3657, %v3652, %v2110
        %v3686 = vsel %vm3657, %v3653, %v2112
        %v3687 = vsel %vm3657, %v3654, %v2114
        %v3688 = vsel %vm3657, %v3655, %v2116
        %v3689 = vsel %vm3657, %v3656, %v2118
        %vm3690 = vcmask 162816
        %v3691 = vsel %vm3690, %v3658, %v2184
        %v3692 = vsel %vm3690, %v3659, %v2186
        %v3693 = vsel %vm3690, %v3660, %v2188
        %v3694 = vsel %vm3690, %v3661, %v2190
        %v3695 = vsel %vm3690, %v3662, %v2192
        %v3696 = vsel %vm3690, %v3663, %v2194
        %v3697 = vsel %vm3690, %v3664, %v2196
        %v3698 = vsel %vm3690, %v3665, %v2198
        %v3699 = vsel %vm3690, %v3666, %v2200
        %v3700 = vsel %vm3690, %v3667, %v2202
        %v3701 = vsel %vm3690, %v3668, %v2204
        %v3702 = vsel %vm3690, %v3669, %v2206
        %v3703 = vsel %vm3690, %v3670, %v2208
        %v3704 = vsel %vm3690, %v3671, %v2210
        %v3705 = vsel %vm3690, %v3672, %v2212
        %v3706 = vsel %vm3690, %v3673, %v2214
        %v3707 = vsel %vm3690, %v3674, %v2216
        %v3708 = vsel %vm3690, %v3675, %v2218
        %v3709 = vsel %vm3690, %v3676, %v2220
        %v3710 = vsel %vm3690, %v3677, %v2222
        %v3711 = vsel %vm3690, %v3678, %v2224
        %v3712 = vsel %vm3690, %v3679, %v2226
        %v3713 = vsel %vm3690, %v3680, %v2228
        %v3714 = vsel %vm3690, %v3681, %v2230
        %v3715 = vsel %vm3690, %v3682, %v2232
        %v3716 = vsel %vm3690, %v3683, %v2234
        %v3717 = vsel %vm3690, %v3684, %v2236
        %v3718 = vsel %vm3690, %v3685, %v2238
        %v3719 = vsel %vm3690, %v3686, %v2240
        %v3720 = vsel %vm3690, %v3687, %v2242
        %v3721 = vsel %vm3690, %v3688, %v2244
        %v3722 = vsel %vm3690, %v3689, %v2246
        %vm3723 = vcmask 195584
        %v3724 = vsel %vm3723, %v3691, %v2312
        %v3725 = vsel %vm3723, %v3692, %v2314
        %v3726 = vsel %vm3723, %v3693, %v2316
        %v3727 = vsel %vm3723, %v3694, %v2318
        %v3728 = vsel %vm3723, %v3695, %v2320
        %v3729 = vsel %vm3723, %v3696, %v2322
        %v3730 = vsel %vm3723, %v3697, %v2324
        %v3731 = vsel %vm3723, %v3698, %v2326
        %v3732 = vsel %vm3723, %v3699, %v2328
        %v3733 = vsel %vm3723, %v3700, %v2330
        %v3734 = vsel %vm3723, %v3701, %v2332
        %v3735 = vsel %vm3723, %v3702, %v2334
        %v3736 = vsel %vm3723, %v3703, %v2336
        %v3737 = vsel %vm3723, %v3704, %v2338
        %v3738 = vsel %vm3723, %v3705, %v2340
        %v3739 = vsel %vm3723, %v3706, %v2342
        %v3740 = vsel %vm3723, %v3707, %v2344
        %v3741 = vsel %vm3723, %v3708, %v2346
        %v3742 = vsel %vm3723, %v3709, %v2348
        %v3743 = vsel %vm3723, %v3710, %v2350
        %v3744 = vsel %vm3723, %v3711, %v2352
        %v3745 = vsel %vm3723, %v3712, %v2354
        %v3746 = vsel %vm3723, %v3713, %v2356
        %v3747 = vsel %vm3723, %v3714, %v2358
        %v3748 = vsel %vm3723, %v3715, %v2360
        %v3749 = vsel %vm3723, %v3716, %v2362
        %v3750 = vsel %vm3723, %v3717, %v2364
        %v3751 = vsel %vm3723, %v3718, %v2366
        %v3752 = vsel %vm3723, %v3719, %v2368
        %v3753 = vsel %vm3723, %v3720, %v2370
        %v3754 = vsel %vm3723, %v3721, %v2372
        %v3755 = vsel %vm3723, %v3722, %v2374
        %vm3756 = vcmask 228352
        %v3757 = vsel %vm3756, %v3724, %v2440
        %v3758 = vsel %vm3756, %v3725, %v2442
        %v3759 = vsel %vm3756, %v3726, %v2444
        %v3760 = vsel %vm3756, %v3727, %v2446
        %v3761 = vsel %vm3756, %v3728, %v2448
        %v3762 = vsel %vm3756, %v3729, %v2450
        %v3763 = vsel %vm3756, %v3730, %v2452
        %v3764 = vsel %vm3756, %v3731, %v2454
        %v3765 = vsel %vm3756, %v3732, %v2456
        %v3766 = vsel %vm3756, %v3733, %v2458
        %v3767 = vsel %vm3756, %v3734, %v2460
        %v3768 = vsel %vm3756, %v3735, %v2462
        %v3769 = vsel %vm3756, %v3736, %v2464
        %v3770 = vsel %vm3756, %v3737, %v2466
        %v3771 = vsel %vm3756, %v3738, %v2468
        %v3772 = vsel %vm3756, %v3739, %v2470
        %v3773 = vsel %vm3756, %v3740, %v2472
        %v3774 = vsel %vm3756, %v3741, %v2474
        %v3775 = vsel %vm3756, %v3742, %v2476
        %v3776 = vsel %vm3756, %v3743, %v2478
        %v3777 = vsel %vm3756, %v3744, %v2480
        %v3778 = vsel %vm3756, %v3745, %v2482
        %v3779 = vsel %vm3756, %v3746, %v2484
        %v3780 = vsel %vm3756, %v3747, %v2486
        %v3781 = vsel %vm3756, %v3748, %v2488
        %v3782 = vsel %vm3756, %v3749, %v2490
        %v3783 = vsel %vm3756, %v3750, %v2492
        %v3784 = vsel %vm3756, %v3751, %v2494
        %v3785 = vsel %vm3756, %v3752, %v2496
        %v3786 = vsel %vm3756, %v3753, %v2498
        %v3787 = vsel %vm3756, %v3754, %v2500
        %v3788 = vsel %vm3756, %v3755, %v2502
        %vm3789 = vcmask 261120
        %v3790 = vsel %vm3789, %v3757, %v2568
        %v3791 = vsel %vm3789, %v3758, %v2570
        %v3792 = vsel %vm3789, %v3759, %v2572
        %v3793 = vsel %vm3789, %v3760, %v2574
        %v3794 = vsel %vm3789, %v3761, %v2576
        %v3795 = vsel %vm3789, %v3762, %v2578
        %v3796 = vsel %vm3789, %v3763, %v2580
        %v3797 = vsel %vm3789, %v3764, %v2582
        %v3798 = vsel %vm3789, %v3765, %v2584
        %v3799 = vsel %vm3789, %v3766, %v2586
        %v3800 = vsel %vm3789, %v3767, %v2588
        %v3801 = vsel %vm3789, %v3768, %v2590
        %v3802 = vsel %vm3789, %v3769, %v2592
        %v3803 = vsel %vm3789, %v3770, %v2594
        %v3804 = vsel %vm3789, %v3771, %v2596
        %v3805 = vsel %vm3789, %v3772, %v2598
        %v3806 = vsel %vm3789, %v3773, %v2600
        %v3807 = vsel %vm3789, %v3774, %v2602
        %v3808 = vsel %vm3789, %v3775, %v2604
        %v3809 = vsel %vm3789, %v3776, %v2606
        %v3810 = vsel %vm3789, %v3777, %v2608
        %v3811 = vsel %vm3789, %v3778, %v2610
        %v3812 = vsel %vm3789, %v3779, %v2612
        %v3813 = vsel %vm3789, %v3780, %v2614
        %v3814 = vsel %vm3789, %v3781, %v2616
        %v3815 = vsel %vm3789, %v3782, %v2618
        %v3816 = vsel %vm3789, %v3783, %v2620
        %v3817 = vsel %vm3789, %v3784, %v2622
        %v3818 = vsel %vm3789, %v3785, %v2624
        %v3819 = vsel %vm3789, %v3786, %v2626
        %v3820 = vsel %vm3789, %v3787, %v2628
        %v3821 = vsel %vm3789, %v3788, %v2630
        %vm3822 = vcmask 293888
        %v3823 = vsel %vm3822, %v3790, %v2696
        %v3824 = vsel %vm3822, %v3791, %v2698
        %v3825 = vsel %vm3822, %v3792, %v2700
        %v3826 = vsel %vm3822, %v3793, %v2702
        %v3827 = vsel %vm3822, %v3794, %v2704
        %v3828 = vsel %vm3822, %v3795, %v2706
        %v3829 = vsel %vm3822, %v3796, %v2708
        %v3830 = vsel %vm3822, %v3797, %v2710
        %v3831 = vsel %vm3822, %v3798, %v2712
        %v3832 = vsel %vm3822, %v3799, %v2714
        %v3833 = vsel %vm3822, %v3800, %v2716
        %v3834 = vsel %vm3822, %v3801, %v2718
        %v3835 = vsel %vm3822, %v3802, %v2720
        %v3836 = vsel %vm3822, %v3803, %v2722
        %v3837 = vsel %vm3822, %v3804, %v2724
        %v3838 = vsel %vm3822, %v3805, %v2726
        %v3839 = vsel %vm3822, %v3806, %v2728
        %v3840 = vsel %vm3822, %v3807, %v2730
        %v3841 = vsel %vm3822, %v3808, %v2732
        %v3842 = vsel %vm3822, %v3809, %v2734
        %v3843 = vsel %vm3822, %v3810, %v2736
        %v3844 = vsel %vm3822, %v3811, %v2738
        %v3845 = vsel %vm3822, %v3812, %v2740
        %v3846 = vsel %vm3822, %v3813, %v2742
        %v3847 = vsel %vm3822, %v3814, %v2744
        %v3848 = vsel %vm3822, %v3815, %v2746
        %v3849 = vsel %vm3822, %v3816, %v2748
        %v3850 = vsel %vm3822, %v3817, %v2750
        %v3851 = vsel %vm3822, %v3818, %v2752
        %v3852 = vsel %vm3822, %v3819, %v2754
        %v3853 = vsel %vm3822, %v3820, %v2756
        %v3854 = vsel %vm3822, %v3821, %v2758
        %vm3855 = vcmask 326656
        %v3856 = vsel %vm3855, %v3823, %v2824
        %v3857 = vsel %vm3855, %v3824, %v2826
        %v3858 = vsel %vm3855, %v3825, %v2828
        %v3859 = vsel %vm3855, %v3826, %v2830
        %v3860 = vsel %vm3855, %v3827, %v2832
        %v3861 = vsel %vm3855, %v3828, %v2834
        %v3862 = vsel %vm3855, %v3829, %v2836
        %v3863 = vsel %vm3855, %v3830, %v2838
        %v3864 = vsel %vm3855, %v3831, %v2840
        %v3865 = vsel %vm3855, %v3832, %v2842
        %v3866 = vsel %vm3855, %v3833, %v2844
        %v3867 = vsel %vm3855, %v3834, %v2846
        %v3868 = vsel %vm3855, %v3835, %v2848
        %v3869 = vsel %vm3855, %v3836, %v2850
        %v3870 = vsel %vm3855, %v3837, %v2852
        %v3871 = vsel %vm3855, %v3838, %v2854
        %v3872 = vsel %vm3855, %v3839, %v2856
        %v3873 = vsel %vm3855, %v3840, %v2858
        %v3874 = vsel %vm3855, %v3841, %v2860
        %v3875 = vsel %vm3855, %v3842, %v2862
        %v3876 = vsel %vm3855, %v3843, %v2864
        %v3877 = vsel %vm3855, %v3844, %v2866
        %v3878 = vsel %vm3855, %v3845, %v2868
        %v3879 = vsel %vm3855, %v3846, %v2870
        %v3880 = vsel %vm3855, %v3847, %v2872
        %v3881 = vsel %vm3855, %v3848, %v2874
        %v3882 = vsel %vm3855, %v3849, %v2876
        %v3883 = vsel %vm3855, %v3850, %v2878
        %v3884 = vsel %vm3855, %v3851, %v2880
        %v3885 = vsel %vm3855, %v3852, %v2882
        %v3886 = vsel %vm3855, %v3853, %v2884
        %v3887 = vsel %vm3855, %v3854, %v2886
        %vm3888 = vcmask 359424
        %v3889 = vsel %vm3888, %v3856, %v2952
        %v3890 = vsel %vm3888, %v3857, %v2954
        %v3891 = vsel %vm3888, %v3858, %v2956
        %v3892 = vsel %vm3888, %v3859, %v2958
        %v3893 = vsel %vm3888, %v3860, %v2960
        %v3894 = vsel %vm3888, %v3861, %v2962
        %v3895 = vsel %vm3888, %v3862, %v2964
        %v3896 = vsel %vm3888, %v3863, %v2966
        %v3897 = vsel %vm3888, %v3864, %v2968
        %v3898 = vsel %vm3888, %v3865, %v2970
        %v3899 = vsel %vm3888, %v3866, %v2972
        %v3900 = vsel %vm3888, %v3867, %v2974
        %v3901 = vsel %vm3888, %v3868, %v2976
        %v3902 = vsel %vm3888, %v3869, %v2978
        %v3903 = vsel %vm3888, %v3870, %v2980
        %v3904 = vsel %vm3888, %v3871, %v2982
        %v3905 = vsel %vm3888, %v3872, %v2984
        %v3906 = vsel %vm3888, %v3873, %v2986
        %v3907 = vsel %vm3888, %v3874, %v2988
        %v3908 = vsel %vm3888, %v3875, %v2990
        %v3909 = vsel %vm3888, %v3876, %v2992
        %v3910 = vsel %vm3888, %v3877, %v2994
        %v3911 = vsel %vm3888, %v3878, %v2996
        %v3912 = vsel %vm3888, %v3879, %v2998
        %v3913 = vsel %vm3888, %v3880, %v3000
        %v3914 = vsel %vm3888, %v3881, %v3002
        %v3915 = vsel %vm3888, %v3882, %v3004
        %v3916 = vsel %vm3888, %v3883, %v3006
        %v3917 = vsel %vm3888, %v3884, %v3008
        %v3918 = vsel %vm3888, %v3885, %v3010
        %v3919 = vsel %vm3888, %v3886, %v3012
        %v3920 = vsel %vm3888, %v3887, %v3014
        %vm3921 = vcmask 392192
        %v3922 = vsel %vm3921, %v3889, %v3080
        %v3923 = vsel %vm3921, %v3890, %v3082
        %v3924 = vsel %vm3921, %v3891, %v3084
        %v3925 = vsel %vm3921, %v3892, %v3086
        %v3926 = vsel %vm3921, %v3893, %v3088
        %v3927 = vsel %vm3921, %v3894, %v3090
        %v3928 = vsel %vm3921, %v3895, %v3092
        %v3929 = vsel %vm3921, %v3896, %v3094
        %v3930 = vsel %vm3921, %v3897, %v3096
        %v3931 = vsel %vm3921, %v3898, %v3098
        %v3932 = vsel %vm3921, %v3899, %v3100
        %v3933 = vsel %vm3921, %v3900, %v3102
        %v3934 = vsel %vm3921, %v3901, %v3104
        %v3935 = vsel %vm3921, %v3902, %v3106
        %v3936 = vsel %vm3921, %v3903, %v3108
        %v3937 = vsel %vm3921, %v3904, %v3110
        %v3938 = vsel %vm3921, %v3905, %v3112
        %v3939 = vsel %vm3921, %v3906, %v3114
        %v3940 = vsel %vm3921, %v3907, %v3116
        %v3941 = vsel %vm3921, %v3908, %v3118
        %v3942 = vsel %vm3921, %v3909, %v3120
        %v3943 = vsel %vm3921, %v3910, %v3122
        %v3944 = vsel %vm3921, %v3911, %v3124
        %v3945 = vsel %vm3921, %v3912, %v3126
        %v3946 = vsel %vm3921, %v3913, %v3128
        %v3947 = vsel %vm3921, %v3914, %v3130
        %v3948 = vsel %vm3921, %v3915, %v3132
        %v3949 = vsel %vm3921, %v3916, %v3134
        %v3950 = vsel %vm3921, %v3917, %v3136
        %v3951 = vsel %vm3921, %v3918, %v3138
        %v3952 = vsel %vm3921, %v3919, %v3140
        %v3953 = vsel %vm3921, %v3920, %v3142
        %vm3954 = vcmask 424960
        %v3955 = vsel %vm3954, %v3922, %v3208
        %v3956 = vsel %vm3954, %v3923, %v3210
        %v3957 = vsel %vm3954, %v3924, %v3212
        %v3958 = vsel %vm3954, %v3925, %v3214
        %v3959 = vsel %vm3954, %v3926, %v3216
        %v3960 = vsel %vm3954, %v3927, %v3218
        %v3961 = vsel %vm3954, %v3928, %v3220
        %v3962 = vsel %vm3954, %v3929, %v3222
        %v3963 = vsel %vm3954, %v3930, %v3224
        %v3964 = vsel %vm3954, %v3931, %v3226
        %v3965 = vsel %vm3954, %v3932, %v3228
        %v3966 = vsel %vm3954, %v3933, %v3230
        %v3967 = vsel %vm3954, %v3934, %v3232
        %v3968 = vsel %vm3954, %v3935, %v3234
        %v3969 = vsel %vm3954, %v3936, %v3236
        %v3970 = vsel %vm3954, %v3937, %v3238
        %v3971 = vsel %vm3954, %v3938, %v3240
        %v3972 = vsel %vm3954, %v3939, %v3242
        %v3973 = vsel %vm3954, %v3940, %v3244
        %v3974 = vsel %vm3954, %v3941, %v3246
        %v3975 = vsel %vm3954, %v3942, %v3248
        %v3976 = vsel %vm3954, %v3943, %v3250
        %v3977 = vsel %vm3954, %v3944, %v3252
        %v3978 = vsel %vm3954, %v3945, %v3254
        %v3979 = vsel %vm3954, %v3946, %v3256
        %v3980 = vsel %vm3954, %v3947, %v3258
        %v3981 = vsel %vm3954, %v3948, %v3260
        %v3982 = vsel %vm3954, %v3949, %v3262
        %v3983 = vsel %vm3954, %v3950, %v3264
        %v3984 = vsel %vm3954, %v3951, %v3266
        %v3985 = vsel %vm3954, %v3952, %v3268
        %v3986 = vsel %vm3954, %v3953, %v3270
        %vm3987 = vcmask 457728
        %v3988 = vsel %vm3987, %v3955, %v3336
        %v3989 = vsel %vm3987, %v3956, %v3338
        %v3990 = vsel %vm3987, %v3957, %v3340
        %v3991 = vsel %vm3987, %v3958, %v3342
        %v3992 = vsel %vm3987, %v3959, %v3344
        %v3993 = vsel %vm3987, %v3960, %v3346
        %v3994 = vsel %vm3987, %v3961, %v3348
        %v3995 = vsel %vm3987, %v3962, %v3350
        %v3996 = vsel %vm3987, %v3963, %v3352
        %v3997 = vsel %vm3987, %v3964, %v3354
        %v3998 = vsel %vm3987, %v3965, %v3356
        %v3999 = vsel %vm3987, %v3966, %v3358
        %v4000 = vsel %vm3987, %v3967, %v3360
        %v4001 = vsel %vm3987, %v3968, %v3362
        %v4002 = vsel %vm3987, %v3969, %v3364
        %v4003 = vsel %vm3987, %v3970, %v3366
        %v4004 = vsel %vm3987, %v3971, %v3368
        %v4005 = vsel %vm3987, %v3972, %v3370
        %v4006 = vsel %vm3987, %v3973, %v3372
        %v4007 = vsel %vm3987, %v3974, %v3374
        %v4008 = vsel %vm3987, %v3975, %v3376
        %v4009 = vsel %vm3987, %v3976, %v3378
        %v4010 = vsel %vm3987, %v3977, %v3380
        %v4011 = vsel %vm3987, %v3978, %v3382
        %v4012 = vsel %vm3987, %v3979, %v3384
        %v4013 = vsel %vm3987, %v3980, %v3386
        %v4014 = vsel %vm3987, %v3981, %v3388
        %v4015 = vsel %vm3987, %v3982, %v3390
        %v4016 = vsel %vm3987, %v3983, %v3392
        %v4017 = vsel %vm3987, %v3984, %v3394
        %v4018 = vsel %vm3987, %v3985, %v3396
        %v4019 = vsel %vm3987, %v3986, %v3398
        %vm4020 = vcmask 490496
        %v4021 = vsel %vm4020, %v3988, %v3464
        %v4022 = vsel %vm4020, %v3989, %v3466
        %v4023 = vsel %vm4020, %v3990, %v3468
        %v4024 = vsel %vm4020, %v3991, %v3470
        %v4025 = vsel %vm4020, %v3992, %v3472
        %v4026 = vsel %vm4020, %v3993, %v3474
        %v4027 = vsel %vm4020, %v3994, %v3476
        %v4028 = vsel %vm4020, %v3995, %v3478
        %v4029 = vsel %vm4020, %v3996, %v3480
        %v4030 = vsel %vm4020, %v3997, %v3482
        %v4031 = vsel %vm4020, %v3998, %v3484
        %v4032 = vsel %vm4020, %v3999, %v3486
        %v4033 = vsel %vm4020, %v4000, %v3488
        %v4034 = vsel %vm4020, %v4001, %v3490
        %v4035 = vsel %vm4020, %v4002, %v3492
        %v4036 = vsel %vm4020, %v4003, %v3494
        %v4037 = vsel %vm4020, %v4004, %v3496
        %v4038 = vsel %vm4020, %v4005, %v3498
        %v4039 = vsel %vm4020, %v4006, %v3500
        %v4040 = vsel %vm4020, %v4007, %v3502
        %v4041 = vsel %vm4020, %v4008, %v3504
        %v4042 = vsel %vm4020, %v4009, %v3506
        %v4043 = vsel %vm4020, %v4010, %v3508
        %v4044 = vsel %vm4020, %v4011, %v3510
        %v4045 = vsel %vm4020, %v4012, %v3512
        %v4046 = vsel %vm4020, %v4013, %v3514
        %v4047 = vsel %vm4020, %v4014, %v3516
        %v4048 = vsel %vm4020, %v4015, %v3518
        %v4049 = vsel %vm4020, %v4016, %v3520
        %v4050 = vsel %vm4020, %v4017, %v3522
        %v4051 = vsel %vm4020, %v4018, %v3524
        %v4052 = vsel %vm4020, %v4019, %v3526
        %4085 = vrot.lane.b32.xlu0 %v1316, 4
        %v4086 = vpop.permute.xlu0 %4085
        %4087 = vrot.lane.b32.xlu0 %v1317, 4
        %v4088 = vpop.permute.xlu0 %4087
        %4089 = vrot.lane.b32.xlu0 %v1318, 4
        %v4090 = vpop.permute.xlu0 %4089
        %4091 = vrot.lane.b32.xlu0 %v1319, 4
        %v4092 = vpop.permute.xlu0 %4091
        %4093 = vrot.lane.b32.xlu0 %v1320, 4
        %v4094 = vpop.permute.xlu0 %4093
        %4095 = vrot.lane.b32.xlu0 %v1321, 4
        %v4096 = vpop.permute.xlu0 %4095
        %4097 = vrot.lane.b32.xlu0 %v1322, 4
        %v4098 = vpop.permute.xlu0 %4097
        %4099 = vrot.lane.b32.xlu0 %v1323, 4
        %v4100 = vpop.permute.xlu0 %4099
        %4101 = vrot.lane.b32.xlu0 %v1324, 4
        %v4102 = vpop.permute.xlu0 %4101
        %4103 = vrot.lane.b32.xlu0 %v1325, 4
        %v4104 = vpop.permute.xlu0 %4103
        %4105 = vrot.lane.b32.xlu0 %v1326, 4
        %v4106 = vpop.permute.xlu0 %4105
        %4107 = vrot.lane.b32.xlu0 %v1327, 4
        %v4108 = vpop.permute.xlu0 %4107
        %4109 = vrot.lane.b32.xlu0 %v1328, 4
        %v4110 = vpop.permute.xlu0 %4109
        %4111 = vrot.lane.b32.xlu0 %v1329, 4
        %v4112 = vpop.permute.xlu0 %4111
        %4113 = vrot.lane.b32.xlu0 %v1330, 4
        %v4114 = vpop.permute.xlu0 %4113
        %4115 = vrot.lane.b32.xlu0 %v1331, 4
        %v4116 = vpop.permute.xlu0 %4115
        %4117 = vrot.lane.b32.xlu0 %v1332, 4
        %v4118 = vpop.permute.xlu0 %4117
        %4119 = vrot.lane.b32.xlu0 %v1333, 4
        %v4120 = vpop.permute.xlu0 %4119
        %4121 = vrot.lane.b32.xlu0 %v1334, 4
        %v4122 = vpop.permute.xlu0 %4121
        %4123 = vrot.lane.b32.xlu0 %v1335, 4
        %v4124 = vpop.permute.xlu0 %4123
        %4125 = vrot.lane.b32.xlu0 %v1336, 4
        %v4126 = vpop.permute.xlu0 %4125
        %4127 = vrot.lane.b32.xlu0 %v1337, 4
        %v4128 = vpop.permute.xlu0 %4127
        %4129 = vrot.lane.b32.xlu0 %v1338, 4
        %v4130 = vpop.permute.xlu0 %4129
        %4131 = vrot.lane.b32.xlu0 %v1339, 4
        %v4132 = vpop.permute.xlu0 %4131
        %4133 = vrot.lane.b32.xlu0 %v1340, 4
        %v4134 = vpop.permute.xlu0 %4133
        %4135 = vrot.lane.b32.xlu0 %v1341, 4
        %v4136 = vpop.permute.xlu0 %4135
        %4137 = vrot.lane.b32.xlu0 %v1342, 4
        %v4138 = vpop.permute.xlu0 %4137
        %4139 = vrot.lane.b32.xlu0 %v1343, 4
        %v4140 = vpop.permute.xlu0 %4139
        %4141 = vrot.lane.b32.xlu0 %v1344, 4
        %v4142 = vpop.permute.xlu0 %4141
        %4143 = vrot.lane.b32.xlu0 %v1345, 4
        %v4144 = vpop.permute.xlu0 %4143
        %4145 = vrot.lane.b32.xlu0 %v1346, 4
        %v4146 = vpop.permute.xlu0 %4145
        %4147 = vrot.lane.b32.xlu0 %v1347, 4
        %v4148 = vpop.permute.xlu0 %4147
        %4213 = vrot.lane.b32.xlu0 %v1349, 8
        %v4214 = vpop.permute.xlu0 %4213
        %4215 = vrot.lane.b32.xlu0 %v1350, 8
        %v4216 = vpop.permute.xlu0 %4215
        %4217 = vrot.lane.b32.xlu0 %v1351, 8
        %v4218 = vpop.permute.xlu0 %4217
        %4219 = vrot.lane.b32.xlu0 %v1352, 8
        %v4220 = vpop.permute.xlu0 %4219
        %4221 = vrot.lane.b32.xlu0 %v1353, 8
        %v4222 = vpop.permute.xlu0 %4221
        %4223 = vrot.lane.b32.xlu0 %v1354, 8
        %v4224 = vpop.permute.xlu0 %4223
        %4225 = vrot.lane.b32.xlu0 %v1355, 8
        %v4226 = vpop.permute.xlu0 %4225
        %4227 = vrot.lane.b32.xlu0 %v1356, 8
        %v4228 = vpop.permute.xlu0 %4227
        %4229 = vrot.lane.b32.xlu0 %v1357, 8
        %v4230 = vpop.permute.xlu0 %4229
        %4231 = vrot.lane.b32.xlu0 %v1358, 8
        %v4232 = vpop.permute.xlu0 %4231
        %4233 = vrot.lane.b32.xlu0 %v1359, 8
        %v4234 = vpop.permute.xlu0 %4233
        %4235 = vrot.lane.b32.xlu0 %v1360, 8
        %v4236 = vpop.permute.xlu0 %4235
        %4237 = vrot.lane.b32.xlu0 %v1361, 8
        %v4238 = vpop.permute.xlu0 %4237
        %4239 = vrot.lane.b32.xlu0 %v1362, 8
        %v4240 = vpop.permute.xlu0 %4239
        %4241 = vrot.lane.b32.xlu0 %v1363, 8
        %v4242 = vpop.permute.xlu0 %4241
        %4243 = vrot.lane.b32.xlu0 %v1364, 8
        %v4244 = vpop.permute.xlu0 %4243
        %4245 = vrot.lane.b32.xlu0 %v1365, 8
        %v4246 = vpop.permute.xlu0 %4245
        %4247 = vrot.lane.b32.xlu0 %v1366, 8
        %v4248 = vpop.permute.xlu0 %4247
        %4249 = vrot.lane.b32.xlu0 %v1367, 8
        %v4250 = vpop.permute.xlu0 %4249
        %4251 = vrot.lane.b32.xlu0 %v1368, 8
        %v4252 = vpop.permute.xlu0 %4251
        %4253 = vrot.lane.b32.xlu0 %v1369, 8
        %v4254 = vpop.permute.xlu0 %4253
        %4255 = vrot.lane.b32.xlu0 %v1370, 8
        %v4256 = vpop.permute.xlu0 %4255
        %4257 = vrot.lane.b32.xlu0 %v1371, 8
        %v4258 = vpop.permute.xlu0 %4257
        %4259 = vrot.lane.b32.xlu0 %v1372, 8
        %v4260 = vpop.permute.xlu0 %4259
        %4261 = vrot.lane.b32.xlu0 %v1373, 8
        %v4262 = vpop.permute.xlu0 %4261
        %4263 = vrot.lane.b32.xlu0 %v1374, 8
        %v4264 = vpop.permute.xlu0 %4263
        %4265 = vrot.lane.b32.xlu0 %v1375, 8
        %v4266 = vpop.permute.xlu0 %4265
        %4267 = vrot.lane.b32.xlu0 %v1376, 8
        %v4268 = vpop.permute.xlu0 %4267
        %4269 = vrot.lane.b32.xlu0 %v1377, 8
        %v4270 = vpop.permute.xlu0 %4269
        %4271 = vrot.lane.b32.xlu0 %v1378, 8
        %v4272 = vpop.permute.xlu0 %4271
        %4273 = vrot.lane.b32.xlu0 %v1379, 8
        %v4274 = vpop.permute.xlu0 %4273
        %4275 = vrot.lane.b32.xlu0 %v1380, 8
        %v4276 = vpop.permute.xlu0 %4275
        %4341 = vrot.lane.b32.xlu0 %v1381, 12
        %v4342 = vpop.permute.xlu0 %4341
        %4343 = vrot.lane.b32.xlu0 %v1382, 12
        %v4344 = vpop.permute.xlu0 %4343
        %4345 = vrot.lane.b32.xlu0 %v1383, 12
        %v4346 = vpop.permute.xlu0 %4345
        %4347 = vrot.lane.b32.xlu0 %v1384, 12
        %v4348 = vpop.permute.xlu0 %4347
        %4349 = vrot.lane.b32.xlu0 %v1385, 12
        %v4350 = vpop.permute.xlu0 %4349
        %4351 = vrot.lane.b32.xlu0 %v1386, 12
        %v4352 = vpop.permute.xlu0 %4351
        %4353 = vrot.lane.b32.xlu0 %v1387, 12
        %v4354 = vpop.permute.xlu0 %4353
        %4355 = vrot.lane.b32.xlu0 %v1388, 12
        %v4356 = vpop.permute.xlu0 %4355
        %4357 = vrot.lane.b32.xlu0 %v1389, 12
        %v4358 = vpop.permute.xlu0 %4357
        %4359 = vrot.lane.b32.xlu0 %v1390, 12
        %v4360 = vpop.permute.xlu0 %4359
        %4361 = vrot.lane.b32.xlu0 %v1391, 12
        %v4362 = vpop.permute.xlu0 %4361
        %4363 = vrot.lane.b32.xlu0 %v1392, 12
        %v4364 = vpop.permute.xlu0 %4363
        %4365 = vrot.lane.b32.xlu0 %v1393, 12
        %v4366 = vpop.permute.xlu0 %4365
        %4367 = vrot.lane.b32.xlu0 %v1394, 12
        %v4368 = vpop.permute.xlu0 %4367
        %4369 = vrot.lane.b32.xlu0 %v1395, 12
        %v4370 = vpop.permute.xlu0 %4369
        %4371 = vrot.lane.b32.xlu0 %v1396, 12
        %v4372 = vpop.permute.xlu0 %4371
        %4373 = vrot.lane.b32.xlu0 %v1397, 12
        %v4374 = vpop.permute.xlu0 %4373
        %4375 = vrot.lane.b32.xlu0 %v1398, 12
        %v4376 = vpop.permute.xlu0 %4375
        %4377 = vrot.lane.b32.xlu0 %v1399, 12
        %v4378 = vpop.permute.xlu0 %4377
        %4379 = vrot.lane.b32.xlu0 %v1400, 12
        %v4380 = vpop.permute.xlu0 %4379
        %4381 = vrot.lane.b32.xlu0 %v1401, 12
        %v4382 = vpop.permute.xlu0 %4381
        %4383 = vrot.lane.b32.xlu0 %v1402, 12
        %v4384 = vpop.permute.xlu0 %4383
        %4385 = vrot.lane.b32.xlu0 %v1403, 12
        %v4386 = vpop.permute.xlu0 %4385
        %4387 = vrot.lane.b32.xlu0 %v1404, 12
        %v4388 = vpop.permute.xlu0 %4387
        %4389 = vrot.lane.b32.xlu0 %v1405, 12
        %v4390 = vpop.permute.xlu0 %4389
        %4391 = vrot.lane.b32.xlu0 %v1406, 12
        %v4392 = vpop.permute.xlu0 %4391
        %4393 = vrot.lane.b32.xlu0 %v1407, 12
        %v4394 = vpop.permute.xlu0 %4393
        %4395 = vrot.lane.b32.xlu0 %v1408, 12
        %v4396 = vpop.permute.xlu0 %4395
        %4397 = vrot.lane.b32.xlu0 %v1409, 12
        %v4398 = vpop.permute.xlu0 %4397
        %4399 = vrot.lane.b32.xlu0 %v1410, 12
        %v4400 = vpop.permute.xlu0 %4399
        %4401 = vrot.lane.b32.xlu0 %v1411, 12
        %v4402 = vpop.permute.xlu0 %4401
        %4403 = vrot.lane.b32.xlu0 %v1412, 12
        %v4404 = vpop.permute.xlu0 %4403
        %4469 = vrot.lane.b32.xlu0 %v1413, 16
        %v4470 = vpop.permute.xlu0 %4469
        %4471 = vrot.lane.b32.xlu0 %v1414, 16
        %v4472 = vpop.permute.xlu0 %4471
        %4473 = vrot.lane.b32.xlu0 %v1415, 16
        %v4474 = vpop.permute.xlu0 %4473
        %4475 = vrot.lane.b32.xlu0 %v1416, 16
        %v4476 = vpop.permute.xlu0 %4475
        %4477 = vrot.lane.b32.xlu0 %v1417, 16
        %v4478 = vpop.permute.xlu0 %4477
        %4479 = vrot.lane.b32.xlu0 %v1418, 16
        %v4480 = vpop.permute.xlu0 %4479
        %4481 = vrot.lane.b32.xlu0 %v1419, 16
        %v4482 = vpop.permute.xlu0 %4481
        %4483 = vrot.lane.b32.xlu0 %v1420, 16
        %v4484 = vpop.permute.xlu0 %4483
        %4485 = vrot.lane.b32.xlu0 %v1421, 16
        %v4486 = vpop.permute.xlu0 %4485
        %4487 = vrot.lane.b32.xlu0 %v1422, 16
        %v4488 = vpop.permute.xlu0 %4487
        %4489 = vrot.lane.b32.xlu0 %v1423, 16
        %v4490 = vpop.permute.xlu0 %4489
        %4491 = vrot.lane.b32.xlu0 %v1424, 16
        %v4492 = vpop.permute.xlu0 %4491
        %4493 = vrot.lane.b32.xlu0 %v1425, 16
        %v4494 = vpop.permute.xlu0 %4493
        %4495 = vrot.lane.b32.xlu0 %v1426, 16
        %v4496 = vpop.permute.xlu0 %4495
        %4497 = vrot.lane.b32.xlu0 %v1427, 16
        %v4498 = vpop.permute.xlu0 %4497
        %4499 = vrot.lane.b32.xlu0 %v1428, 16
        %v4500 = vpop.permute.xlu0 %4499
        %4501 = vrot.lane.b32.xlu0 %v1429, 16
        %v4502 = vpop.permute.xlu0 %4501
        %4503 = vrot.lane.b32.xlu0 %v1430, 16
        %v4504 = vpop.permute.xlu0 %4503
        %4505 = vrot.lane.b32.xlu0 %v1431, 16
        %v4506 = vpop.permute.xlu0 %4505
        %4507 = vrot.lane.b32.xlu0 %v1432, 16
        %v4508 = vpop.permute.xlu0 %4507
        %4509 = vrot.lane.b32.xlu0 %v1433, 16
        %v4510 = vpop.permute.xlu0 %4509
        %4511 = vrot.lane.b32.xlu0 %v1434, 16
        %v4512 = vpop.permute.xlu0 %4511
        %4513 = vrot.lane.b32.xlu0 %v1435, 16
        %v4514 = vpop.permute.xlu0 %4513
        %4515 = vrot.lane.b32.xlu0 %v1436, 16
        %v4516 = vpop.permute.xlu0 %4515
        %4517 = vrot.lane.b32.xlu0 %v1437, 16
        %v4518 = vpop.permute.xlu0 %4517
        %4519 = vrot.lane.b32.xlu0 %v1438, 16
        %v4520 = vpop.permute.xlu0 %4519
        %4521 = vrot.lane.b32.xlu0 %v1439, 16
        %v4522 = vpop.permute.xlu0 %4521
        %4523 = vrot.lane.b32.xlu0 %v1440, 16
        %v4524 = vpop.permute.xlu0 %4523
        %4525 = vrot.lane.b32.xlu0 %v1441, 16
        %v4526 = vpop.permute.xlu0 %4525
        %4527 = vrot.lane.b32.xlu0 %v1442, 16
        %v4528 = vpop.permute.xlu0 %4527
        %4529 = vrot.lane.b32.xlu0 %v1443, 16
        %v4530 = vpop.permute.xlu0 %4529
        %4531 = vrot.lane.b32.xlu0 %v1444, 16
        %v4532 = vpop.permute.xlu0 %4531
        %4597 = vrot.lane.b32.xlu0 %v1446, 20
        %v4598 = vpop.permute.xlu0 %4597
        %4599 = vrot.lane.b32.xlu0 %v1447, 20
        %v4600 = vpop.permute.xlu0 %4599
        %4601 = vrot.lane.b32.xlu0 %v1448, 20
        %v4602 = vpop.permute.xlu0 %4601
        %4603 = vrot.lane.b32.xlu0 %v1449, 20
        %v4604 = vpop.permute.xlu0 %4603
        %4605 = vrot.lane.b32.xlu0 %v1450, 20
        %v4606 = vpop.permute.xlu0 %4605
        %4607 = vrot.lane.b32.xlu0 %v1451, 20
        %v4608 = vpop.permute.xlu0 %4607
        %4609 = vrot.lane.b32.xlu0 %v1452, 20
        %v4610 = vpop.permute.xlu0 %4609
        %4611 = vrot.lane.b32.xlu0 %v1453, 20
        %v4612 = vpop.permute.xlu0 %4611
        %4613 = vrot.lane.b32.xlu0 %v1454, 20
        %v4614 = vpop.permute.xlu0 %4613
        %4615 = vrot.lane.b32.xlu0 %v1455, 20
        %v4616 = vpop.permute.xlu0 %4615
        %4617 = vrot.lane.b32.xlu0 %v1456, 20
        %v4618 = vpop.permute.xlu0 %4617
        %4619 = vrot.lane.b32.xlu0 %v1457, 20
        %v4620 = vpop.permute.xlu0 %4619
        %4621 = vrot.lane.b32.xlu0 %v1458, 20
        %v4622 = vpop.permute.xlu0 %4621
        %4623 = vrot.lane.b32.xlu0 %v1459, 20
        %v4624 = vpop.permute.xlu0 %4623
        %4625 = vrot.lane.b32.xlu0 %v1460, 20
        %v4626 = vpop.permute.xlu0 %4625
        %4627 = vrot.lane.b32.xlu0 %v1461, 20
        %v4628 = vpop.permute.xlu0 %4627
        %4629 = vrot.lane.b32.xlu0 %v1462, 20
        %v4630 = vpop.permute.xlu0 %4629
        %4631 = vrot.lane.b32.xlu0 %v1463, 20
        %v4632 = vpop.permute.xlu0 %4631
        %4633 = vrot.lane.b32.xlu0 %v1464, 20
        %v4634 = vpop.permute.xlu0 %4633
        %4635 = vrot.lane.b32.xlu0 %v1465, 20
        %v4636 = vpop.permute.xlu0 %4635
        %4637 = vrot.lane.b32.xlu0 %v1466, 20
        %v4638 = vpop.permute.xlu0 %4637
        %4639 = vrot.lane.b32.xlu0 %v1467, 20
        %v4640 = vpop.permute.xlu0 %4639
        %4641 = vrot.lane.b32.xlu0 %v1468, 20
        %v4642 = vpop.permute.xlu0 %4641
        %4643 = vrot.lane.b32.xlu0 %v1469, 20
        %v4644 = vpop.permute.xlu0 %4643
        %4645 = vrot.lane.b32.xlu0 %v1470, 20
        %v4646 = vpop.permute.xlu0 %4645
        %4647 = vrot.lane.b32.xlu0 %v1471, 20
        %v4648 = vpop.permute.xlu0 %4647
        %4649 = vrot.lane.b32.xlu0 %v1472, 20
        %v4650 = vpop.permute.xlu0 %4649
        %4651 = vrot.lane.b32.xlu0 %v1473, 20
        %v4652 = vpop.permute.xlu0 %4651
        %4653 = vrot.lane.b32.xlu0 %v1474, 20
        %v4654 = vpop.permute.xlu0 %4653
        %4655 = vrot.lane.b32.xlu0 %v1475, 20
        %v4656 = vpop.permute.xlu0 %4655
        %4657 = vrot.lane.b32.xlu0 %v1476, 20
        %v4658 = vpop.permute.xlu0 %4657
        %4659 = vrot.lane.b32.xlu0 %v1477, 20
        %v4660 = vpop.permute.xlu0 %4659
        %4725 = vrot.lane.b32.xlu0 %v1478, 24
        %v4726 = vpop.permute.xlu0 %4725
        %4727 = vrot.lane.b32.xlu0 %v1479, 24
        %v4728 = vpop.permute.xlu0 %4727
        %4729 = vrot.lane.b32.xlu0 %v1480, 24
        %v4730 = vpop.permute.xlu0 %4729
        %4731 = vrot.lane.b32.xlu0 %v1481, 24
        %v4732 = vpop.permute.xlu0 %4731
        %4733 = vrot.lane.b32.xlu0 %v1482, 24
        %v4734 = vpop.permute.xlu0 %4733
        %4735 = vrot.lane.b32.xlu0 %v1483, 24
        %v4736 = vpop.permute.xlu0 %4735
        %4737 = vrot.lane.b32.xlu0 %v1484, 24
        %v4738 = vpop.permute.xlu0 %4737
        %4739 = vrot.lane.b32.xlu0 %v1485, 24
        %v4740 = vpop.permute.xlu0 %4739
        %4741 = vrot.lane.b32.xlu0 %v1486, 24
        %v4742 = vpop.permute.xlu0 %4741
        %4743 = vrot.lane.b32.xlu0 %v1487, 24
        %v4744 = vpop.permute.xlu0 %4743
        %4745 = vrot.lane.b32.xlu0 %v1488, 24
        %v4746 = vpop.permute.xlu0 %4745
        %4747 = vrot.lane.b32.xlu0 %v1489, 24
        %v4748 = vpop.permute.xlu0 %4747
        %4749 = vrot.lane.b32.xlu0 %v1490, 24
        %v4750 = vpop.permute.xlu0 %4749
        %4751 = vrot.lane.b32.xlu0 %v1491, 24
        %v4752 = vpop.permute.xlu0 %4751
        %4753 = vrot.lane.b32.xlu0 %v1492, 24
        %v4754 = vpop.permute.xlu0 %4753
        %4755 = vrot.lane.b32.xlu0 %v1493, 24
        %v4756 = vpop.permute.xlu0 %4755
        %4757 = vrot.lane.b32.xlu0 %v1494, 24
        %v4758 = vpop.permute.xlu0 %4757
        %4759 = vrot.lane.b32.xlu0 %v1495, 24
        %v4760 = vpop.permute.xlu0 %4759
        %4761 = vrot.lane.b32.xlu0 %v1496, 24
        %v4762 = vpop.permute.xlu0 %4761
        %4763 = vrot.lane.b32.xlu0 %v1497, 24
        %v4764 = vpop.permute.xlu0 %4763
        %4765 = vrot.lane.b32.xlu0 %v1498, 24
        %v4766 = vpop.permute.xlu0 %4765
        %4767 = vrot.lane.b32.xlu0 %v1499, 24
        %v4768 = vpop.permute.xlu0 %4767
        %4769 = vrot.lane.b32.xlu0 %v1500, 24
        %v4770 = vpop.permute.xlu0 %4769
        %4771 = vrot.lane.b32.xlu0 %v1501, 24
        %v4772 = vpop.permute.xlu0 %4771
        %4773 = vrot.lane.b32.xlu0 %v1502, 24
        %v4774 = vpop.permute.xlu0 %4773
        %4775 = vrot.lane.b32.xlu0 %v1503, 24
        %v4776 = vpop.permute.xlu0 %4775
        %4777 = vrot.lane.b32.xlu0 %v1504, 24
        %v4778 = vpop.permute.xlu0 %4777
        %4779 = vrot.lane.b32.xlu0 %v1505, 24
        %v4780 = vpop.permute.xlu0 %4779
        %4781 = vrot.lane.b32.xlu0 %v1506, 24
        %v4782 = vpop.permute.xlu0 %4781
        %4783 = vrot.lane.b32.xlu0 %v1507, 24
        %v4784 = vpop.permute.xlu0 %4783
        %4785 = vrot.lane.b32.xlu0 %v1508, 24
        %v4786 = vpop.permute.xlu0 %4785
        %4787 = vrot.lane.b32.xlu0 %v1509, 24
        %v4788 = vpop.permute.xlu0 %4787
        %4853 = vrot.lane.b32.xlu0 %v1510, 28
        %v4854 = vpop.permute.xlu0 %4853
        %4855 = vrot.lane.b32.xlu0 %v1511, 28
        %v4856 = vpop.permute.xlu0 %4855
        %4857 = vrot.lane.b32.xlu0 %v1512, 28
        %v4858 = vpop.permute.xlu0 %4857
        %4859 = vrot.lane.b32.xlu0 %v1513, 28
        %v4860 = vpop.permute.xlu0 %4859
        %4861 = vrot.lane.b32.xlu0 %v1514, 28
        %v4862 = vpop.permute.xlu0 %4861
        %4863 = vrot.lane.b32.xlu0 %v1515, 28
        %v4864 = vpop.permute.xlu0 %4863
        %4865 = vrot.lane.b32.xlu0 %v1516, 28
        %v4866 = vpop.permute.xlu0 %4865
        %4867 = vrot.lane.b32.xlu0 %v1517, 28
        %v4868 = vpop.permute.xlu0 %4867
        %4869 = vrot.lane.b32.xlu0 %v1518, 28
        %v4870 = vpop.permute.xlu0 %4869
        %4871 = vrot.lane.b32.xlu0 %v1519, 28
        %v4872 = vpop.permute.xlu0 %4871
        %4873 = vrot.lane.b32.xlu0 %v1520, 28
        %v4874 = vpop.permute.xlu0 %4873
        %4875 = vrot.lane.b32.xlu0 %v1521, 28
        %v4876 = vpop.permute.xlu0 %4875
        %4877 = vrot.lane.b32.xlu0 %v1522, 28
        %v4878 = vpop.permute.xlu0 %4877
        %4879 = vrot.lane.b32.xlu0 %v1523, 28
        %v4880 = vpop.permute.xlu0 %4879
        %4881 = vrot.lane.b32.xlu0 %v1524, 28
        %v4882 = vpop.permute.xlu0 %4881
        %4883 = vrot.lane.b32.xlu0 %v1525, 28
        %v4884 = vpop.permute.xlu0 %4883
        %4885 = vrot.lane.b32.xlu0 %v1526, 28
        %v4886 = vpop.permute.xlu0 %4885
        %4887 = vrot.lane.b32.xlu0 %v1527, 28
        %v4888 = vpop.permute.xlu0 %4887
        %4889 = vrot.lane.b32.xlu0 %v1528, 28
        %v4890 = vpop.permute.xlu0 %4889
        %4891 = vrot.lane.b32.xlu0 %v1529, 28
        %v4892 = vpop.permute.xlu0 %4891
        %4893 = vrot.lane.b32.xlu0 %v1530, 28
        %v4894 = vpop.permute.xlu0 %4893
        %4895 = vrot.lane.b32.xlu0 %v1531, 28
        %v4896 = vpop.permute.xlu0 %4895
        %4897 = vrot.lane.b32.xlu0 %v1532, 28
        %v4898 = vpop.permute.xlu0 %4897
        %4899 = vrot.lane.b32.xlu0 %v1533, 28
        %v4900 = vpop.permute.xlu0 %4899
        %4901 = vrot.lane.b32.xlu0 %v1534, 28
        %v4902 = vpop.permute.xlu0 %4901
        %4903 = vrot.lane.b32.xlu0 %v1535, 28
        %v4904 = vpop.permute.xlu0 %4903
        %4905 = vrot.lane.b32.xlu0 %v1536, 28
        %v4906 = vpop.permute.xlu0 %4905
        %4907 = vrot.lane.b32.xlu0 %v1537, 28
        %v4908 = vpop.permute.xlu0 %4907
        %4909 = vrot.lane.b32.xlu0 %v1538, 28
        %v4910 = vpop.permute.xlu0 %4909
        %4911 = vrot.lane.b32.xlu0 %v1539, 28
        %v4912 = vpop.permute.xlu0 %4911
        %4913 = vrot.lane.b32.xlu0 %v1540, 28
        %v4914 = vpop.permute.xlu0 %4913
        %4915 = vrot.lane.b32.xlu0 %v1541, 28
        %v4916 = vpop.permute.xlu0 %4915
        %4981 = vrot.lane.b32.xlu0 %v1543, 32
        %v4982 = vpop.permute.xlu0 %4981
        %4983 = vrot.lane.b32.xlu0 %v1544, 32
        %v4984 = vpop.permute.xlu0 %4983
        %4985 = vrot.lane.b32.xlu0 %v1545, 32
        %v4986 = vpop.permute.xlu0 %4985
        %4987 = vrot.lane.b32.xlu0 %v1546, 32
        %v4988 = vpop.permute.xlu0 %4987
        %4989 = vrot.lane.b32.xlu0 %v1547, 32
        %v4990 = vpop.permute.xlu0 %4989
        %4991 = vrot.lane.b32.xlu0 %v1548, 32
        %v4992 = vpop.permute.xlu0 %4991
        %4993 = vrot.lane.b32.xlu0 %v1549, 32
        %v4994 = vpop.permute.xlu0 %4993
        %4995 = vrot.lane.b32.xlu0 %v1550, 32
        %v4996 = vpop.permute.xlu0 %4995
        %4997 = vrot.lane.b32.xlu0 %v1551, 32
        %v4998 = vpop.permute.xlu0 %4997
        %4999 = vrot.lane.b32.xlu0 %v1552, 32
        %v5000 = vpop.permute.xlu0 %4999
        %5001 = vrot.lane.b32.xlu0 %v1553, 32
        %v5002 = vpop.permute.xlu0 %5001
        %5003 = vrot.lane.b32.xlu0 %v1554, 32
        %v5004 = vpop.permute.xlu0 %5003
        %5005 = vrot.lane.b32.xlu0 %v1555, 32
        %v5006 = vpop.permute.xlu0 %5005
        %5007 = vrot.lane.b32.xlu0 %v1556, 32
        %v5008 = vpop.permute.xlu0 %5007
        %5009 = vrot.lane.b32.xlu0 %v1557, 32
        %v5010 = vpop.permute.xlu0 %5009
        %5011 = vrot.lane.b32.xlu0 %v1558, 32
        %v5012 = vpop.permute.xlu0 %5011
        %5013 = vrot.lane.b32.xlu0 %v1559, 32
        %v5014 = vpop.permute.xlu0 %5013
        %5015 = vrot.lane.b32.xlu0 %v1560, 32
        %v5016 = vpop.permute.xlu0 %5015
        %5017 = vrot.lane.b32.xlu0 %v1561, 32
        %v5018 = vpop.permute.xlu0 %5017
        %5019 = vrot.lane.b32.xlu0 %v1562, 32
        %v5020 = vpop.permute.xlu0 %5019
        %5021 = vrot.lane.b32.xlu0 %v1563, 32
        %v5022 = vpop.permute.xlu0 %5021
        %5023 = vrot.lane.b32.xlu0 %v1564, 32
        %v5024 = vpop.permute.xlu0 %5023
        %5025 = vrot.lane.b32.xlu0 %v1565, 32
        %v5026 = vpop.permute.xlu0 %5025
        %5027 = vrot.lane.b32.xlu0 %v1566, 32
        %v5028 = vpop.permute.xlu0 %5027
        %5029 = vrot.lane.b32.xlu0 %v1567, 32
        %v5030 = vpop.permute.xlu0 %5029
        %5031 = vrot.lane.b32.xlu0 %v1568, 32
        %v5032 = vpop.permute.xlu0 %5031
        %5033 = vrot.lane.b32.xlu0 %v1569, 32
        %v5034 = vpop.permute.xlu0 %5033
        %5035 = vrot.lane.b32.xlu0 %v1570, 32
        %v5036 = vpop.permute.xlu0 %5035
        %5037 = vrot.lane.b32.xlu0 %v1571, 32
        %v5038 = vpop.permute.xlu0 %5037
        %5039 = vrot.lane.b32.xlu0 %v1572, 32
        %v5040 = vpop.permute.xlu0 %5039
        %5041 = vrot.lane.b32.xlu0 %v1573, 32
        %v5042 = vpop.permute.xlu0 %5041
        %5043 = vrot.lane.b32.xlu0 %v1574, 32
        %v5044 = vpop.permute.xlu0 %5043
        %5109 = vrot.lane.b32.xlu0 %v1575, 36
        %v5110 = vpop.permute.xlu0 %5109
        %5111 = vrot.lane.b32.xlu0 %v1576, 36
        %v5112 = vpop.permute.xlu0 %5111
        %5113 = vrot.lane.b32.xlu0 %v1577, 36
        %v5114 = vpop.permute.xlu0 %5113
        %5115 = vrot.lane.b32.xlu0 %v1578, 36
        %v5116 = vpop.permute.xlu0 %5115
        %5117 = vrot.lane.b32.xlu0 %v1579, 36
        %v5118 = vpop.permute.xlu0 %5117
        %5119 = vrot.lane.b32.xlu0 %v1580, 36
        %v5120 = vpop.permute.xlu0 %5119
        %5121 = vrot.lane.b32.xlu0 %v1581, 36
        %v5122 = vpop.permute.xlu0 %5121
        %5123 = vrot.lane.b32.xlu0 %v1582, 36
        %v5124 = vpop.permute.xlu0 %5123
        %5125 = vrot.lane.b32.xlu0 %v1583, 36
        %v5126 = vpop.permute.xlu0 %5125
        %5127 = vrot.lane.b32.xlu0 %v1584, 36
        %v5128 = vpop.permute.xlu0 %5127
        %5129 = vrot.lane.b32.xlu0 %v1585, 36
        %v5130 = vpop.permute.xlu0 %5129
        %5131 = vrot.lane.b32.xlu0 %v1586, 36
        %v5132 = vpop.permute.xlu0 %5131
        %5133 = vrot.lane.b32.xlu0 %v1587, 36
        %v5134 = vpop.permute.xlu0 %5133
        %5135 = vrot.lane.b32.xlu0 %v1588, 36
        %v5136 = vpop.permute.xlu0 %5135
        %5137 = vrot.lane.b32.xlu0 %v1589, 36
        %v5138 = vpop.permute.xlu0 %5137
        %5139 = vrot.lane.b32.xlu0 %v1590, 36
        %v5140 = vpop.permute.xlu0 %5139
        %5141 = vrot.lane.b32.xlu0 %v1591, 36
        %v5142 = vpop.permute.xlu0 %5141
        %5143 = vrot.lane.b32.xlu0 %v1592, 36
        %v5144 = vpop.permute.xlu0 %5143
        %5145 = vrot.lane.b32.xlu0 %v1593, 36
        %v5146 = vpop.permute.xlu0 %5145
        %5147 = vrot.lane.b32.xlu0 %v1594, 36
        %v5148 = vpop.permute.xlu0 %5147
        %5149 = vrot.lane.b32.xlu0 %v1595, 36
        %v5150 = vpop.permute.xlu0 %5149
        %5151 = vrot.lane.b32.xlu0 %v1596, 36
        %v5152 = vpop.permute.xlu0 %5151
        %5153 = vrot.lane.b32.xlu0 %v1597, 36
        %v5154 = vpop.permute.xlu0 %5153
        %5155 = vrot.lane.b32.xlu0 %v1598, 36
        %v5156 = vpop.permute.xlu0 %5155
        %5157 = vrot.lane.b32.xlu0 %v1599, 36
        %v5158 = vpop.permute.xlu0 %5157
        %5159 = vrot.lane.b32.xlu0 %v1600, 36
        %v5160 = vpop.permute.xlu0 %5159
        %5161 = vrot.lane.b32.xlu0 %v1601, 36
        %v5162 = vpop.permute.xlu0 %5161
        %5163 = vrot.lane.b32.xlu0 %v1602, 36
        %v5164 = vpop.permute.xlu0 %5163
        %5165 = vrot.lane.b32.xlu0 %v1603, 36
        %v5166 = vpop.permute.xlu0 %5165
        %5167 = vrot.lane.b32.xlu0 %v1604, 36
        %v5168 = vpop.permute.xlu0 %5167
        %5169 = vrot.lane.b32.xlu0 %v1605, 36
        %v5170 = vpop.permute.xlu0 %5169
        %5171 = vrot.lane.b32.xlu0 %v1606, 36
        %v5172 = vpop.permute.xlu0 %5171
        %5237 = vrot.lane.b32.xlu0 %v1607, 40
        %v5238 = vpop.permute.xlu0 %5237
        %5239 = vrot.lane.b32.xlu0 %v1608, 40
        %v5240 = vpop.permute.xlu0 %5239
        %5241 = vrot.lane.b32.xlu0 %v1609, 40
        %v5242 = vpop.permute.xlu0 %5241
        %5243 = vrot.lane.b32.xlu0 %v1610, 40
        %v5244 = vpop.permute.xlu0 %5243
        %5245 = vrot.lane.b32.xlu0 %v1611, 40
        %v5246 = vpop.permute.xlu0 %5245
        %5247 = vrot.lane.b32.xlu0 %v1612, 40
        %v5248 = vpop.permute.xlu0 %5247
        %5249 = vrot.lane.b32.xlu0 %v1613, 40
        %v5250 = vpop.permute.xlu0 %5249
        %5251 = vrot.lane.b32.xlu0 %v1614, 40
        %v5252 = vpop.permute.xlu0 %5251
        %5253 = vrot.lane.b32.xlu0 %v1615, 40
        %v5254 = vpop.permute.xlu0 %5253
        %5255 = vrot.lane.b32.xlu0 %v1616, 40
        %v5256 = vpop.permute.xlu0 %5255
        %5257 = vrot.lane.b32.xlu0 %v1617, 40
        %v5258 = vpop.permute.xlu0 %5257
        %5259 = vrot.lane.b32.xlu0 %v1618, 40
        %v5260 = vpop.permute.xlu0 %5259
        %5261 = vrot.lane.b32.xlu0 %v1619, 40
        %v5262 = vpop.permute.xlu0 %5261
        %5263 = vrot.lane.b32.xlu0 %v1620, 40
        %v5264 = vpop.permute.xlu0 %5263
        %5265 = vrot.lane.b32.xlu0 %v1621, 40
        %v5266 = vpop.permute.xlu0 %5265
        %5267 = vrot.lane.b32.xlu0 %v1622, 40
        %v5268 = vpop.permute.xlu0 %5267
        %5269 = vrot.lane.b32.xlu0 %v1623, 40
        %v5270 = vpop.permute.xlu0 %5269
        %5271 = vrot.lane.b32.xlu0 %v1624, 40
        %v5272 = vpop.permute.xlu0 %5271
        %5273 = vrot.lane.b32.xlu0 %v1625, 40
        %v5274 = vpop.permute.xlu0 %5273
        %5275 = vrot.lane.b32.xlu0 %v1626, 40
        %v5276 = vpop.permute.xlu0 %5275
        %5277 = vrot.lane.b32.xlu0 %v1627, 40
        %v5278 = vpop.permute.xlu0 %5277
        %5279 = vrot.lane.b32.xlu0 %v1628, 40
        %v5280 = vpop.permute.xlu0 %5279
        %5281 = vrot.lane.b32.xlu0 %v1629, 40
        %v5282 = vpop.permute.xlu0 %5281
        %5283 = vrot.lane.b32.xlu0 %v1630, 40
        %v5284 = vpop.permute.xlu0 %5283
        %5285 = vrot.lane.b32.xlu0 %v1631, 40
        %v5286 = vpop.permute.xlu0 %5285
        %5287 = vrot.lane.b32.xlu0 %v1632, 40
        %v5288 = vpop.permute.xlu0 %5287
        %5289 = vrot.lane.b32.xlu0 %v1633, 40
        %v5290 = vpop.permute.xlu0 %5289
        %5291 = vrot.lane.b32.xlu0 %v1634, 40
        %v5292 = vpop.permute.xlu0 %5291
        %5293 = vrot.lane.b32.xlu0 %v1635, 40
        %v5294 = vpop.permute.xlu0 %5293
        %5295 = vrot.lane.b32.xlu0 %v1636, 40
        %v5296 = vpop.permute.xlu0 %5295
        %5297 = vrot.lane.b32.xlu0 %v1637, 40
        %v5298 = vpop.permute.xlu0 %5297
        %5299 = vrot.lane.b32.xlu0 %v1638, 40
        %v5300 = vpop.permute.xlu0 %5299
        %v5333 = vsel %vm610, %v1284, %v4086
        %v5334 = vsel %vm610, %v1285, %v4088
        %v5335 = vsel %vm610, %v1286, %v4090
        %v5336 = vsel %vm610, %v1287, %v4092
        %v5337 = vsel %vm610, %v1288, %v4094
        %v5338 = vsel %vm610, %v1289, %v4096
        %v5339 = vsel %vm610, %v1290, %v4098
        %v5340 = vsel %vm610, %v1291, %v4100
        %v5341 = vsel %vm610, %v1292, %v4102
        %v5342 = vsel %vm610, %v1293, %v4104
        %v5343 = vsel %vm610, %v1294, %v4106
        %v5344 = vsel %vm610, %v1295, %v4108
        %v5345 = vsel %vm610, %v1296, %v4110
        %v5346 = vsel %vm610, %v1297, %v4112
        %v5347 = vsel %vm610, %v1298, %v4114
        %v5348 = vsel %vm610, %v1299, %v4116
        %v5349 = vsel %vm610, %v1300, %v4118
        %v5350 = vsel %vm610, %v1301, %v4120
        %v5351 = vsel %vm610, %v1302, %v4122
        %v5352 = vsel %vm610, %v1303, %v4124
        %v5353 = vsel %vm610, %v1304, %v4126
        %v5354 = vsel %vm610, %v1305, %v4128
        %v5355 = vsel %vm610, %v1306, %v4130
        %v5356 = vsel %vm610, %v1307, %v4132
        %v5357 = vsel %vm610, %v1308, %v4134
        %v5358 = vsel %vm610, %v1309, %v4136
        %v5359 = vsel %vm610, %v1310, %v4138
        %v5360 = vsel %vm610, %v1311, %v4140
        %v5361 = vsel %vm610, %v1312, %v4142
        %v5362 = vsel %vm610, %v1313, %v4144
        %v5363 = vsel %vm610, %v1314, %v4146
        %v5364 = vsel %vm610, %v1315, %v4148
        %v5365 = vsel %vm3591, %v5333, %v4214
        %v5366 = vsel %vm3591, %v5334, %v4216
        %v5367 = vsel %vm3591, %v5335, %v4218
        %v5368 = vsel %vm3591, %v5336, %v4220
        %v5369 = vsel %vm3591, %v5337, %v4222
        %v5370 = vsel %vm3591, %v5338, %v4224
        %v5371 = vsel %vm3591, %v5339, %v4226
        %v5372 = vsel %vm3591, %v5340, %v4228
        %v5373 = vsel %vm3591, %v5341, %v4230
        %v5374 = vsel %vm3591, %v5342, %v4232
        %v5375 = vsel %vm3591, %v5343, %v4234
        %v5376 = vsel %vm3591, %v5344, %v4236
        %v5377 = vsel %vm3591, %v5345, %v4238
        %v5378 = vsel %vm3591, %v5346, %v4240
        %v5379 = vsel %vm3591, %v5347, %v4242
        %v5380 = vsel %vm3591, %v5348, %v4244
        %v5381 = vsel %vm3591, %v5349, %v4246
        %v5382 = vsel %vm3591, %v5350, %v4248
        %v5383 = vsel %vm3591, %v5351, %v4250
        %v5384 = vsel %vm3591, %v5352, %v4252
        %v5385 = vsel %vm3591, %v5353, %v4254
        %v5386 = vsel %vm3591, %v5354, %v4256
        %v5387 = vsel %vm3591, %v5355, %v4258
        %v5388 = vsel %vm3591, %v5356, %v4260
        %v5389 = vsel %vm3591, %v5357, %v4262
        %v5390 = vsel %vm3591, %v5358, %v4264
        %v5391 = vsel %vm3591, %v5359, %v4266
        %v5392 = vsel %vm3591, %v5360, %v4268
        %v5393 = vsel %vm3591, %v5361, %v4270
        %v5394 = vsel %vm3591, %v5362, %v4272
        %v5395 = vsel %vm3591, %v5363, %v4274
        %v5396 = vsel %vm3591, %v5364, %v4276
        %v5397 = vsel %vm3624, %v5365, %v4342
        %v5398 = vsel %vm3624, %v5366, %v4344
        %v5399 = vsel %vm3624, %v5367, %v4346
        %v5400 = vsel %vm3624, %v5368, %v4348
        %v5401 = vsel %vm3624, %v5369, %v4350
        %v5402 = vsel %vm3624, %v5370, %v4352
        %v5403 = vsel %vm3624, %v5371, %v4354
        %v5404 = vsel %vm3624, %v5372, %v4356
        %v5405 = vsel %vm3624, %v5373, %v4358
        %v5406 = vsel %vm3624, %v5374, %v4360
        %v5407 = vsel %vm3624, %v5375, %v4362
        %v5408 = vsel %vm3624, %v5376, %v4364
        %v5409 = vsel %vm3624, %v5377, %v4366
        %v5410 = vsel %vm3624, %v5378, %v4368
        %v5411 = vsel %vm3624, %v5379, %v4370
        %v5412 = vsel %vm3624, %v5380, %v4372
        %v5413 = vsel %vm3624, %v5381, %v4374
        %v5414 = vsel %vm3624, %v5382, %v4376
        %v5415 = vsel %vm3624, %v5383, %v4378
        %v5416 = vsel %vm3624, %v5384, %v4380
        %v5417 = vsel %vm3624, %v5385, %v4382
        %v5418 = vsel %vm3624, %v5386, %v4384
        %v5419 = vsel %vm3624, %v5387, %v4386
        %v5420 = vsel %vm3624, %v5388, %v4388
        %v5421 = vsel %vm3624, %v5389, %v4390
        %v5422 = vsel %vm3624, %v5390, %v4392
        %v5423 = vsel %vm3624, %v5391, %v4394
        %v5424 = vsel %vm3624, %v5392, %v4396
        %v5425 = vsel %vm3624, %v5393, %v4398
        %v5426 = vsel %vm3624, %v5394, %v4400
        %v5427 = vsel %vm3624, %v5395, %v4402
        %v5428 = vsel %vm3624, %v5396, %v4404
        %v5429 = vsel %vm3657, %v5397, %v4470
        %v5430 = vsel %vm3657, %v5398, %v4472
        %v5431 = vsel %vm3657, %v5399, %v4474
        %v5432 = vsel %vm3657, %v5400, %v4476
        %v5433 = vsel %vm3657, %v5401, %v4478
        %v5434 = vsel %vm3657, %v5402, %v4480
        %v5435 = vsel %vm3657, %v5403, %v4482
        %v5436 = vsel %vm3657, %v5404, %v4484
        %v5437 = vsel %vm3657, %v5405, %v4486
        %v5438 = vsel %vm3657, %v5406, %v4488
        %v5439 = vsel %vm3657, %v5407, %v4490
        %v5440 = vsel %vm3657, %v5408, %v4492
        %v5441 = vsel %vm3657, %v5409, %v4494
        %v5442 = vsel %vm3657, %v5410, %v4496
        %v5443 = vsel %vm3657, %v5411, %v4498
        %v5444 = vsel %vm3657, %v5412, %v4500
        %v5445 = vsel %vm3657, %v5413, %v4502
        %v5446 = vsel %vm3657, %v5414, %v4504
        %v5447 = vsel %vm3657, %v5415, %v4506
        %v5448 = vsel %vm3657, %v5416, %v4508
        %v5449 = vsel %vm3657, %v5417, %v4510
        %v5450 = vsel %vm3657, %v5418, %v4512
        %v5451 = vsel %vm3657, %v5419, %v4514
        %v5452 = vsel %vm3657, %v5420, %v4516
        %v5453 = vsel %vm3657, %v5421, %v4518
        %v5454 = vsel %vm3657, %v5422, %v4520
        %v5455 = vsel %vm3657, %v5423, %v4522
        %v5456 = vsel %vm3657, %v5424, %v4524
        %v5457 = vsel %vm3657, %v5425, %v4526
        %v5458 = vsel %vm3657, %v5426, %v4528
        %v5459 = vsel %vm3657, %v5427, %v4530
        %v5460 = vsel %vm3657, %v5428, %v4532
        %v5461 = vsel %vm3690, %v5429, %v4598
        %v5462 = vsel %vm3690, %v5430, %v4600
        %v5463 = vsel %vm3690, %v5431, %v4602
        %v5464 = vsel %vm3690, %v5432, %v4604
        %v5465 = vsel %vm3690, %v5433, %v4606
        %v5466 = vsel %vm3690, %v5434, %v4608
        %v5467 = vsel %vm3690, %v5435, %v4610
        %v5468 = vsel %vm3690, %v5436, %v4612
        %v5469 = vsel %vm3690, %v5437, %v4614
        %v5470 = vsel %vm3690, %v5438, %v4616
        %v5471 = vsel %vm3690, %v5439, %v4618
        %v5472 = vsel %vm3690, %v5440, %v4620
        %v5473 = vsel %vm3690, %v5441, %v4622
        %v5474 = vsel %vm3690, %v5442, %v4624
        %v5475 = vsel %vm3690, %v5443, %v4626
        %v5476 = vsel %vm3690, %v5444, %v4628
        %v5477 = vsel %vm3690, %v5445, %v4630
        %v5478 = vsel %vm3690, %v5446, %v4632
        %v5479 = vsel %vm3690, %v5447, %v4634
        %v5480 = vsel %vm3690, %v5448, %v4636
        %v5481 = vsel %vm3690, %v5449, %v4638
        %v5482 = vsel %vm3690, %v5450, %v4640
        %v5483 = vsel %vm3690, %v5451, %v4642
        %v5484 = vsel %vm3690, %v5452, %v4644
        %v5485 = vsel %vm3690, %v5453, %v4646
        %v5486 = vsel %vm3690, %v5454, %v4648
        %v5487 = vsel %vm3690, %v5455, %v4650
        %v5488 = vsel %vm3690, %v5456, %v4652
        %v5489 = vsel %vm3690, %v5457, %v4654
        %v5490 = vsel %vm3690, %v5458, %v4656
        %v5491 = vsel %vm3690, %v5459, %v4658
        %v5492 = vsel %vm3690, %v5460, %v4660
        %v5493 = vsel %vm3723, %v5461, %v4726
        %v5494 = vsel %vm3723, %v5462, %v4728
        %v5495 = vsel %vm3723, %v5463, %v4730
        %v5496 = vsel %vm3723, %v5464, %v4732
        %v5497 = vsel %vm3723, %v5465, %v4734
        %v5498 = vsel %vm3723, %v5466, %v4736
        %v5499 = vsel %vm3723, %v5467, %v4738
        %v5500 = vsel %vm3723, %v5468, %v4740
        %v5501 = vsel %vm3723, %v5469, %v4742
        %v5502 = vsel %vm3723, %v5470, %v4744
        %v5503 = vsel %vm3723, %v5471, %v4746
        %v5504 = vsel %vm3723, %v5472, %v4748
        %v5505 = vsel %vm3723, %v5473, %v4750
        %v5506 = vsel %vm3723, %v5474, %v4752
        %v5507 = vsel %vm3723, %v5475, %v4754
        %v5508 = vsel %vm3723, %v5476, %v4756
        %v5509 = vsel %vm3723, %v5477, %v4758
        %v5510 = vsel %vm3723, %v5478, %v4760
        %v5511 = vsel %vm3723, %v5479, %v4762
        %v5512 = vsel %vm3723, %v5480, %v4764
        %v5513 = vsel %vm3723, %v5481, %v4766
        %v5514 = vsel %vm3723, %v5482, %v4768
        %v5515 = vsel %vm3723, %v5483, %v4770
        %v5516 = vsel %vm3723, %v5484, %v4772
        %v5517 = vsel %vm3723, %v5485, %v4774
        %v5518 = vsel %vm3723, %v5486, %v4776
        %v5519 = vsel %vm3723, %v5487, %v4778
        %v5520 = vsel %vm3723, %v5488, %v4780
        %v5521 = vsel %vm3723, %v5489, %v4782
        %v5522 = vsel %vm3723, %v5490, %v4784
        %v5523 = vsel %vm3723, %v5491, %v4786
        %v5524 = vsel %vm3723, %v5492, %v4788
        %v5525 = vsel %vm3756, %v5493, %v4854
        %v5526 = vsel %vm3756, %v5494, %v4856
        %v5527 = vsel %vm3756, %v5495, %v4858
        %v5528 = vsel %vm3756, %v5496, %v4860
        %v5529 = vsel %vm3756, %v5497, %v4862
        %v5530 = vsel %vm3756, %v5498, %v4864
        %v5531 = vsel %vm3756, %v5499, %v4866
        %v5532 = vsel %vm3756, %v5500, %v4868
        %v5533 = vsel %vm3756, %v5501, %v4870
        %v5534 = vsel %vm3756, %v5502, %v4872
        %v5535 = vsel %vm3756, %v5503, %v4874
        %v5536 = vsel %vm3756, %v5504, %v4876
        %v5537 = vsel %vm3756, %v5505, %v4878
        %v5538 = vsel %vm3756, %v5506, %v4880
        %v5539 = vsel %vm3756, %v5507, %v4882
        %v5540 = vsel %vm3756, %v5508, %v4884
        %v5541 = vsel %vm3756, %v5509, %v4886
        %v5542 = vsel %vm3756, %v5510, %v4888
        %v5543 = vsel %vm3756, %v5511, %v4890
        %v5544 = vsel %vm3756, %v5512, %v4892
        %v5545 = vsel %vm3756, %v5513, %v4894
        %v5546 = vsel %vm3756, %v5514, %v4896
        %v5547 = vsel %vm3756, %v5515, %v4898
        %v5548 = vsel %vm3756, %v5516, %v4900
        %v5549 = vsel %vm3756, %v5517, %v4902
        %v5550 = vsel %vm3756, %v5518, %v4904
        %v5551 = vsel %vm3756, %v5519, %v4906
        %v5552 = vsel %vm3756, %v5520, %v4908
        %v5553 = vsel %vm3756, %v5521, %v4910
        %v5554 = vsel %vm3756, %v5522, %v4912
        %v5555 = vsel %vm3756, %v5523, %v4914
        %v5556 = vsel %vm3756, %v5524, %v4916
        %v5557 = vsel %vm3789, %v5525, %v4982
        %v5558 = vsel %vm3789, %v5526, %v4984
        %v5559 = vsel %vm3789, %v5527, %v4986
        %v5560 = vsel %vm3789, %v5528, %v4988
        %v5561 = vsel %vm3789, %v5529, %v4990
        %v5562 = vsel %vm3789, %v5530, %v4992
        %v5563 = vsel %vm3789, %v5531, %v4994
        %v5564 = vsel %vm3789, %v5532, %v4996
        %v5565 = vsel %vm3789, %v5533, %v4998
        %v5566 = vsel %vm3789, %v5534, %v5000
        %v5567 = vsel %vm3789, %v5535, %v5002
        %v5568 = vsel %vm3789, %v5536, %v5004
        %v5569 = vsel %vm3789, %v5537, %v5006
        %v5570 = vsel %vm3789, %v5538, %v5008
        %v5571 = vsel %vm3789, %v5539, %v5010
        %v5572 = vsel %vm3789, %v5540, %v5012
        %v5573 = vsel %vm3789, %v5541, %v5014
        %v5574 = vsel %vm3789, %v5542, %v5016
        %v5575 = vsel %vm3789, %v5543, %v5018
        %v5576 = vsel %vm3789, %v5544, %v5020
        %v5577 = vsel %vm3789, %v5545, %v5022
        %v5578 = vsel %vm3789, %v5546, %v5024
        %v5579 = vsel %vm3789, %v5547, %v5026
        %v5580 = vsel %vm3789, %v5548, %v5028
        %v5581 = vsel %vm3789, %v5549, %v5030
        %v5582 = vsel %vm3789, %v5550, %v5032
        %v5583 = vsel %vm3789, %v5551, %v5034
        %v5584 = vsel %vm3789, %v5552, %v5036
        %v5585 = vsel %vm3789, %v5553, %v5038
        %v5586 = vsel %vm3789, %v5554, %v5040
        %v5587 = vsel %vm3789, %v5555, %v5042
        %v5588 = vsel %vm3789, %v5556, %v5044
        %v5589 = vsel %vm3822, %v5557, %v5110
        %v5590 = vsel %vm3822, %v5558, %v5112
        %v5591 = vsel %vm3822, %v5559, %v5114
        %v5592 = vsel %vm3822, %v5560, %v5116
        %v5593 = vsel %vm3822, %v5561, %v5118
        %v5594 = vsel %vm3822, %v5562, %v5120
        %v5595 = vsel %vm3822, %v5563, %v5122
        %v5596 = vsel %vm3822, %v5564, %v5124
        %v5597 = vsel %vm3822, %v5565, %v5126
        %v5598 = vsel %vm3822, %v5566, %v5128
        %v5599 = vsel %vm3822, %v5567, %v5130
        %v5600 = vsel %vm3822, %v5568, %v5132
        %v5601 = vsel %vm3822, %v5569, %v5134
        %v5602 = vsel %vm3822, %v5570, %v5136
        %v5603 = vsel %vm3822, %v5571, %v5138
        %v5604 = vsel %vm3822, %v5572, %v5140
        %v5605 = vsel %vm3822, %v5573, %v5142
        %v5606 = vsel %vm3822, %v5574, %v5144
        %v5607 = vsel %vm3822, %v5575, %v5146
        %v5608 = vsel %vm3822, %v5576, %v5148
        %v5609 = vsel %vm3822, %v5577, %v5150
        %v5610 = vsel %vm3822, %v5578, %v5152
        %v5611 = vsel %vm3822, %v5579, %v5154
        %v5612 = vsel %vm3822, %v5580, %v5156
        %v5613 = vsel %vm3822, %v5581, %v5158
        %v5614 = vsel %vm3822, %v5582, %v5160
        %v5615 = vsel %vm3822, %v5583, %v5162
        %v5616 = vsel %vm3822, %v5584, %v5164
        %v5617 = vsel %vm3822, %v5585, %v5166
        %v5618 = vsel %vm3822, %v5586, %v5168
        %v5619 = vsel %vm3822, %v5587, %v5170
        %v5620 = vsel %vm3822, %v5588, %v5172
        %v5621 = vsel %vm3855, %v5589, %v5238
        %v5622 = vsel %vm3855, %v5590, %v5240
        %v5623 = vsel %vm3855, %v5591, %v5242
        %v5624 = vsel %vm3855, %v5592, %v5244
        %v5625 = vsel %vm3855, %v5593, %v5246
        %v5626 = vsel %vm3855, %v5594, %v5248
        %v5627 = vsel %vm3855, %v5595, %v5250
        %v5628 = vsel %vm3855, %v5596, %v5252
        %v5629 = vsel %vm3855, %v5597, %v5254
        %v5630 = vsel %vm3855, %v5598, %v5256
        %v5631 = vsel %vm3855, %v5599, %v5258
        %v5632 = vsel %vm3855, %v5600, %v5260
        %v5633 = vsel %vm3855, %v5601, %v5262
        %v5634 = vsel %vm3855, %v5602, %v5264
        %v5635 = vsel %vm3855, %v5603, %v5266
        %v5636 = vsel %vm3855, %v5604, %v5268
        %v5637 = vsel %vm3855, %v5605, %v5270
        %v5638 = vsel %vm3855, %v5606, %v5272
        %v5639 = vsel %vm3855, %v5607, %v5274
        %v5640 = vsel %vm3855, %v5608, %v5276
        %v5641 = vsel %vm3855, %v5609, %v5278
        %v5642 = vsel %vm3855, %v5610, %v5280
        %v5643 = vsel %vm3855, %v5611, %v5282
        %v5644 = vsel %vm3855, %v5612, %v5284
        %v5645 = vsel %vm3855, %v5613, %v5286
        %v5646 = vsel %vm3855, %v5614, %v5288
        %v5647 = vsel %vm3855, %v5615, %v5290
        %v5648 = vsel %vm3855, %v5616, %v5292
        %v5649 = vsel %vm3855, %v5617, %v5294
        %v5650 = vsel %vm3855, %v5618, %v5296
        %v5651 = vsel %vm3855, %v5619, %v5298
        %v5652 = vsel %vm3855, %v5620, %v5300
        %5685 = vrot.lane.b32.xlu0 %v5621, 64
        %v5686 = vpop.permute.xlu0 %5685
        %5687 = vrot.lane.b32.xlu0 %v5622, 64
        %v5688 = vpop.permute.xlu0 %5687
        %5689 = vrot.lane.b32.xlu0 %v5623, 64
        %v5690 = vpop.permute.xlu0 %5689
        %5691 = vrot.lane.b32.xlu0 %v5624, 64
        %v5692 = vpop.permute.xlu0 %5691
        %5693 = vrot.lane.b32.xlu0 %v5625, 64
        %v5694 = vpop.permute.xlu0 %5693
        %5695 = vrot.lane.b32.xlu0 %v5626, 64
        %v5696 = vpop.permute.xlu0 %5695
        %5697 = vrot.lane.b32.xlu0 %v5627, 64
        %v5698 = vpop.permute.xlu0 %5697
        %5699 = vrot.lane.b32.xlu0 %v5628, 64
        %v5700 = vpop.permute.xlu0 %5699
        %5701 = vrot.lane.b32.xlu0 %v5629, 64
        %v5702 = vpop.permute.xlu0 %5701
        %5703 = vrot.lane.b32.xlu0 %v5630, 64
        %v5704 = vpop.permute.xlu0 %5703
        %5705 = vrot.lane.b32.xlu0 %v5631, 64
        %v5706 = vpop.permute.xlu0 %5705
        %5707 = vrot.lane.b32.xlu0 %v5632, 64
        %v5708 = vpop.permute.xlu0 %5707
        %5709 = vrot.lane.b32.xlu0 %v5633, 64
        %v5710 = vpop.permute.xlu0 %5709
        %5711 = vrot.lane.b32.xlu0 %v5634, 64
        %v5712 = vpop.permute.xlu0 %5711
        %5713 = vrot.lane.b32.xlu0 %v5635, 64
        %v5714 = vpop.permute.xlu0 %5713
        %5715 = vrot.lane.b32.xlu0 %v5636, 64
        %v5716 = vpop.permute.xlu0 %5715
        %5717 = vrot.lane.b32.xlu0 %v5637, 64
        %v5718 = vpop.permute.xlu0 %5717
        %5719 = vrot.lane.b32.xlu0 %v5638, 64
        %v5720 = vpop.permute.xlu0 %5719
        %5721 = vrot.lane.b32.xlu0 %v5639, 64
        %v5722 = vpop.permute.xlu0 %5721
        %5723 = vrot.lane.b32.xlu0 %v5640, 64
        %v5724 = vpop.permute.xlu0 %5723
        %5725 = vrot.lane.b32.xlu0 %v5641, 64
        %v5726 = vpop.permute.xlu0 %5725
        %5727 = vrot.lane.b32.xlu0 %v5642, 64
        %v5728 = vpop.permute.xlu0 %5727
        %5729 = vrot.lane.b32.xlu0 %v5643, 64
        %v5730 = vpop.permute.xlu0 %5729
        %5731 = vrot.lane.b32.xlu0 %v5644, 64
        %v5732 = vpop.permute.xlu0 %5731
        %5733 = vrot.lane.b32.xlu0 %v5645, 64
        %v5734 = vpop.permute.xlu0 %5733
        %5735 = vrot.lane.b32.xlu0 %v5646, 64
        %v5736 = vpop.permute.xlu0 %5735
        %5737 = vrot.lane.b32.xlu0 %v5647, 64
        %v5738 = vpop.permute.xlu0 %5737
        %5739 = vrot.lane.b32.xlu0 %v5648, 64
        %v5740 = vpop.permute.xlu0 %5739
        %5741 = vrot.lane.b32.xlu0 %v5649, 64
        %v5742 = vpop.permute.xlu0 %5741
        %5743 = vrot.lane.b32.xlu0 %v5650, 64
        %v5744 = vpop.permute.xlu0 %5743
        %5745 = vrot.lane.b32.xlu0 %v5651, 64
        %v5746 = vpop.permute.xlu0 %5745
        %5747 = vrot.lane.b32.xlu0 %v5652, 64
        %v5748 = vpop.permute.xlu0 %5747
        %vm5781 = vcmask 523264
        %v5782 = vsel %vm5781, %v4021, %v5686
        %v5783 = vsel %vm5781, %v4022, %v5688
        %v5784 = vsel %vm5781, %v4023, %v5690
        %v5785 = vsel %vm5781, %v4024, %v5692
        %v5786 = vsel %vm5781, %v4025, %v5694
        %v5787 = vsel %vm5781, %v4026, %v5696
        %v5788 = vsel %vm5781, %v4027, %v5698
        %v5789 = vsel %vm5781, %v4028, %v5700
        %v5790 = vsel %vm5781, %v4029, %v5702
        %v5791 = vsel %vm5781, %v4030, %v5704
        %v5792 = vsel %vm5781, %v4031, %v5706
        %v5793 = vsel %vm5781, %v4032, %v5708
        %v5794 = vsel %vm5781, %v4033, %v5710
        %v5795 = vsel %vm5781, %v4034, %v5712
        %v5796 = vsel %vm5781, %v4035, %v5714
        %v5797 = vsel %vm5781, %v4036, %v5716
        %v5798 = vsel %vm5781, %v4037, %v5718
        %v5799 = vsel %vm5781, %v4038, %v5720
        %v5800 = vsel %vm5781, %v4039, %v5722
        %v5801 = vsel %vm5781, %v4040, %v5724
        %v5802 = vsel %vm5781, %v4041, %v5726
        %v5803 = vsel %vm5781, %v4042, %v5728
        %v5804 = vsel %vm5781, %v4043, %v5730
        %v5805 = vsel %vm5781, %v4044, %v5732
        %v5806 = vsel %vm5781, %v4045, %v5734
        %v5807 = vsel %vm5781, %v4046, %v5736
        %v5808 = vsel %vm5781, %v4047, %v5738
        %v5809 = vsel %vm5781, %v4048, %v5740
        %v5810 = vsel %vm5781, %v4049, %v5742
        %v5811 = vsel %vm5781, %v4050, %v5744
        %v5812 = vsel %vm5781, %v4051, %v5746
        %v5813 = vsel %vm5781, %v4052, %v5748
        %v5814 = vpack.c.bf16 %v5783, %v5782
        %v5815 = vpack.c.bf16 %v5785, %v5784
        %v5816 = vpack.c.bf16 %v5787, %v5786
        %v5817 = vpack.c.bf16 %v5789, %v5788
        %v5818 = vpack.c.bf16 %v5791, %v5790
        %v5819 = vpack.c.bf16 %v5793, %v5792
        %v5820 = vpack.c.bf16 %v5795, %v5794
        %v5821 = vpack.c.bf16 %v5797, %v5796
        %v5822 = vpack.c.bf16 %v5799, %v5798
        %v5823 = vpack.c.bf16 %v5801, %v5800
        %v5824 = vpack.c.bf16 %v5803, %v5802
        %v5825 = vpack.c.bf16 %v5805, %v5804
        %v5826 = vpack.c.bf16 %v5807, %v5806
        %v5827 = vpack.c.bf16 %v5809, %v5808
        %v5828 = vpack.c.bf16 %v5811, %v5810
        %v5829 = vpack.c.bf16 %v5813, %v5812
        %v5830 = vld [vmem:[%s3] sm:$0xf]
        %v5831 = vld [vmem:[%s3 + $0x4] sm:$0xf]
        %v5832 = vld [vmem:[%s3 + $0x8] sm:$0xf]
        %v5833 = vld [vmem:[%s3 + $0xc] sm:$0xf]
        %v5834 = vld [vmem:[%s3 + $0x10] sm:$0xf]
        %v5835 = vld [vmem:[%s3 + $0x14] sm:$0xf]
        %v5836 = vld [vmem:[%s3 + $0x18] sm:$0xf]
        %v5837 = vld [vmem:[%s3 + $0x1c] sm:$0xf]
        %v5838 = vld [vmem:[%s3 + $0x20] sm:$0xf]
        %v5839 = vld [vmem:[%s3 + $0x24] sm:$0xf]
        %v5840 = vld [vmem:[%s3 + $0x28] sm:$0xf]
        %v5841 = vld [vmem:[%s3 + $0x2c] sm:$0xf]
        %v5842 = vld [vmem:[%s3 + $0x30] sm:$0xf]
        %v5843 = vld [vmem:[%s3 + $0x34] sm:$0x3]
        %v5844 = vld [vmem:[%s4] sm:$0x1]
        %v5846 = vlaneseq
        %v5847 = vshrl.u32 %v5846, 7
        %v5848 = vsub.s32 0, %v5847
        %v5849 = vrot.slane %v5844, %v5848
        %v5865 = vunpack.c.l.b16 %v5830
        %v5866 = vunpack.c.l.b16 %v5831
        %v5867 = vunpack.c.l.b16 %v5832
        %v5868 = vunpack.c.l.b16 %v5833
        %v5869 = vunpack.c.l.b16 %v5834
        %v5870 = vunpack.c.l.b16 %v5835
        %v5871 = vunpack.c.l.b16 %v5836
        %v5872 = vunpack.c.l.b16 %v5837
        %v5873 = vunpack.c.l.b16 %v5838
        %v5874 = vunpack.c.l.b16 %v5839
        %v5875 = vunpack.c.l.b16 %v5840
        %v5876 = vunpack.c.l.b16 %v5841
        %v5877 = vunpack.c.l.b16 %v5842
        %v5878 = vunpack.c.l.b16 %v5843
        %v5879 = vpack.c.b16 %v5866, %v5865
        %v5880 = vpack.c.b16 %v5868, %v5867
        %v5881 = vpack.c.b16 %v5870, %v5869
        %v5882 = vpack.c.b16 %v5872, %v5871
        %v5883 = vpack.c.b16 %v5874, %v5873
        %v5884 = vpack.c.b16 %v5876, %v5875
        %v5885 = vpack.c.b16 %v5878, %v5877
        %vm5892 = vcmask 883712
        %v5894 = vsel %vm5892, %v5814, 0
        %v5897 = vsel %vm5892, %v5815, 0
        %v5900 = vsel %vm5892, %v5816, 0
        %v5903 = vsel %vm5892, %v5817, 0
        %v5906 = vsel %vm5892, %v5818, 0
        %v5909 = vsel %vm5892, %v5819, 0
        %v5912 = vsel %vm5892, %v5820, 0
        %v5915 = vsel %vm5892, %v5821, 0
        %v5918 = vsel %vm5892, %v5822, 0
        %v5921 = vsel %vm5892, %v5823, 0
        %v5924 = vsel %vm5892, %v5824, 0
        %v5927 = vsel %vm5892, %v5825, 0
        %v5930 = vsel %vm5892, %v5826, 0
        %v5933 = vsel %vm5892, %v5827, 0
        %v5936 = vsel %vm5892, %v5828, 0
        %v5939 = vsel %vm5892, %v5829, 0
        %vm5941 = vcmask 1045504
        %v5943 = vsel %vm5941, %v5885, 0
        %5945 = vmatprep.subr.bf16.mxu0 0
        %5946 = vmatpush1.bf16.msra.mxu0 %v5879
        %5947 = vmatprep.subr.bf16.mxu0 0
        %5948 = vmatpush1.bf16.msra.mxu0 %v5880
        %5949 = vmatprep.subr.bf16.mxu0 0
        %5950 = vmatpush1.bf16.msra.mxu0 %v5881
        %5951 = vmatprep.subr.bf16.mxu0 0
        %5952 = vmatpush1.bf16.msra.mxu0 %v5882
        %5953 = vmatprep.subr.bf16.mxu0 0
        %5954 = vmatpush1.bf16.msra.mxu0 %v5883
        %5955 = vmatprep.subr.bf16.mxu0 0
        %5956 = vmatpush1.bf16.msra.mxu0 %v5884
        %5957 = vmatprep.subr.bf16.mxu0 0
        %5958 = vmatpush1.bf16.msra.mxu0 %v5943
        %5959 = vmatprep.subr.bf16.mxu0 0
        %5960 = vmatpush1.bf16.msra.mxu0 0
        %5961 = vmatprep.subr.bf16.mxu0 0
        %5962 = vmatpush1.bf16.msra.mxu0 0
        %5963 = vmatprep.subr.bf16.mxu0 0
        %5964 = vmatpush1.bf16.msra.mxu0 0
        %5965 = vmatprep.subr.bf16.mxu0 0
        %5966 = vmatpush1.bf16.msra.mxu0 0
        %5967 = vmatprep.subr.bf16.mxu0 0
        %5968 = vmatpush1.bf16.msra.mxu0 0
        %5969 = vmatprep.subr.bf16.mxu0 0
        %5970 = vmatpush1.bf16.msra.mxu0 0
        %5971 = vmatprep.subr.bf16.mxu0 0
        %5972 = vmatpush1.bf16.msra.mxu0 0
        %5973 = vmatprep.subr.bf16.mxu0 0
        %5974 = vmatpush1.bf16.msra.mxu0 0
        %5975 = vmatprep.subr.bf16.mxu0 0
        %5976 = vmatpush1.bf16.msra.mxu0 0
        %5977 = vmatprep.mubr.bf16.mxu0 0
        %5978 = vmatmul.mubr.bf16.gmra.mrb[0].mxu0 %v5894
        %v5979 = vpop.f32.mrb[0].mxu0
        %v5980 = vadd.f32 %v5849, %v5979
        %v5981 = vpop.f32.mrb[0].mxu0
        %v5982 = vpop.f32.mrb[0].mxu0
        %v5983 = vadd.f32 %v5849, %v5982
        %v5984 = vpop.f32.mrb[0].mxu0
        %5985 = vmatprep.mubr.bf16.mxu0 0
        %5986 = vmatmul.mubr.bf16.gmra.mrb[0].mxu0 %v5897
        %v5987 = vpop.f32.mrb[0].mxu0
        %v5988 = vadd.f32 %v5849, %v5987
        %v5989 = vpop.f32.mrb[0].mxu0
        %v5990 = vpop.f32.mrb[0].mxu0
        %v5991 = vadd.f32 %v5849, %v5990
        %v5992 = vpop.f32.mrb[0].mxu0
        %5993 = vmatprep.mubr.bf16.mxu0 0
        %5994 = vmatmul.mubr.bf16.gmra.mrb[0].mxu0 %v5900
        %v5995 = vpop.f32.mrb[0].mxu0
        %v5996 = vadd.f32 %v5849, %v5995
        %v5997 = vpop.f32.mrb[0].mxu0
        %v5998 = vpop.f32.mrb[0].mxu0
        %v5999 = vadd.f32 %v5849, %v5998
        %v6000 = vpop.f32.mrb[0].mxu0
        %6001 = vmatprep.mubr.bf16.mxu0 0
        %6002 = vmatmul.mubr.bf16.gmra.mrb[0].mxu0 %v5903
        %v6003 = vpop.f32.mrb[0].mxu0
        %v6004 = vadd.f32 %v5849, %v6003
        %v6005 = vpop.f32.mrb[0].mxu0
        %v6006 = vpop.f32.mrb[0].mxu0
        %v6007 = vadd.f32 %v5849, %v6006
        %v6008 = vpop.f32.mrb[0].mxu0
        %6009 = vmatprep.mubr.bf16.mxu0 0
        %6010 = vmatmul.mubr.bf16.gmra.mrb[0].mxu0 %v5906
        %v6011 = vpop.f32.mrb[0].mxu0
        %v6012 = vadd.f32 %v5849, %v6011
        %v6013 = vpop.f32.mrb[0].mxu0
        %v6014 = vpop.f32.mrb[0].mxu0
        %v6015 = vadd.f32 %v5849, %v6014
        %v6016 = vpop.f32.mrb[0].mxu0
        %6017 = vmatprep.mubr.bf16.mxu0 0
        %6018 = vmatmul.mubr.bf16.gmra.mrb[0].mxu0 %v5909
        %v6019 = vpop.f32.mrb[0].mxu0
        %v6020 = vadd.f32 %v5849, %v6019
        %v6021 = vpop.f32.mrb[0].mxu0
        %v6022 = vpop.f32.mrb[0].mxu0
        %v6023 = vadd.f32 %v5849, %v6022
        %v6024 = vpop.f32.mrb[0].mxu0
        %6025 = vmatprep.mubr.bf16.mxu0 0
        %6026 = vmatmul.mubr.bf16.gmra.mrb[0].mxu0 %v5912
        %v6027 = vpop.f32.mrb[0].mxu0
        %v6028 = vadd.f32 %v5849, %v6027
        %v6029 = vpop.f32.mrb[0].mxu0
        %v6030 = vpop.f32.mrb[0].mxu0
        %v6031 = vadd.f32 %v5849, %v6030
        %v6032 = vpop.f32.mrb[0].mxu0
        %6033 = vmatprep.mubr.bf16.mxu0 0
        %6034 = vmatmul.mubr.bf16.gmra.mrb[0].mxu0 %v5915
        %v6035 = vpop.f32.mrb[0].mxu0
        %v6036 = vadd.f32 %v5849, %v6035
        %v6037 = vpop.f32.mrb[0].mxu0
        %v6038 = vpop.f32.mrb[0].mxu0
        %v6039 = vadd.f32 %v5849, %v6038
        %v6040 = vpop.f32.mrb[0].mxu0
        %6041 = vmatprep.mubr.bf16.mxu0 0
        %6042 = vmatmul.mubr.bf16.gmra.mrb[0].mxu0 %v5918
        %v6043 = vpop.f32.mrb[0].mxu0
        %v6044 = vadd.f32 %v5849, %v6043
        %v6045 = vpop.f32.mrb[0].mxu0
        %v6046 = vpop.f32.mrb[0].mxu0
        %v6047 = vadd.f32 %v5849, %v6046
        %v6048 = vpop.f32.mrb[0].mxu0
        %6049 = vmatprep.mubr.bf16.mxu0 0
        %6050 = vmatmul.mubr.bf16.gmra.mrb[0].mxu0 %v5921
        %v6051 = vpop.f32.mrb[0].mxu0
        %v6052 = vadd.f32 %v5849, %v6051
        %v6053 = vpop.f32.mrb[0].mxu0
        %v6054 = vpop.f32.mrb[0].mxu0
        %v6055 = vadd.f32 %v5849, %v6054
        %v6056 = vpop.f32.mrb[0].mxu0
        %6057 = vmatprep.mubr.bf16.mxu0 0
        %6058 = vmatmul.mubr.bf16.gmra.mrb[0].mxu0 %v5924
        %v6059 = vpop.f32.mrb[0].mxu0
        %v6060 = vadd.f32 %v5849, %v6059
        %v6061 = vpop.f32.mrb[0].mxu0
        %v6062 = vpop.f32.mrb[0].mxu0
        %v6063 = vadd.f32 %v5849, %v6062
        %v6064 = vpop.f32.mrb[0].mxu0
        %6065 = vmatprep.mubr.bf16.mxu0 0
        %6066 = vmatmul.mubr.bf16.gmra.mrb[0].mxu0 %v5927
        %v6067 = vpop.f32.mrb[0].mxu0
        %v6068 = vadd.f32 %v5849, %v6067
        %v6069 = vpop.f32.mrb[0].mxu0
        %v6070 = vpop.f32.mrb[0].mxu0
        %v6071 = vadd.f32 %v5849, %v6070
        %v6072 = vpop.f32.mrb[0].mxu0
        %6073 = vmatprep.mubr.bf16.mxu0 0
        %6074 = vmatmul.mubr.bf16.gmra.mrb[0].mxu0 %v5930
        %v6075 = vpop.f32.mrb[0].mxu0
        %v6076 = vadd.f32 %v5849, %v6075
        %v6077 = vpop.f32.mrb[0].mxu0
        %v6078 = vpop.f32.mrb[0].mxu0
        %v6079 = vadd.f32 %v5849, %v6078
        %v6080 = vpop.f32.mrb[0].mxu0
        %6081 = vmatprep.mubr.bf16.mxu0 0
        %6082 = vmatmul.mubr.bf16.gmra.mrb[0].mxu0 %v5933
        %v6083 = vpop.f32.mrb[0].mxu0
        %v6084 = vadd.f32 %v5849, %v6083
        %v6085 = vpop.f32.mrb[0].mxu0
        %v6086 = vpop.f32.mrb[0].mxu0
        %v6087 = vadd.f32 %v5849, %v6086
        %v6088 = vpop.f32.mrb[0].mxu0
        %6089 = vmatprep.mubr.bf16.mxu0 0
        %6090 = vmatmul.mubr.bf16.gmra.mrb[0].mxu0 %v5936
        %v6091 = vpop.f32.mrb[0].mxu0
        %v6092 = vadd.f32 %v5849, %v6091
        %v6093 = vpop.f32.mrb[0].mxu0
        %v6094 = vpop.f32.mrb[0].mxu0
        %v6095 = vadd.f32 %v5849, %v6094
        %v6096 = vpop.f32.mrb[0].mxu0
        %6097 = vmatprep.mubr.bf16.mxu0 0
        %6098 = vmatmul.mubr.bf16.gmra.mrb[0].mxu0 %v5939
        %v6099 = vpop.f32.mrb[0].mxu0
        %v6100 = vadd.f32 %v5849, %v6099
        %v6101 = vpop.f32.mrb[0].mxu0
        %v6102 = vpop.f32.mrb[0].mxu0
        %v6103 = vadd.f32 %v5849, %v6102
        %v6104 = vpop.f32.mrb[0].mxu0
        %6105 = vdwg.mxu0
        %v6106 = vmax.f32 %v5980, 0.0
        %v6107 = vmax.f32 %v5983, 0.0
        %v6108 = vmax.f32 %v5988, 0.0
        %v6109 = vmax.f32 %v5991, 0.0
        %v6110 = vmax.f32 %v5996, 0.0
        %v6111 = vmax.f32 %v5999, 0.0
        %v6112 = vmax.f32 %v6004, 0.0
        %v6113 = vmax.f32 %v6007, 0.0
        %v6114 = vmax.f32 %v6012, 0.0
        %v6115 = vmax.f32 %v6015, 0.0
        %v6116 = vmax.f32 %v6020, 0.0
        %v6117 = vmax.f32 %v6023, 0.0
        %v6118 = vmax.f32 %v6028, 0.0
        %v6119 = vmax.f32 %v6031, 0.0
        %v6120 = vmax.f32 %v6036, 0.0
        %v6121 = vmax.f32 %v6039, 0.0
        %v6122 = vmax.f32 %v6044, 0.0
        %v6123 = vmax.f32 %v6047, 0.0
        %v6124 = vmax.f32 %v6052, 0.0
        %v6125 = vmax.f32 %v6055, 0.0
        %v6126 = vmax.f32 %v6060, 0.0
        %v6127 = vmax.f32 %v6063, 0.0
        %v6128 = vmax.f32 %v6068, 0.0
        %v6129 = vmax.f32 %v6071, 0.0
        %v6130 = vmax.f32 %v6076, 0.0
        %v6131 = vmax.f32 %v6079, 0.0
        %v6132 = vmax.f32 %v6084, 0.0
        %v6133 = vmax.f32 %v6087, 0.0
        %v6134 = vmax.f32 %v6092, 0.0
        %v6135 = vmax.f32 %v6095, 0.0
        %v6136 = vmax.f32 %v6100, 0.0
        %v6137 = vmax.f32 %v6103, 0.0
        %v6138 = vpack.c.bf16 %v6107, %v6106
        %v6139 = vpack.c.bf16 %v6109, %v6108
        %v6140 = vpack.c.bf16 %v6111, %v6110
        %v6141 = vpack.c.bf16 %v6113, %v6112
        %v6142 = vpack.c.bf16 %v6115, %v6114
        %v6143 = vpack.c.bf16 %v6117, %v6116
        %v6144 = vpack.c.bf16 %v6119, %v6118
        %v6145 = vpack.c.bf16 %v6121, %v6120
        %v6146 = vpack.c.bf16 %v6123, %v6122
        %v6147 = vpack.c.bf16 %v6125, %v6124
        %v6148 = vpack.c.bf16 %v6127, %v6126
        %v6149 = vpack.c.bf16 %v6129, %v6128
        %v6150 = vpack.c.bf16 %v6131, %v6130
        %v6151 = vpack.c.bf16 %v6133, %v6132
        %v6152 = vpack.c.bf16 %v6135, %v6134
        %v6153 = vpack.c.bf16 %v6137, %v6136
        %v6154 = vld [vmem:[%s5] sm:$0x3]
        %v6155 = vld [vmem:[%s6] sm:$0x1]
        %v6157 = vlaneseq
        %v6158 = vshrl.u32 %v6157, 7
        %v6159 = vsub.s32 0, %v6158
        %v6160 = vrot.slane %v6155, %v6159
        %v6163 = vsel %vm610, %v6138, 0
        %v6166 = vsel %vm610, %v6139, 0
        %v6169 = vsel %vm610, %v6140, 0
        %v6172 = vsel %vm610, %v6141, 0
        %v6175 = vsel %vm610, %v6142, 0
        %v6178 = vsel %vm610, %v6143, 0
        %v6181 = vsel %vm610, %v6144, 0
        %v6184 = vsel %vm610, %v6145, 0
        %v6187 = vsel %vm610, %v6146, 0
        %v6190 = vsel %vm610, %v6147, 0
        %v6193 = vsel %vm610, %v6148, 0
        %v6196 = vsel %vm610, %v6149, 0
        %v6199 = vsel %vm610, %v6150, 0
        %v6202 = vsel %vm610, %v6151, 0
        %v6205 = vsel %vm610, %v6152, 0
        %v6208 = vsel %vm610, %v6153, 0
        %vm6210 = vcmask 1041408
        %v6212 = vsel %vm6210, %v6154, 0
        %6214 = vmatprep.subr.bf16.mxu0 0
        %6215 = vmatpush1.bf16.msra.mxu0 %v6212
        %6216 = vmatprep.subr.bf16.mxu0 0
        %6217 = vmatpush1.bf16.msra.mxu0 0
        %6218 = vmatprep.subr.bf16.mxu0 0
        %6219 = vmatpush1.bf16.msra.mxu0 0
        %6220 = vmatprep.subr.bf16.mxu0 0
        %6221 = vmatpush1.bf16.msra.mxu0 0
        %6222 = vmatprep.subr.bf16.mxu0 0
        %6223 = vmatpush1.bf16.msra.mxu0 0
        %6224 = vmatprep.subr.bf16.mxu0 0
        %6225 = vmatpush1.bf16.msra.mxu0 0
        %6226 = vmatprep.subr.bf16.mxu0 0
        %6227 = vmatpush1.bf16.msra.mxu0 0
        %6228 = vmatprep.subr.bf16.mxu0 0
        %6229 = vmatpush1.bf16.msra.mxu0 0
        %6230 = vmatprep.subr.bf16.mxu0 0
        %6231 = vmatpush1.bf16.msra.mxu0 0
        %6232 = vmatprep.subr.bf16.mxu0 0
        %6233 = vmatpush1.bf16.msra.mxu0 0
        %6234 = vmatprep.subr.bf16.mxu0 0
        %6235 = vmatpush1.bf16.msra.mxu0 0
        %6236 = vmatprep.subr.bf16.mxu0 0
        %6237 = vmatpush1.bf16.msra.mxu0 0
        %6238 = vmatprep.subr.bf16.mxu0 0
        %6239 = vmatpush1.bf16.msra.mxu0 0
        %6240 = vmatprep.subr.bf16.mxu0 0
        %6241 = vmatpush1.bf16.msra.mxu0 0
        %6242 = vmatprep.subr.bf16.mxu0 0
        %6243 = vmatpush1.bf16.msra.mxu0 0
        %6244 = vmatprep.subr.bf16.mxu0 0
        %6245 = vmatpush1.bf16.msra.mxu0 0
        %6246 = vmatprep.mubr.bf16.mxu0 0
        %6247 = vmatmul.mubr.bf16.gmra.mrb[0].mxu0 %v6163
        %v6248 = vpop.f32.mrb[0].mxu0
        %v6249 = vadd.f32 %v6160, %v6248
        %v6250 = vpop.f32.mrb[0].mxu0
        %v6251 = vpop.f32.mrb[0].mxu0
        %v6252 = vadd.f32 %v6160, %v6251
        %v6253 = vpop.f32.mrb[0].mxu0
        %6254 = vmatprep.mubr.bf16.mxu0 0
        %6255 = vmatmul.mubr.bf16.gmra.mrb[0].mxu0 %v6166
        %v6256 = vpop.f32.mrb[0].mxu0
        %v6257 = vadd.f32 %v6160, %v6256
        %v6258 = vpop.f32.mrb[0].mxu0
        %v6259 = vpop.f32.mrb[0].mxu0
        %v6260 = vadd.f32 %v6160, %v6259
        %v6261 = vpop.f32.mrb[0].mxu0
        %6262 = vmatprep.mubr.bf16.mxu0 0
        %6263 = vmatmul.mubr.bf16.gmra.mrb[0].mxu0 %v6169
        %v6264 = vpop.f32.mrb[0].mxu0
        %v6265 = vadd.f32 %v6160, %v6264
        %v6266 = vpop.f32.mrb[0].mxu0
        %v6267 = vpop.f32.mrb[0].mxu0
        %v6268 = vadd.f32 %v6160, %v6267
        %v6269 = vpop.f32.mrb[0].mxu0
        %6270 = vmatprep.mubr.bf16.mxu0 0
        %6271 = vmatmul.mubr.bf16.gmra.mrb[0].mxu0 %v6172
        %v6272 = vpop.f32.mrb[0].mxu0
        %v6273 = vadd.f32 %v6160, %v6272
        %v6274 = vpop.f32.mrb[0].mxu0
        %v6275 = vpop.f32.mrb[0].mxu0
        %v6276 = vadd.f32 %v6160, %v6275
        %v6277 = vpop.f32.mrb[0].mxu0
        %6278 = vmatprep.mubr.bf16.mxu0 0
        %6279 = vmatmul.mubr.bf16.gmra.mrb[0].mxu0 %v6175
        %v6280 = vpop.f32.mrb[0].mxu0
        %v6281 = vadd.f32 %v6160, %v6280
        %v6282 = vpop.f32.mrb[0].mxu0
        %v6283 = vpop.f32.mrb[0].mxu0
        %v6284 = vadd.f32 %v6160, %v6283
        %v6285 = vpop.f32.mrb[0].mxu0
        %6286 = vmatprep.mubr.bf16.mxu0 0
        %6287 = vmatmul.mubr.bf16.gmra.mrb[0].mxu0 %v6178
        %v6288 = vpop.f32.mrb[0].mxu0
        %v6289 = vadd.f32 %v6160, %v6288
        %v6290 = vpop.f32.mrb[0].mxu0
        %v6291 = vpop.f32.mrb[0].mxu0
        %v6292 = vadd.f32 %v6160, %v6291
        %v6293 = vpop.f32.mrb[0].mxu0
        %6294 = vmatprep.mubr.bf16.mxu0 0
        %6295 = vmatmul.mubr.bf16.gmra.mrb[0].mxu0 %v6181
        %v6296 = vpop.f32.mrb[0].mxu0
        %v6297 = vadd.f32 %v6160, %v6296
        %v6298 = vpop.f32.mrb[0].mxu0
        %v6299 = vpop.f32.mrb[0].mxu0
        %v6300 = vadd.f32 %v6160, %v6299
        %v6301 = vpop.f32.mrb[0].mxu0
        %6302 = vmatprep.mubr.bf16.mxu0 0
        %6303 = vmatmul.mubr.bf16.gmra.mrb[0].mxu0 %v6184
        %v6304 = vpop.f32.mrb[0].mxu0
        %v6305 = vadd.f32 %v6160, %v6304
        %v6306 = vpop.f32.mrb[0].mxu0
        %v6307 = vpop.f32.mrb[0].mxu0
        %v6308 = vadd.f32 %v6160, %v6307
        %v6309 = vpop.f32.mrb[0].mxu0
        %6310 = vmatprep.mubr.bf16.mxu0 0
        %6311 = vmatmul.mubr.bf16.gmra.mrb[0].mxu0 %v6187
        %v6312 = vpop.f32.mrb[0].mxu0
        %v6313 = vadd.f32 %v6160, %v6312
        %v6314 = vpop.f32.mrb[0].mxu0
        %v6315 = vpop.f32.mrb[0].mxu0
        %v6316 = vadd.f32 %v6160, %v6315
        %v6317 = vpop.f32.mrb[0].mxu0
        %6318 = vmatprep.mubr.bf16.mxu0 0
        %6319 = vmatmul.mubr.bf16.gmra.mrb[0].mxu0 %v6190
        %v6320 = vpop.f32.mrb[0].mxu0
        %v6321 = vadd.f32 %v6160, %v6320
        %v6322 = vpop.f32.mrb[0].mxu0
        %v6323 = vpop.f32.mrb[0].mxu0
        %v6324 = vadd.f32 %v6160, %v6323
        %v6325 = vpop.f32.mrb[0].mxu0
        %6326 = vmatprep.mubr.bf16.mxu0 0
        %6327 = vmatmul.mubr.bf16.gmra.mrb[0].mxu0 %v6193
        %v6328 = vpop.f32.mrb[0].mxu0
        %v6329 = vadd.f32 %v6160, %v6328
        %v6330 = vpop.f32.mrb[0].mxu0
        %v6331 = vpop.f32.mrb[0].mxu0
        %v6332 = vadd.f32 %v6160, %v6331
        %v6333 = vpop.f32.mrb[0].mxu0
        %6334 = vmatprep.mubr.bf16.mxu0 0
        %6335 = vmatmul.mubr.bf16.gmra.mrb[0].mxu0 %v6196
        %v6336 = vpop.f32.mrb[0].mxu0
        %v6337 = vadd.f32 %v6160, %v6336
        %v6338 = vpop.f32.mrb[0].mxu0
        %v6339 = vpop.f32.mrb[0].mxu0
        %v6340 = vadd.f32 %v6160, %v6339
        %v6341 = vpop.f32.mrb[0].mxu0
        %6342 = vmatprep.mubr.bf16.mxu0 0
        %6343 = vmatmul.mubr.bf16.gmra.mrb[0].mxu0 %v6199
        %v6344 = vpop.f32.mrb[0].mxu0
        %v6345 = vadd.f32 %v6160, %v6344
        %v6346 = vpop.f32.mrb[0].mxu0
        %v6347 = vpop.f32.mrb[0].mxu0
        %v6348 = vadd.f32 %v6160, %v6347
        %v6349 = vpop.f32.mrb[0].mxu0
        %6350 = vmatprep.mubr.bf16.mxu0 0
        %6351 = vmatmul.mubr.bf16.gmra.mrb[0].mxu0 %v6202
        %v6352 = vpop.f32.mrb[0].mxu0
        %v6353 = vadd.f32 %v6160, %v6352
        %v6354 = vpop.f32.mrb[0].mxu0
        %v6355 = vpop.f32.mrb[0].mxu0
        %v6356 = vadd.f32 %v6160, %v6355
        %v6357 = vpop.f32.mrb[0].mxu0
        %6358 = vmatprep.mubr.bf16.mxu0 0
        %6359 = vmatmul.mubr.bf16.gmra.mrb[0].mxu0 %v6205
        %v6360 = vpop.f32.mrb[0].mxu0
        %v6361 = vadd.f32 %v6160, %v6360
        %v6362 = vpop.f32.mrb[0].mxu0
        %v6363 = vpop.f32.mrb[0].mxu0
        %v6364 = vadd.f32 %v6160, %v6363
        %v6365 = vpop.f32.mrb[0].mxu0
        %6366 = vmatprep.mubr.bf16.mxu0 0
        %6367 = vmatmul.mubr.bf16.gmra.mrb[0].mxu0 %v6208
        %v6368 = vpop.f32.mrb[0].mxu0
        %v6369 = vadd.f32 %v6160, %v6368
        %v6370 = vpop.f32.mrb[0].mxu0
        %v6371 = vpop.f32.mrb[0].mxu0
        %v6372 = vadd.f32 %v6160, %v6371
        %v6373 = vpop.f32.mrb[0].mxu0
        %6374 = vdwg.mxu0
        %v6375 = vadd.f32 %v6249, %v298
        %v6376 = vadd.f32 %v6252, %v299
        %v6377 = vadd.f32 %v6257, %v300
        %v6378 = vadd.f32 %v6260, %v301
        %v6379 = vadd.f32 %v6265, %v302
        %v6380 = vadd.f32 %v6268, %v303
        %v6381 = vadd.f32 %v6273, %v304
        %v6382 = vadd.f32 %v6276, %v305
        %v6383 = vadd.f32 %v6281, %v306
        %v6384 = vadd.f32 %v6284, %v307
        %v6385 = vadd.f32 %v6289, %v308
        %v6386 = vadd.f32 %v6292, %v309
        %v6387 = vadd.f32 %v6297, %v310
        %v6388 = vadd.f32 %v6300, %v311
        %v6389 = vadd.f32 %v6305, %v312
        %v6390 = vadd.f32 %v6308, %v313
        %v6391 = vadd.f32 %v6313, %v314
        %v6392 = vadd.f32 %v6316, %v315
        %v6393 = vadd.f32 %v6321, %v316
        %v6394 = vadd.f32 %v6324, %v317
        %v6395 = vadd.f32 %v6329, %v318
        %v6396 = vadd.f32 %v6332, %v319
        %v6397 = vadd.f32 %v6337, %v320
        %v6398 = vadd.f32 %v6340, %v321
        %v6399 = vadd.f32 %v6345, %v322
        %v6400 = vadd.f32 %v6348, %v323
        %v6401 = vadd.f32 %v6353, %v324
        %v6402 = vadd.f32 %v6356, %v325
        %v6403 = vadd.f32 %v6361, %v326
        %v6404 = vadd.f32 %v6364, %v327
        %v6405 = vadd.f32 %v6369, %v328
        %v6406 = vadd.f32 %v6372, %v329
        %v6407 = vmax.f32 %v6375, 0.0
        %v6408 = vmax.f32 %v6376, 0.0
        %v6409 = vmax.f32 %v6377, 0.0
        %v6410 = vmax.f32 %v6378, 0.0
        %v6411 = vmax.f32 %v6379, 0.0
        %v6412 = vmax.f32 %v6380, 0.0
        %v6413 = vmax.f32 %v6381, 0.0
        %v6414 = vmax.f32 %v6382, 0.0
        %v6415 = vmax.f32 %v6383, 0.0
        %v6416 = vmax.f32 %v6384, 0.0
        %v6417 = vmax.f32 %v6385, 0.0
        %v6418 = vmax.f32 %v6386, 0.0
        %v6419 = vmax.f32 %v6387, 0.0
        %v6420 = vmax.f32 %v6388, 0.0
        %v6421 = vmax.f32 %v6389, 0.0
        %v6422 = vmax.f32 %v6390, 0.0
        %v6423 = vmax.f32 %v6391, 0.0
        %v6424 = vmax.f32 %v6392, 0.0
        %v6425 = vmax.f32 %v6393, 0.0
        %v6426 = vmax.f32 %v6394, 0.0
        %v6427 = vmax.f32 %v6395, 0.0
        %v6428 = vmax.f32 %v6396, 0.0
        %v6429 = vmax.f32 %v6397, 0.0
        %v6430 = vmax.f32 %v6398, 0.0
        %v6431 = vmax.f32 %v6399, 0.0
        %v6432 = vmax.f32 %v6400, 0.0
        %v6433 = vmax.f32 %v6401, 0.0
        %v6434 = vmax.f32 %v6402, 0.0
        %v6435 = vmax.f32 %v6403, 0.0
        %v6436 = vmax.f32 %v6404, 0.0
        %v6437 = vmax.f32 %v6405, 0.0
        %v6438 = vmax.f32 %v6406, 0.0
        %6439 = vst [vmem:[%s296] sm:$0xff] %v6407
        %6440 = vst [vmem:[%s296 + $0x8] sm:$0xff] %v6408
        %6441 = vst [vmem:[%s296 + $0x10] sm:$0xff] %v6409
        %6442 = vst [vmem:[%s296 + $0x18] sm:$0xff] %v6410
        %6443 = vst [vmem:[%s296 + $0x20] sm:$0xff] %v6411
        %6444 = vst [vmem:[%s296 + $0x28] sm:$0xff] %v6412
        %6445 = vst [vmem:[%s296 + $0x30] sm:$0xff] %v6413
        %6446 = vst [vmem:[%s296 + $0x38] sm:$0xff] %v6414
        %6447 = vst [vmem:[%s296 + $0x40] sm:$0xff] %v6415
        %6448 = vst [vmem:[%s296 + $0x48] sm:$0xff] %v6416
        %6449 = vst [vmem:[%s296 + $0x50] sm:$0xff] %v6417
        %6450 = vst [vmem:[%s296 + $0x58] sm:$0xff] %v6418
        %6451 = vst [vmem:[%s296 + $0x60] sm:$0xff] %v6419
        %6452 = vst [vmem:[%s296 + $0x68] sm:$0xff] %v6420
        %6453 = vst [vmem:[%s296 + $0x70] sm:$0xff] %v6421
        %6454 = vst [vmem:[%s296 + $0x78] sm:$0xff] %v6422
        %6455 = vst [vmem:[%s296 + $0x80] sm:$0xff] %v6423
        %6456 = vst [vmem:[%s296 + $0x88] sm:$0xff] %v6424
        %6457 = vst [vmem:[%s296 + $0x90] sm:$0xff] %v6425
        %6458 = vst [vmem:[%s296 + $0x98] sm:$0xff] %v6426
        %6459 = vst [vmem:[%s296 + $0xa0] sm:$0xff] %v6427
        %6460 = vst [vmem:[%s296 + $0xa8] sm:$0xff] %v6428
        %6461 = vst [vmem:[%s296 + $0xb0] sm:$0xff] %v6429
        %6462 = vst [vmem:[%s296 + $0xb8] sm:$0xff] %v6430
        %6463 = vst [vmem:[%s296 + $0xc0] sm:$0xff] %v6431
        %6464 = vst [vmem:[%s296 + $0xc8] sm:$0xff] %v6432
        %6465 = vst [vmem:[%s296 + $0xd0] sm:$0xff] %v6433
        %6466 = vst [vmem:[%s296 + $0xd8] sm:$0xff] %v6434
        %6467 = vst [vmem:[%s296 + $0xe0] sm:$0xff] %v6435
        %6468 = vst [vmem:[%s296 + $0xe8] sm:$0xff] %v6436
        %6469 = vst [vmem:[%s296 + $0xf0] sm:$0xff] %v6437
        %6470 = vst [vmem:[%s296 + $0xf8] sm:$0xff] %v6438
        %s6471 = sand.u32 %s184, 1
        %s6472 = scalar_lea.sflag [#allocation5], %s6471
        %s6473 = sand.u32 %s184, 1
        %s6474 = smul.addr %s6473, 256
        %s6475 = scalar_lea.vmem [#allocation6], %s6474
        // Predicated region
        $region53: #{tpu_custom_call.1} parent=47 // pred_check
          %p6476 = pneg %p194
        $region54: #{tpu_custom_call.1} parent=47 // pred_check_branch
          %6478 = sbr.rel (%p6476) target = $region56
        $region55: #{tpu_custom_call.1} parent=47 // pred_region
          %s6480 = ssub.s32 4096, 4096
          %6481 = vsyncadd %s6472, %s6480
          %s6482 = smul.addr %s24, 32
          %s6483 = smul.addr %s6482, 128
          %s6484 = scalar_lea.hbm %s7, %s6483
          %s6485 = sshll.u32 %s6475, 4
          %s6486 = int_to_ptr.vmem [resolvable:$true] %s6485
          %6491 = dma.vmem_to_hbm [thread:$0]  %s6486, 4096, %s6484, %s6472, 128, 128, 8
        $region56: #{tpu_custom_call.1} parent=47 // pred_fallthru
          _
      $region48: #{tpu_custom_call.1} parent=5 // pred_fallthru
        _
      %p6492 = scmp.le.s32.totalorder 2, %s19
      // Predicated region
      $region57: #{tpu_custom_call.1} parent=5 // pred_check
        %p6493 = pneg %p6492
      $region58: #{tpu_custom_call.1} parent=5 // pred_check_branch
        %6495 = sbr.rel (%p6493) target = $region60
      $region59: #{tpu_custom_call.1} parent=5 // pred_region
        %s6496 = ssub.s32 %s19, 2
        // Predicated region
        $region61: #{tpu_custom_call.1} parent=59 // pred_check
          %p6497 = pneg %p200
        $region62: #{tpu_custom_call.1} parent=59 // pred_check_branch
          %6499 = sbr.rel (%p6497) target = $region64
        $region63: #{tpu_custom_call.1} parent=59 // pred_region
          %s6500 = sand.u32 %s185, 1
          %s6501 = scalar_lea.sflag [#allocation5], %s6500
          %s6502 = sand.u32 %s185, 1
          %s6503 = smul.addr %s6502, 256
          %s6504 = scalar_lea.vmem [#allocation6], %s6503
          %6505 = dma.done %s6501, 4096
        $region64: #{tpu_custom_call.1} parent=59 // pred_fallthru
          _
      $region60: #{tpu_custom_call.1} parent=5 // pred_fallthru
        _
    $region6: #{tpu_custom_call.1} parent=1 // loop_footer
      %s23 = sadd.s32 1, %s19
    $region7: #{tpu_custom_call.1} parent=1 // loop_footer_branch
      %18 = sbr.rel target = $region3
    $region8: #{tpu_custom_call.1} parent=1 // loop_exit
      _
    %6506 = vsyncpa [#allocation4], 1
    %s6507 = scalar_lea.sflag [#allocation4], 1
    %6508 = vsyncpa %s6507, 1
    %6509 = vsyncpa [#allocation5], 1
    %s6510 = scalar_lea.sflag [#allocation5], 1
    %6511 = vsyncpa %s6510, 1

</llo_original>
